<compile_context>
chip_gen: v7x
topology: tpu7x:2x2x1
jax: 0.10.0
libtpu: 0.0.40
codegen_flags: <defaults>
</compile_context>

<pallas_src>
import jax
import jax.numpy as jnp
from jax.experimental import pallas as pl
from jax.experimental.pallas import tpu as pltpu


# -----------------------------------------------------------------------------
# Pallas grouped GEMM + bias kernel (the hot path for every conv layer)
#   A: (G, M, K) bf16, W: (G, K, N) bf16, bias: (G, 1, N) f32 -> O: (G, M, N)
# -----------------------------------------------------------------------------
def _gemm_bias_kernel(x_ref, w_ref, b_ref, o_ref, acc_ref):
    k = pl.program_id(3)

    @pl.when(k == 0)
    def _():
        acc_ref[...] = jnp.zeros_like(acc_ref)

    acc_ref[...] += jnp.dot(
        x_ref[0], w_ref[0], preferred_element_type=jnp.float32
    )

    @pl.when(k == pl.num_programs(3) - 1)
    def _():
        o_ref[0] = (acc_ref[...] + b_ref[0]).astype(o_ref.dtype)


def _round_up(x, m):
    return (x + m - 1) // m * m


def _tiles(M, K, N):
    # M: tile at 256 rows (fits comfortably in VMEM on v7x's 64 MiB) unless the
    #    whole M fits in a single <=512-row block; bf16 needs 16-row alignment.
    if M <= 512:
        Mp = _round_up(M, 16)
        tm = Mp
    else:
        tm = 256
        Mp = _round_up(M, tm)
    Kp = _round_up(K, 128)
    tk = 256 if (Kp >= 256 and Kp % 256 == 0) else 128
    Np = _round_up(N, 128)
    tn = 256 if (Np >= 256 and Np % 256 == 0) else 128
    return Mp, Kp, Np, tm, tk, tn


def grouped_matmul_bias(x, w, b, out_dtype=jnp.bfloat16):
    """Batched-over-groups (G,M,K)@(G,K,N) + b[G,N], tiled Pallas TPU kernel."""
    G, M, K = x.shape
    N = w.shape[2]
    Mp, Kp, Np, tm, tk, tn = _tiles(M, K, N)

    xp = jnp.pad(x.astype(jnp.bfloat16), ((0, 0), (0, Mp - M), (0, Kp - K)))
    wp = jnp.pad(w.astype(jnp.bfloat16), ((0, 0), (0, Kp - K), (0, Np - N)))
    bp = jnp.pad(b.astype(jnp.float32), ((0, 0), (0, Np - N)))[:, None, :]

    grid = (G, Mp // tm, Np // tn, Kp // tk)

    out = pl.pallas_call(
        _gemm_bias_kernel,
        out_shape=jax.ShapeDtypeStruct((G, Mp, Np), out_dtype),
        grid_spec=pltpu.PrefetchScalarGridSpec(
            num_scalar_prefetch=0,
            grid=grid,
            in_specs=[
                pl.BlockSpec((1, tm, tk), lambda g, m, n, k: (g, m, k)),
                pl.BlockSpec((1, tk, tn), lambda g, m, n, k: (g, k, n)),
                pl.BlockSpec((1, 1, tn), lambda g, m, n, k: (g, 0, n)),
            ],
            out_specs=pl.BlockSpec((1, tm, tn), lambda g, m, n, k: (g, m, n)),
            scratch_shapes=[pltpu.VMEM((tm, tn), jnp.float32)],
        ),
        compiler_params=pltpu.CompilerParams(
            dimension_semantics=("parallel", "parallel", "parallel", "arbitrary"),
            vmem_limit_bytes=32 * 1024 * 1024,
        ),
    )(xp, wp, bp)
    return out[:, :M, :N]


# -----------------------------------------------------------------------------
# Conv2d = im2col (glue) + Pallas grouped GEMM
# -----------------------------------------------------------------------------
def _im2col(x_nhwc, KH, KW, stride, padding, dilation):
    """Returns (B*OH*OW, KH*KW*Cin) bf16 patches, plus OH, OW."""
    x = x_nhwc.astype(jnp.bfloat16)
    B, H, W, C = x.shape
    xp = jnp.pad(x, ((0, 0), (padding, padding), (padding, padding), (0, 0)))
    OH = (H + 2 * padding - dilation * (KH - 1) - 1) // stride + 1
    OW = (W + 2 * padding - dilation * (KW - 1) - 1) // stride + 1
    cols = []
    for kh in range(KH):
        for kw in range(KW):
            h0 = kh * dilation
            w0 = kw * dilation
            cols.append(
                xp[
                    :,
                    h0 : h0 + (OH - 1) * stride + 1 : stride,
                    w0 : w0 + (OW - 1) * stride + 1 : stride,
                    :,
                ]
            )
    patches = jnp.concatenate(cols, axis=-1)  # (B, OH, OW, KH*KW*Cin)
    return patches.reshape(B * OH * OW, KH * KW * C), OH, OW


def conv2d(x_nhwc, w_kn, b_n, *, kernel, stride, padding, dilation,
           out_dtype=jnp.bfloat16):
    """x: (B,H,W,Cin); w_kn: (KH*KW*Cin, Cout) pre-flattened bf16; b: (Cout,)."""
    B = x_nhwc.shape[0]
    patches, OH, OW = _im2col(x_nhwc, kernel, kernel, stride, padding, dilation)
    out = grouped_matmul_bias(patches[None], w_kn[None], b_n[None],
                              out_dtype=out_dtype)
    return out[0].reshape(B, OH, OW, -1)


# -----------------------------------------------------------------------------
# Module pieces
# -----------------------------------------------------------------------------
_MS_DILATION = (1, 2, 4, 8)  # padding == dilation, so all branches share OH/OW


def multi_scale_conv2d(x_nhwc, ms_params):
    """4 dilated 3x3 stride-2 branches as one grouped GEMM; concat on channels."""
    B = x_nhwc.shape[0]
    patch_list = []
    OH = OW = None
    for d in _MS_DILATION:
        p, OH, OW = _im2col(x_nhwc, 3, 3, stride=2, padding=d, dilation=d)
        patch_list.append(p)
    A = jnp.stack(patch_list, axis=0)                 # (4, M, 9*Cin)
    out = grouped_matmul_bias(A, ms_params["w"], ms_params["b"])  # (4, M, Cout//4)
    G, M, Nb = out.shape
    out = jnp.transpose(out, (1, 0, 2)).reshape(B, OH, OW, G * Nb)
    return out


def _conv_param(key, cout, cin, kh, kw, scale=0.05):
    kw_, kb_ = jax.random.split(key)
    w = scale * jax.random.normal(kw_, (cout, cin, kh, kw), jnp.float32)
    b = scale * jax.random.normal(kb_, (cout,), jnp.float32)
    return w, b


def _ms_params_raw(key, cin, cout):
    keys = jax.random.split(key, 4)
    return [_conv_param(k, cout // 4, cin, 3, 3) for k in keys]


def _prep_conv(w_oihw, b):
    """PyTorch (Cout,Cin,KH,KW) -> (KH*KW*Cin, Cout) bf16 matrix, once at init."""
    Cout, Cin, KH, KW = w_oihw.shape
    wmat = jnp.transpose(w_oihw, (2, 3, 1, 0)).reshape(KH * KW * Cin, Cout)
    return wmat.astype(jnp.bfloat16), b.astype(jnp.float32)


def _prep_ms(branches):
    ws, bs = zip(*[_prep_conv(w, b) for (w, b) in branches])
    return {"w": jnp.stack(ws, axis=0), "b": jnp.stack(bs, axis=0)}


def init_params(key, *, bnd, vae_bnd, t_frames):
    ks = jax.random.split(key, 9)
    raw = {
        "motion_enc": _conv_param(ks[0], bnd, 3 * t_frames, 3, 3),
        "mc64": _conv_param(ks[1], 64, bnd, 3, 3),
        "mc256": _conv_param(ks[2], 256, bnd, 3, 3),
        "enc_in": _ms_params_raw(ks[3], 3, 64),
        "enc_128": _ms_params_raw(ks[4], 128, 256),
        "enc_512": _ms_params_raw(ks[5], 512, 512),
        "enc_out": _ms_params_raw(ks[6], 512, 512),
        "mu": _conv_param(ks[7], vae_bnd, 512, 1, 1),
        "logvar": _conv_param(ks[8], vae_bnd, 512, 1, 1),
    }
    params = {}
    for name in ("motion_enc", "mc64", "mc256"):
        params[name] = _prep_conv(*raw[name])
    for name in ("enc_in", "enc_128", "enc_512", "enc_out"):
        params[name] = _prep_ms(raw[name])
    # Fuse the mu / logvar 1x1 heads into a single GEMM along N.
    wm, bm = _prep_conv(*raw["mu"])
    wl, bl = _prep_conv(*raw["logvar"])
    params["head"] = (jnp.concatenate([wm, wl], axis=1),
                      jnp.concatenate([bm, bl], axis=0))
    return params


def _nchw_to_nhwc(x):
    return jnp.transpose(x, (0, 2, 3, 1))


def _nhwc_to_nchw(x):
    return jnp.transpose(x, (0, 3, 1, 2))


@jax.jit
def video_vae_encoder_forward(params, x_video, iframe):
    """x_video: (B, 3, T, H, W); iframe: (B, 3, H, W).  Returns (mu, logvar) NCHW."""
    B, C, T, H, W = x_video.shape

    # MultiScaleVideoEncoder: Conv3d(3, bnd, (T,3,3), stride (1,2,2), pad (0,1,1))
    # expressed as a 2D conv over 3*T input channels; singleton T is squeezed
    # (matches b.squeeze(2) in the reference forward).
    vid2d = _nchw_to_nhwc(x_video.reshape(B, C * T, H, W))
    w_me, b_me = params["motion_enc"]
    b_feat = conv2d(vid2d, w_me, b_me, kernel=3, stride=2, padding=1, dilation=1)

    # MotionCond: conditioning features at two resolutions.
    w64, bb64 = params["mc64"]
    m64 = conv2d(b_feat, w64, bb64, kernel=3, stride=1, padding=1, dilation=1)
    w256, bb256 = params["mc256"]
    m256 = conv2d(b_feat, w256, bb256, kernel=3, stride=2, padding=1, dilation=1)

    # VAE encoder trunk (each stage = one grouped 4-branch Pallas GEMM).
    x = multi_scale_conv2d(_nchw_to_nhwc(iframe), params["enc_in"])
    x = multi_scale_conv2d(jnp.concatenate([x, m64], axis=-1), params["enc_128"])
    x = multi_scale_conv2d(jnp.concatenate([x, m256], axis=-1), params["enc_512"])
    x = multi_scale_conv2d(x, params["enc_out"])

    # Fused mu/logvar 1x1 conv head (single GEMM, f32 outputs).
    w_h, b_h = params["head"]
    head = conv2d(x, w_h, b_h, kernel=1, stride=1, padding=0, dilation=1,
                  out_dtype=jnp.float32)
    vae_bnd = b_h.shape[0] // 2
    mu = head[..., :vae_bnd]
    logvar = head[..., vae_bnd:]
    return _nhwc_to_nchw(mu), _nhwc_to_nchw(logvar)


# -----------------------------------------------------------------------------
if __name__ == "__main__":
    B, T, H, W = 2, 4, 16, 16
    bnd, vae_bnd = 32, 128

    key = jax.random.PRNGKey(0)
    k_params, k_vid, k_frame = jax.random.split(key, 3)

    params = init_params(k_params, bnd=bnd, vae_bnd=vae_bnd, t_frames=T)
    x_video = jax.random.normal(k_vid, (B, 3, T, H, W), jnp.float32)
    iframe = jax.random.normal(k_frame, (B, 3, H, W), jnp.float32)

    mu, logvar = video_vae_encoder_forward(params, x_video, iframe)
    jax.block_until_ready((mu, logvar))

    assert mu.shape == (B, vae_bnd, H // 16, W // 16), mu.shape
    assert logvar.shape == (B, vae_bnd, H // 16, W // 16), logvar.shape
    assert mu.dtype == jnp.float32 and logvar.dtype == jnp.float32
    print("KERNEL_OK")
</pallas_src>

<mosaic_0001>
module attributes {stable_mosaic.version = 11 : i64} {
  func.func @_gemm_bias_kernel(%arg0: i32, %arg1: i32, %arg2: i32, %arg3: i32, %arg4: memref<1x128x128xbf16, #tpu.memory_space<vmem>>, %arg5: memref<1x128x128xbf16, #tpu.memory_space<vmem>>, %arg6: memref<1x1x128xf32, #tpu.memory_space<vmem>>, %arg7: memref<1x128x128xbf16, #tpu.memory_space<vmem>>, %arg8: memref<128x128xf32, #tpu.memory_space<vmem>>) attributes {dimension_semantics = [#tpu.dimension_semantics<parallel>, #tpu.dimension_semantics<parallel>, #tpu.dimension_semantics<parallel>, #tpu.dimension_semantics<arbitrary>], iteration_bounds = array<i64: 1, 1, 1, 1>, scalar_prefetch = 0 : i64, scratch_operands = 1 : i64, tpu.core_type = #tpu.core_type<tc>, window_params = [{transform_indices = @transform_0, window_bounds = array<i64: 1, 128, 128>}, {transform_indices = @transform_1, window_bounds = array<i64: 1, 128, 128>}, {transform_indices = @transform_2, window_bounds = array<i64: 1, 1, 128>}, {transform_indices = @transform_3, window_bounds = array<i64: 1, 128, 128>}]} {
    %c0_i32 = arith.constant 0 : i32
    %0 = arith.cmpi eq, %arg3, %c0_i32 : i32
    %1 = arith.extui %0 : i1 to i32
    %c0_i32_0 = arith.constant 0 : i32
    %2 = arith.cmpi ne, %1, %c0_i32_0 : i32
    scf.if %2 {
      %cst_12 = arith.constant 0.000000e+00 : f32
      %14 = vector.broadcast %cst_12 : f32 to vector<128x128xf32>
      %c0_13 = arith.constant 0 : index
      %c0_14 = arith.constant 0 : index
      %15 = vector.load %arg8[%c0_13, %c0_14] : memref<128x128xf32, #tpu.memory_space<vmem>>, vector<128x128xf32>
      tpu.vector_store %arg8[%c0_13, %c0_14], %14 {strides = array<i32>} : memref<128x128xf32, #tpu.memory_space<vmem>>, vector<128x128xf32>,
    } else {
    }
    %c0 = arith.constant 0 : index
    %c0_1 = arith.constant 0 : index
    %3 = vector.load %arg8[%c0, %c0_1] : memref<128x128xf32, #tpu.memory_space<vmem>>, vector<128x128xf32>
    %c0_2 = arith.constant 0 : index
    %c0_3 = arith.constant 0 : index
    %c0_4 = arith.constant 0 : index
    %4 = vector.load %arg4[%c0_2, %c0_3, %c0_4] : memref<1x128x128xbf16, #tpu.memory_space<vmem>>, vector<1x128x128xbf16>
    %5 = vector.shape_cast %4 : vector<1x128x128xbf16> to vector<128x128xbf16>
    %c0_5 = arith.constant 0 : index
    %c0_6 = arith.constant 0 : index
    %c0_7 = arith.constant 0 : index
    %6 = vector.load %arg5[%c0_5, %c0_6, %c0_7] : memref<1x128x128xbf16, #tpu.memory_space<vmem>>, vector<1x128x128xbf16>
    %7 = vector.shape_cast %6 : vector<1x128x128xbf16> to vector<128x128xbf16>
    %cst = arith.constant dense<0.000000e+00> : vector<128x128xf32>
    %8 = tpu.matmul %5, %7, %cst {dimension_numbers = #tpu.dot_dimension_numbers<[1], [0], [0], [1], [0, 0, 1, 1], [], []>} : vector<128x128xbf16>, vector<128x128xbf16>, vector<128x128xf32> -> vector<128x128xf32>
    %9 = arith.addf %3, %8 : vector<128x128xf32>
    %c0_8 = arith.constant 0 : index
    %c0_9 = arith.constant 0 : index
    %10 = vector.load %arg8[%c0_8, %c0_9] : memref<128x128xf32, #tpu.memory_space<vmem>>, vector<128x128xf32>
    tpu.vector_store %arg8[%c0_8, %c0_9], %9 {strides = array<i32>} : memref<128x128xf32, #tpu.memory_space<vmem>>, vector<128x128xf32>,
    %c0_i32_10 = arith.constant 0 : i32
    %11 = arith.cmpi eq, %arg3, %c0_i32_10 : i32
    %12 = arith.extui %11 : i1 to i32
    %c0_i32_11 = arith.constant 0 : i32
    %13 = arith.cmpi ne, %12, %c0_i32_11 : i32
    scf.if %13 {
      %c0_12 = arith.constant 0 : index
      %c0_13 = arith.constant 0 : index
      %14 = vector.load %arg8[%c0_12, %c0_13] : memref<128x128xf32, #tpu.memory_space<vmem>>, vector<128x128xf32>
      %c0_14 = arith.constant 0 : index
      %c0_15 = arith.constant 0 : index
      %c0_16 = arith.constant 0 : index
      %15 = vector.load %arg6[%c0_14, %c0_15, %c0_16] : memref<1x1x128xf32, #tpu.memory_space<vmem>>, vector<1x1x128xf32>
      %16 = vector.shape_cast %15 : vector<1x1x128xf32> to vector<1x128xf32>
      %17 = vector.broadcast %16 : vector<1x128xf32> to vector<128x128xf32>
      %18 = arith.addf %14, %17 : vector<128x128xf32>
      %19 = arith.truncf %18 : vector<128x128xf32> to vector<128x128xbf16>
      %c0_17 = arith.constant 0 : index
      %c0_18 = arith.constant 0 : index
      %c0_19 = arith.constant 0 : index
      %20 = vector.load %arg7[%c0_17, %c0_18, %c0_19] : memref<1x128x128xbf16, #tpu.memory_space<vmem>>, vector<1x128x128xbf16>
      %21 = vector.shape_cast %20 : vector<1x128x128xbf16> to vector<128x128xbf16>
      %22 = vector.shape_cast %19 : vector<128x128xbf16> to vector<1x128x128xbf16>
      tpu.vector_store %arg7[%c0_17, %c0_18, %c0_19], %22 {strides = array<i32>} : memref<1x128x128xbf16, #tpu.memory_space<vmem>>, vector<1x128x128xbf16>,
    } else {
    }
    return
  }
  func.func @transform_0(%arg0: i32, %arg1: i32, %arg2: i32, %arg3: i32) -> (i32, i32, i32) {
    %c0_i32 = arith.constant 0 : i32
    return %arg0, %arg1, %arg3 : i32, i32, i32
  }
  func.func @transform_1(%arg0: i32, %arg1: i32, %arg2: i32, %arg3: i32) -> (i32, i32, i32) {
    %c0_i32 = arith.constant 0 : i32
    return %arg0, %arg3, %arg2 : i32, i32, i32
  }
  func.func @transform_2(%arg0: i32, %arg1: i32, %arg2: i32, %arg3: i32) -> (i32, i32, i32) {
    %c0_i32 = arith.constant 0 : i32
    %c0_i32_0 = arith.constant 0 : i32
    return %arg0, %c0_i32, %arg2 : i32, i32, i32
  }
  func.func @transform_3(%arg0: i32, %arg1: i32, %arg2: i32, %arg3: i32) -> (i32, i32, i32) {
    %c0_i32 = arith.constant 0 : i32
    return %arg0, %arg1, %arg2 : i32, i32, i32
  }
}

module attributes {stable_mosaic.version = 11 : i64} {
  func.func @_gemm_bias_kernel(%arg0: i32, %arg1: i32, %arg2: i32, %arg3: i32, %arg4: memref<1x32x128xbf16, #tpu.memory_space<vmem>>, %arg5: memref<1x128x256xbf16, #tpu.memory_space<vmem>>, %arg6: memref<1x1x256xf32, #tpu.memory_space<vmem>>, %arg7: memref<1x32x256xbf16, #tpu.memory_space<vmem>>, %arg8: memref<32x256xf32, #tpu.memory_space<vmem>>) attributes {dimension_semantics = [#tpu.dimension_semantics<parallel>, #tpu.dimension_semantics<parallel>, #tpu.dimension_semantics<parallel>, #tpu.dimension_semantics<arbitrary>], iteration_bounds = array<i64: 1, 1, 1, 3>, scalar_prefetch = 0 : i64, scratch_operands = 1 : i64, tpu.core_type = #tpu.core_type<tc>, window_params = [{transform_indices = @transform_0, window_bounds = array<i64: 1, 32, 128>}, {transform_indices = @transform_1, window_bounds = array<i64: 1, 128, 256>}, {transform_indices = @transform_2, window_bounds = array<i64: 1, 1, 256>}, {transform_indices = @transform_3, window_bounds = array<i64: 1, 32, 256>}]} {
    %c0_i32 = arith.constant 0 : i32
    %0 = arith.cmpi eq, %arg3, %c0_i32 : i32
    %1 = arith.extui %0 : i1 to i32
    %c0_i32_0 = arith.constant 0 : i32
    %2 = arith.cmpi ne, %1, %c0_i32_0 : i32
    scf.if %2 {
      %cst_11 = arith.constant 0.000000e+00 : f32
      %14 = vector.broadcast %cst_11 : f32 to vector<32x256xf32>
      %c0_12 = arith.constant 0 : index
      %c0_13 = arith.constant 0 : index
      %15 = vector.load %arg8[%c0_12, %c0_13] : memref<32x256xf32, #tpu.memory_space<vmem>>, vector<32x256xf32>
      tpu.vector_store %arg8[%c0_12, %c0_13], %14 {strides = array<i32>} : memref<32x256xf32, #tpu.memory_space<vmem>>, vector<32x256xf32>,
    } else {
    }
    %c0 = arith.constant 0 : index
    %c0_1 = arith.constant 0 : index
    %3 = vector.load %arg8[%c0, %c0_1] : memref<32x256xf32, #tpu.memory_space<vmem>>, vector<32x256xf32>
    %c0_2 = arith.constant 0 : index
    %c0_3 = arith.constant 0 : index
    %c0_4 = arith.constant 0 : index
    %4 = vector.load %arg4[%c0_2, %c0_3, %c0_4] : memref<1x32x128xbf16, #tpu.memory_space<vmem>>, vector<1x32x128xbf16>
    %5 = vector.shape_cast %4 : vector<1x32x128xbf16> to vector<32x128xbf16>
    %c0_5 = arith.constant 0 : index
    %c0_6 = arith.constant 0 : index
    %c0_7 = arith.constant 0 : index
    %6 = vector.load %arg5[%c0_5, %c0_6, %c0_7] : memref<1x128x256xbf16, #tpu.memory_space<vmem>>, vector<1x128x256xbf16>
    %7 = vector.shape_cast %6 : vector<1x128x256xbf16> to vector<128x256xbf16>
    %cst = arith.constant dense<0.000000e+00> : vector<32x256xf32>
    %8 = tpu.matmul %5, %7, %cst {dimension_numbers = #tpu.dot_dimension_numbers<[1], [0], [0], [1], [0, 0, 1, 1], [], []>} : vector<32x128xbf16>, vector<128x256xbf16>, vector<32x256xf32> -> vector<32x256xf32>
    %9 = arith.addf %3, %8 : vector<32x256xf32>
    %c0_8 = arith.constant 0 : index
    %c0_9 = arith.constant 0 : index
    %10 = vector.load %arg8[%c0_8, %c0_9] : memref<32x256xf32, #tpu.memory_space<vmem>>, vector<32x256xf32>
    tpu.vector_store %arg8[%c0_8, %c0_9], %9 {strides = array<i32>} : memref<32x256xf32, #tpu.memory_space<vmem>>, vector<32x256xf32>,
    %c2_i32 = arith.constant 2 : i32
    %11 = arith.cmpi eq, %arg3, %c2_i32 : i32
    %12 = arith.extui %11 : i1 to i32
    %c0_i32_10 = arith.constant 0 : i32
    %13 = arith.cmpi ne, %12, %c0_i32_10 : i32
    scf.if %13 {
      %c0_11 = arith.constant 0 : index
      %c0_12 = arith.constant 0 : index
      %14 = vector.load %arg8[%c0_11, %c0_12] : memref<32x256xf32, #tpu.memory_space<vmem>>, vector<32x256xf32>
      %c0_13 = arith.constant 0 : index
      %c0_14 = arith.constant 0 : index
      %c0_15 = arith.constant 0 : index
      %15 = vector.load %arg6[%c0_13, %c0_14, %c0_15] : memref<1x1x256xf32, #tpu.memory_space<vmem>>, vector<1x1x256xf32>
      %16 = vector.shape_cast %15 : vector<1x1x256xf32> to vector<1x256xf32>
      %17 = vector.broadcast %16 : vector<1x256xf32> to vector<32x256xf32>
      %18 = arith.addf %14, %17 : vector<32x256xf32>
      %19 = arith.truncf %18 : vector<32x256xf32> to vector<32x256xbf16>
      %c0_16 = arith.constant 0 : index
      %c0_17 = arith.constant 0 : index
      %c0_18 = arith.constant 0 : index
      %20 = vector.load %arg7[%c0_16, %c0_17, %c0_18] : memref<1x32x256xbf16, #tpu.memory_space<vmem>>, vector<1x32x256xbf16>
      %21 = vector.shape_cast %20 : vector<1x32x256xbf16> to vector<32x256xbf16>
      %22 = vector.shape_cast %19 : vector<32x256xbf16> to vector<1x32x256xbf16>
      tpu.vector_store %arg7[%c0_16, %c0_17, %c0_18], %22 {strides = array<i32>} : memref<1x32x256xbf16, #tpu.memory_space<vmem>>, vector<1x32x256xbf16>,
    } else {
    }
    return
  }
  func.func @transform_0(%arg0: i32, %arg1: i32, %arg2: i32, %arg3: i32) -> (i32, i32, i32) {
    %c0_i32 = arith.constant 0 : i32
    return %arg0, %arg1, %arg3 : i32, i32, i32
  }
  func.func @transform_1(%arg0: i32, %arg1: i32, %arg2: i32, %arg3: i32) -> (i32, i32, i32) {
    %c0_i32 = arith.constant 0 : i32
    return %arg0, %arg3, %arg2 : i32, i32, i32
  }
  func.func @transform_2(%arg0: i32, %arg1: i32, %arg2: i32, %arg3: i32) -> (i32, i32, i32) {
    %c0_i32 = arith.constant 0 : i32
    %c0_i32_0 = arith.constant 0 : i32
    return %arg0, %c0_i32, %arg2 : i32, i32, i32
  }
  func.func @transform_3(%arg0: i32, %arg1: i32, %arg2: i32, %arg3: i32) -> (i32, i32, i32) {
    %c0_i32 = arith.constant 0 : i32
    return %arg0, %arg1, %arg2 : i32, i32, i32
  }
}

module attributes {stable_mosaic.version = 11 : i64} {
  func.func @_gemm_bias_kernel(%arg0: i32, %arg1: i32, %arg2: i32, %arg3: i32, %arg4: memref<1x128x128xbf16, #tpu.memory_space<vmem>>, %arg5: memref<1x128x128xbf16, #tpu.memory_space<vmem>>, %arg6: memref<1x1x128xf32, #tpu.memory_space<vmem>>, %arg7: memref<1x128x128xbf16, #tpu.memory_space<vmem>>, %arg8: memref<128x128xf32, #tpu.memory_space<vmem>>) attributes {dimension_semantics = [#tpu.dimension_semantics<parallel>, #tpu.dimension_semantics<parallel>, #tpu.dimension_semantics<parallel>, #tpu.dimension_semantics<arbitrary>], iteration_bounds = array<i64: 4, 1, 1, 1>, scalar_prefetch = 0 : i64, scratch_operands = 1 : i64, tpu.core_type = #tpu.core_type<tc>, window_params = [{transform_indices = @transform_0, window_bounds = array<i64: 1, 128, 128>}, {transform_indices = @transform_1, window_bounds = array<i64: 1, 128, 128>}, {transform_indices = @transform_2, window_bounds = array<i64: 1, 1, 128>}, {transform_indices = @transform_3, window_bounds = array<i64: 1, 128, 128>}]} {
    %c0_i32 = arith.constant 0 : i32
    %0 = arith.cmpi eq, %arg3, %c0_i32 : i32
    %1 = arith.extui %0 : i1 to i32
    %c0_i32_0 = arith.constant 0 : i32
    %2 = arith.cmpi ne, %1, %c0_i32_0 : i32
    scf.if %2 {
      %cst_12 = arith.constant 0.000000e+00 : f32
      %14 = vector.broadcast %cst_12 : f32 to vector<128x128xf32>
      %c0_13 = arith.constant 0 : index
      %c0_14 = arith.constant 0 : index
      %15 = vector.load %arg8[%c0_13, %c0_14] : memref<128x128xf32, #tpu.memory_space<vmem>>, vector<128x128xf32>
      tpu.vector_store %arg8[%c0_13, %c0_14], %14 {strides = array<i32>} : memref<128x128xf32, #tpu.memory_space<vmem>>, vector<128x128xf32>,
    } else {
    }
    %c0 = arith.constant 0 : index
    %c0_1 = arith.constant 0 : index
    %3 = vector.load %arg8[%c0, %c0_1] : memref<128x128xf32, #tpu.memory_space<vmem>>, vector<128x128xf32>
    %c0_2 = arith.constant 0 : index
    %c0_3 = arith.constant 0 : index
    %c0_4 = arith.constant 0 : index
    %4 = vector.load %arg4[%c0_2, %c0_3, %c0_4] : memref<1x128x128xbf16, #tpu.memory_space<vmem>>, vector<1x128x128xbf16>
    %5 = vector.shape_cast %4 : vector<1x128x128xbf16> to vector<128x128xbf16>
    %c0_5 = arith.constant 0 : index
    %c0_6 = arith.constant 0 : index
    %c0_7 = arith.constant 0 : index
    %6 = vector.load %arg5[%c0_5, %c0_6, %c0_7] : memref<1x128x128xbf16, #tpu.memory_space<vmem>>, vector<1x128x128xbf16>
    %7 = vector.shape_cast %6 : vector<1x128x128xbf16> to vector<128x128xbf16>
    %cst = arith.constant dense<0.000000e+00> : vector<128x128xf32>
    %8 = tpu.matmul %5, %7, %cst {dimension_numbers = #tpu.dot_dimension_numbers<[1], [0], [0], [1], [0, 0, 1, 1], [], []>} : vector<128x128xbf16>, vector<128x128xbf16>, vector<128x128xf32> -> vector<128x128xf32>
    %9 = arith.addf %3, %8 : vector<128x128xf32>
    %c0_8 = arith.constant 0 : index
    %c0_9 = arith.constant 0 : index
    %10 = vector.load %arg8[%c0_8, %c0_9] : memref<128x128xf32, #tpu.memory_space<vmem>>, vector<128x128xf32>
    tpu.vector_store %arg8[%c0_8, %c0_9], %9 {strides = array<i32>} : memref<128x128xf32, #tpu.memory_space<vmem>>, vector<128x128xf32>,
    %c0_i32_10 = arith.constant 0 : i32
    %11 = arith.cmpi eq, %arg3, %c0_i32_10 : i32
    %12 = arith.extui %11 : i1 to i32
    %c0_i32_11 = arith.constant 0 : i32
    %13 = arith.cmpi ne, %12, %c0_i32_11 : i32
    scf.if %13 {
      %c0_12 = arith.constant 0 : index
      %c0_13 = arith.constant 0 : index
      %14 = vector.load %arg8[%c0_12, %c0_13] : memref<128x128xf32, #tpu.memory_space<vmem>>, vector<128x128xf32>
      %c0_14 = arith.constant 0 : index
      %c0_15 = arith.constant 0 : index
      %c0_16 = arith.constant 0 : index
      %15 = vector.load %arg6[%c0_14, %c0_15, %c0_16] : memref<1x1x128xf32, #tpu.memory_space<vmem>>, vector<1x1x128xf32>
      %16 = vector.shape_cast %15 : vector<1x1x128xf32> to vector<1x128xf32>
      %17 = vector.broadcast %16 : vector<1x128xf32> to vector<128x128xf32>
      %18 = arith.addf %14, %17 : vector<128x128xf32>
      %19 = arith.truncf %18 : vector<128x128xf32> to vector<128x128xbf16>
      %c0_17 = arith.constant 0 : index
      %c0_18 = arith.constant 0 : index
      %c0_19 = arith.constant 0 : index
      %20 = vector.load %arg7[%c0_17, %c0_18, %c0_19] : memref<1x128x128xbf16, #tpu.memory_space<vmem>>, vector<1x128x128xbf16>
      %21 = vector.shape_cast %20 : vector<1x128x128xbf16> to vector<128x128xbf16>
      %22 = vector.shape_cast %19 : vector<128x128xbf16> to vector<1x128x128xbf16>
      tpu.vector_store %arg7[%c0_17, %c0_18, %c0_19], %22 {strides = array<i32>} : memref<1x128x128xbf16, #tpu.memory_space<vmem>>, vector<1x128x128xbf16>,
    } else {
    }
    return
  }
  func.func @transform_0(%arg0: i32, %arg1: i32, %arg2: i32, %arg3: i32) -> (i32, i32, i32) {
    %c0_i32 = arith.constant 0 : i32
    return %arg0, %arg1, %arg3 : i32, i32, i32
  }
  func.func @transform_1(%arg0: i32, %arg1: i32, %arg2: i32, %arg3: i32) -> (i32, i32, i32) {
    %c0_i32 = arith.constant 0 : i32
    return %arg0, %arg3, %arg2 : i32, i32, i32
  }
  func.func @transform_2(%arg0: i32, %arg1: i32, %arg2: i32, %arg3: i32) -> (i32, i32, i32) {
    %c0_i32 = arith.constant 0 : i32
    %c0_i32_0 = arith.constant 0 : i32
    return %arg0, %c0_i32, %arg2 : i32, i32, i32
  }
  func.func @transform_3(%arg0: i32, %arg1: i32, %arg2: i32, %arg3: i32) -> (i32, i32, i32) {
    %c0_i32 = arith.constant 0 : i32
    return %arg0, %arg1, %arg2 : i32, i32, i32
  }
}

module attributes {stable_mosaic.version = 11 : i64} {
  func.func @_gemm_bias_kernel(%arg0: i32, %arg1: i32, %arg2: i32, %arg3: i32, %arg4: memref<1x128x128xbf16, #tpu.memory_space<vmem>>, %arg5: memref<1x128x128xbf16, #tpu.memory_space<vmem>>, %arg6: memref<1x1x128xf32, #tpu.memory_space<vmem>>, %arg7: memref<1x128x128xbf16, #tpu.memory_space<vmem>>, %arg8: memref<128x128xf32, #tpu.memory_space<vmem>>) attributes {dimension_semantics = [#tpu.dimension_semantics<parallel>, #tpu.dimension_semantics<parallel>, #tpu.dimension_semantics<parallel>, #tpu.dimension_semantics<arbitrary>], iteration_bounds = array<i64: 1, 1, 1, 3>, scalar_prefetch = 0 : i64, scratch_operands = 1 : i64, tpu.core_type = #tpu.core_type<tc>, window_params = [{transform_indices = @transform_0, window_bounds = array<i64: 1, 128, 128>}, {transform_indices = @transform_1, window_bounds = array<i64: 1, 128, 128>}, {transform_indices = @transform_2, window_bounds = array<i64: 1, 1, 128>}, {transform_indices = @transform_3, window_bounds = array<i64: 1, 128, 128>}]} {
    %c0_i32 = arith.constant 0 : i32
    %0 = arith.cmpi eq, %arg3, %c0_i32 : i32
    %1 = arith.extui %0 : i1 to i32
    %c0_i32_0 = arith.constant 0 : i32
    %2 = arith.cmpi ne, %1, %c0_i32_0 : i32
    scf.if %2 {
      %cst_11 = arith.constant 0.000000e+00 : f32
      %14 = vector.broadcast %cst_11 : f32 to vector<128x128xf32>
      %c0_12 = arith.constant 0 : index
      %c0_13 = arith.constant 0 : index
      %15 = vector.load %arg8[%c0_12, %c0_13] : memref<128x128xf32, #tpu.memory_space<vmem>>, vector<128x128xf32>
      tpu.vector_store %arg8[%c0_12, %c0_13], %14 {strides = array<i32>} : memref<128x128xf32, #tpu.memory_space<vmem>>, vector<128x128xf32>,
    } else {
    }
    %c0 = arith.constant 0 : index
    %c0_1 = arith.constant 0 : index
    %3 = vector.load %arg8[%c0, %c0_1] : memref<128x128xf32, #tpu.memory_space<vmem>>, vector<128x128xf32>
    %c0_2 = arith.constant 0 : index
    %c0_3 = arith.constant 0 : index
    %c0_4 = arith.constant 0 : index
    %4 = vector.load %arg4[%c0_2, %c0_3, %c0_4] : memref<1x128x128xbf16, #tpu.memory_space<vmem>>, vector<1x128x128xbf16>
    %5 = vector.shape_cast %4 : vector<1x128x128xbf16> to vector<128x128xbf16>
    %c0_5 = arith.constant 0 : index
    %c0_6 = arith.constant 0 : index
    %c0_7 = arith.constant 0 : index
    %6 = vector.load %arg5[%c0_5, %c0_6, %c0_7] : memref<1x128x128xbf16, #tpu.memory_space<vmem>>, vector<1x128x128xbf16>
    %7 = vector.shape_cast %6 : vector<1x128x128xbf16> to vector<128x128xbf16>
    %cst = arith.constant dense<0.000000e+00> : vector<128x128xf32>
    %8 = tpu.matmul %5, %7, %cst {dimension_numbers = #tpu.dot_dimension_numbers<[1], [0], [0], [1], [0, 0, 1, 1], [], []>} : vector<128x128xbf16>, vector<128x128xbf16>, vector<128x128xf32> -> vector<128x128xf32>
    %9 = arith.addf %3, %8 : vector<128x128xf32>
    %c0_8 = arith.constant 0 : index
    %c0_9 = arith.constant 0 : index
    %10 = vector.load %arg8[%c0_8, %c0_9] : memref<128x128xf32, #tpu.memory_space<vmem>>, vector<128x128xf32>
    tpu.vector_store %arg8[%c0_8, %c0_9], %9 {strides = array<i32>} : memref<128x128xf32, #tpu.memory_space<vmem>>, vector<128x128xf32>,
    %c2_i32 = arith.constant 2 : i32
    %11 = arith.cmpi eq, %arg3, %c2_i32 : i32
    %12 = arith.extui %11 : i1 to i32
    %c0_i32_10 = arith.constant 0 : i32
    %13 = arith.cmpi ne, %12, %c0_i32_10 : i32
    scf.if %13 {
      %c0_11 = arith.constant 0 : index
      %c0_12 = arith.constant 0 : index
      %14 = vector.load %arg8[%c0_11, %c0_12] : memref<128x128xf32, #tpu.memory_space<vmem>>, vector<128x128xf32>
      %c0_13 = arith.constant 0 : index
      %c0_14 = arith.constant 0 : index
      %c0_15 = arith.constant 0 : index
      %15 = vector.load %arg6[%c0_13, %c0_14, %c0_15] : memref<1x1x128xf32, #tpu.memory_space<vmem>>, vector<1x1x128xf32>
      %16 = vector.shape_cast %15 : vector<1x1x128xf32> to vector<1x128xf32>
      %17 = vector.broadcast %16 : vector<1x128xf32> to vector<128x128xf32>
      %18 = arith.addf %14, %17 : vector<128x128xf32>
      %19 = arith.truncf %18 : vector<128x128xf32> to vector<128x128xbf16>
      %c0_16 = arith.constant 0 : index
      %c0_17 = arith.constant 0 : index
      %c0_18 = arith.constant 0 : index
      %20 = vector.load %arg7[%c0_16, %c0_17, %c0_18] : memref<1x128x128xbf16, #tpu.memory_space<vmem>>, vector<1x128x128xbf16>
      %21 = vector.shape_cast %20 : vector<1x128x128xbf16> to vector<128x128xbf16>
      %22 = vector.shape_cast %19 : vector<128x128xbf16> to vector<1x128x128xbf16>
      tpu.vector_store %arg7[%c0_16, %c0_17, %c0_18], %22 {strides = array<i32>} : memref<1x128x128xbf16, #tpu.memory_space<vmem>>, vector<1x128x128xbf16>,
    } else {
    }
    return
  }
  func.func @transform_0(%arg0: i32, %arg1: i32, %arg2: i32, %arg3: i32) -> (i32, i32, i32) {
    %c0_i32 = arith.constant 0 : i32
    return %arg0, %arg1, %arg3 : i32, i32, i32
  }
  func.func @transform_1(%arg0: i32, %arg1: i32, %arg2: i32, %arg3: i32) -> (i32, i32, i32) {
    %c0_i32 = arith.constant 0 : i32
    return %arg0, %arg3, %arg2 : i32, i32, i32
  }
  func.func @transform_2(%arg0: i32, %arg1: i32, %arg2: i32, %arg3: i32) -> (i32, i32, i32) {
    %c0_i32 = arith.constant 0 : i32
    %c0_i32_0 = arith.constant 0 : i32
    return %arg0, %c0_i32, %arg2 : i32, i32, i32
  }
  func.func @transform_3(%arg0: i32, %arg1: i32, %arg2: i32, %arg3: i32) -> (i32, i32, i32) {
    %c0_i32 = arith.constant 0 : i32
    return %arg0, %arg1, %arg2 : i32, i32, i32
  }
}

module attributes {stable_mosaic.version = 11 : i64} {
  func.func @_gemm_bias_kernel(%arg0: i32, %arg1: i32, %arg2: i32, %arg3: i32, %arg4: memref<1x32x128xbf16, #tpu.memory_space<vmem>>, %arg5: memref<1x128x128xbf16, #tpu.memory_space<vmem>>, %arg6: memref<1x1x128xf32, #tpu.memory_space<vmem>>, %arg7: memref<1x32x128xbf16, #tpu.memory_space<vmem>>, %arg8: memref<32x128xf32, #tpu.memory_space<vmem>>) attributes {dimension_semantics = [#tpu.dimension_semantics<parallel>, #tpu.dimension_semantics<parallel>, #tpu.dimension_semantics<parallel>, #tpu.dimension_semantics<arbitrary>], iteration_bounds = array<i64: 4, 1, 1, 9>, scalar_prefetch = 0 : i64, scratch_operands = 1 : i64, tpu.core_type = #tpu.core_type<tc>, window_params = [{transform_indices = @transform_0, window_bounds = array<i64: 1, 32, 128>}, {transform_indices = @transform_1, window_bounds = array<i64: 1, 128, 128>}, {transform_indices = @transform_2, window_bounds = array<i64: 1, 1, 128>}, {transform_indices = @transform_3, window_bounds = array<i64: 1, 32, 128>}]} {
    %c0_i32 = arith.constant 0 : i32
    %0 = arith.cmpi eq, %arg3, %c0_i32 : i32
    %1 = arith.extui %0 : i1 to i32
    %c0_i32_0 = arith.constant 0 : i32
    %2 = arith.cmpi ne, %1, %c0_i32_0 : i32
    scf.if %2 {
      %cst_11 = arith.constant 0.000000e+00 : f32
      %14 = vector.broadcast %cst_11 : f32 to vector<32x128xf32>
      %c0_12 = arith.constant 0 : index
      %c0_13 = arith.constant 0 : index
      %15 = vector.load %arg8[%c0_12, %c0_13] : memref<32x128xf32, #tpu.memory_space<vmem>>, vector<32x128xf32>
      tpu.vector_store %arg8[%c0_12, %c0_13], %14 {strides = array<i32>} : memref<32x128xf32, #tpu.memory_space<vmem>>, vector<32x128xf32>,
    } else {
    }
    %c0 = arith.constant 0 : index
    %c0_1 = arith.constant 0 : index
    %3 = vector.load %arg8[%c0, %c0_1] : memref<32x128xf32, #tpu.memory_space<vmem>>, vector<32x128xf32>
    %c0_2 = arith.constant 0 : index
    %c0_3 = arith.constant 0 : index
    %c0_4 = arith.constant 0 : index
    %4 = vector.load %arg4[%c0_2, %c0_3, %c0_4] : memref<1x32x128xbf16, #tpu.memory_space<vmem>>, vector<1x32x128xbf16>
    %5 = vector.shape_cast %4 : vector<1x32x128xbf16> to vector<32x128xbf16>
    %c0_5 = arith.constant 0 : index
    %c0_6 = arith.constant 0 : index
    %c0_7 = arith.constant 0 : index
    %6 = vector.load %arg5[%c0_5, %c0_6, %c0_7] : memref<1x128x128xbf16, #tpu.memory_space<vmem>>, vector<1x128x128xbf16>
    %7 = vector.shape_cast %6 : vector<1x128x128xbf16> to vector<128x128xbf16>
    %cst = arith.constant dense<0.000000e+00> : vector<32x128xf32>
    %8 = tpu.matmul %5, %7, %cst {dimension_numbers = #tpu.dot_dimension_numbers<[1], [0], [0], [1], [0, 0, 1, 1], [], []>} : vector<32x128xbf16>, vector<128x128xbf16>, vector<32x128xf32> -> vector<32x128xf32>
    %9 = arith.addf %3, %8 : vector<32x128xf32>
    %c0_8 = arith.constant 0 : index
    %c0_9 = arith.constant 0 : index
    %10 = vector.load %arg8[%c0_8, %c0_9] : memref<32x128xf32, #tpu.memory_space<vmem>>, vector<32x128xf32>
    tpu.vector_store %arg8[%c0_8, %c0_9], %9 {strides = array<i32>} : memref<32x128xf32, #tpu.memory_space<vmem>>, vector<32x128xf32>,
    %c8_i32 = arith.constant 8 : i32
    %11 = arith.cmpi eq, %arg3, %c8_i32 : i32
    %12 = arith.extui %11 : i1 to i32
    %c0_i32_10 = arith.constant 0 : i32
    %13 = arith.cmpi ne, %12, %c0_i32_10 : i32
    scf.if %13 {
      %c0_11 = arith.constant 0 : index
      %c0_12 = arith.constant 0 : index
      %14 = vector.load %arg8[%c0_11, %c0_12] : memref<32x128xf32, #tpu.memory_space<vmem>>, vector<32x128xf32>
      %c0_13 = arith.constant 0 : index
      %c0_14 = arith.constant 0 : index
      %c0_15 = arith.constant 0 : index
      %15 = vector.load %arg6[%c0_13, %c0_14, %c0_15] : memref<1x1x128xf32, #tpu.memory_space<vmem>>, vector<1x1x128xf32>
      %16 = vector.shape_cast %15 : vector<1x1x128xf32> to vector<1x128xf32>
      %17 = vector.broadcast %16 : vector<1x128xf32> to vector<32x128xf32>
      %18 = arith.addf %14, %17 : vector<32x128xf32>
      %19 = arith.truncf %18 : vector<32x128xf32> to vector<32x128xbf16>
      %c0_16 = arith.constant 0 : index
      %c0_17 = arith.constant 0 : index
      %c0_18 = arith.constant 0 : index
      %20 = vector.load %arg7[%c0_16, %c0_17, %c0_18] : memref<1x32x128xbf16, #tpu.memory_space<vmem>>, vector<1x32x128xbf16>
      %21 = vector.shape_cast %20 : vector<1x32x128xbf16> to vector<32x128xbf16>
      %22 = vector.shape_cast %19 : vector<32x128xbf16> to vector<1x32x128xbf16>
      tpu.vector_store %arg7[%c0_16, %c0_17, %c0_18], %22 {strides = array<i32>} : memref<1x32x128xbf16, #tpu.memory_space<vmem>>, vector<1x32x128xbf16>,
    } else {
    }
    return
  }
  func.func @transform_0(%arg0: i32, %arg1: i32, %arg2: i32, %arg3: i32) -> (i32, i32, i32) {
    %c0_i32 = arith.constant 0 : i32
    return %arg0, %arg1, %arg3 : i32, i32, i32
  }
  func.func @transform_1(%arg0: i32, %arg1: i32, %arg2: i32, %arg3: i32) -> (i32, i32, i32) {
    %c0_i32 = arith.constant 0 : i32
    return %arg0, %arg3, %arg2 : i32, i32, i32
  }
  func.func @transform_2(%arg0: i32, %arg1: i32, %arg2: i32, %arg3: i32) -> (i32, i32, i32) {
    %c0_i32 = arith.constant 0 : i32
    %c0_i32_0 = arith.constant 0 : i32
    return %arg0, %c0_i32, %arg2 : i32, i32, i32
  }
  func.func @transform_3(%arg0: i32, %arg1: i32, %arg2: i32, %arg3: i32) -> (i32, i32, i32) {
    %c0_i32 = arith.constant 0 : i32
    return %arg0, %arg1, %arg2 : i32, i32, i32
  }
}

module attributes {stable_mosaic.version = 11 : i64} {
  func.func @_gemm_bias_kernel(%arg0: i32, %arg1: i32, %arg2: i32, %arg3: i32, %arg4: memref<1x16x256xbf16, #tpu.memory_space<vmem>>, %arg5: memref<1x256x128xbf16, #tpu.memory_space<vmem>>, %arg6: memref<1x1x128xf32, #tpu.memory_space<vmem>>, %arg7: memref<1x16x128xbf16, #tpu.memory_space<vmem>>, %arg8: memref<16x128xf32, #tpu.memory_space<vmem>>) attributes {dimension_semantics = [#tpu.dimension_semantics<parallel>, #tpu.dimension_semantics<parallel>, #tpu.dimension_semantics<parallel>, #tpu.dimension_semantics<arbitrary>], iteration_bounds = array<i64: 4, 1, 1, 18>, scalar_prefetch = 0 : i64, scratch_operands = 1 : i64, tpu.core_type = #tpu.core_type<tc>, window_params = [{transform_indices = @transform_0, window_bounds = array<i64: 1, 16, 256>}, {transform_indices = @transform_1, window_bounds = array<i64: 1, 256, 128>}, {transform_indices = @transform_2, window_bounds = array<i64: 1, 1, 128>}, {transform_indices = @transform_3, window_bounds = array<i64: 1, 16, 128>}]} {
    %c0_i32 = arith.constant 0 : i32
    %0 = arith.cmpi eq, %arg3, %c0_i32 : i32
    %1 = arith.extui %0 : i1 to i32
    %c0_i32_0 = arith.constant 0 : i32
    %2 = arith.cmpi ne, %1, %c0_i32_0 : i32
    scf.if %2 {
      %cst_11 = arith.constant 0.000000e+00 : f32
      %14 = vector.broadcast %cst_11 : f32 to vector<16x128xf32>
      %c0_12 = arith.constant 0 : index
      %c0_13 = arith.constant 0 : index
      %15 = vector.load %arg8[%c0_12, %c0_13] : memref<16x128xf32, #tpu.memory_space<vmem>>, vector<16x128xf32>
      tpu.vector_store %arg8[%c0_12, %c0_13], %14 {strides = array<i32>} : memref<16x128xf32, #tpu.memory_space<vmem>>, vector<16x128xf32>,
    } else {
    }
    %c0 = arith.constant 0 : index
    %c0_1 = arith.constant 0 : index
    %3 = vector.load %arg8[%c0, %c0_1] : memref<16x128xf32, #tpu.memory_space<vmem>>, vector<16x128xf32>
    %c0_2 = arith.constant 0 : index
    %c0_3 = arith.constant 0 : index
    %c0_4 = arith.constant 0 : index
    %4 = vector.load %arg4[%c0_2, %c0_3, %c0_4] : memref<1x16x256xbf16, #tpu.memory_space<vmem>>, vector<1x16x256xbf16>
    %5 = vector.shape_cast %4 : vector<1x16x256xbf16> to vector<16x256xbf16>
    %c0_5 = arith.constant 0 : index
    %c0_6 = arith.constant 0 : index
    %c0_7 = arith.constant 0 : index
    %6 = vector.load %arg5[%c0_5, %c0_6, %c0_7] : memref<1x256x128xbf16, #tpu.memory_space<vmem>>, vector<1x256x128xbf16>
    %7 = vector.shape_cast %6 : vector<1x256x128xbf16> to vector<256x128xbf16>
    %cst = arith.constant dense<0.000000e+00> : vector<16x128xf32>
    %8 = tpu.matmul %5, %7, %cst {dimension_numbers = #tpu.dot_dimension_numbers<[1], [0], [0], [1], [0, 0, 1, 1], [], []>} : vector<16x256xbf16>, vector<256x128xbf16>, vector<16x128xf32> -> vector<16x128xf32>
    %9 = arith.addf %3, %8 : vector<16x128xf32>
    %c0_8 = arith.constant 0 : index
    %c0_9 = arith.constant 0 : index
    %10 = vector.load %arg8[%c0_8, %c0_9] : memref<16x128xf32, #tpu.memory_space<vmem>>, vector<16x128xf32>
    tpu.vector_store %arg8[%c0_8, %c0_9], %9 {strides = array<i32>} : memref<16x128xf32, #tpu.memory_space<vmem>>, vector<16x128xf32>,
    %c17_i32 = arith.constant 17 : i32
    %11 = arith.cmpi eq, %arg3, %c17_i32 : i32
    %12 = arith.extui %11 : i1 to i32
    %c0_i32_10 = arith.constant 0 : i32
    %13 = arith.cmpi ne, %12, %c0_i32_10 : i32
    scf.if %13 {
      %c0_11 = arith.constant 0 : index
      %c0_12 = arith.constant 0 : index
      %14 = vector.load %arg8[%c0_11, %c0_12] : memref<16x128xf32, #tpu.memory_space<vmem>>, vector<16x128xf32>
      %c0_13 = arith.constant 0 : index
      %c0_14 = arith.constant 0 : index
      %c0_15 = arith.constant 0 : index
      %15 = vector.load %arg6[%c0_13, %c0_14, %c0_15] : memref<1x1x128xf32, #tpu.memory_space<vmem>>, vector<1x1x128xf32>
      %16 = vector.shape_cast %15 : vector<1x1x128xf32> to vector<1x128xf32>
      %17 = vector.broadcast %16 : vector<1x128xf32> to vector<16x128xf32>
      %18 = arith.addf %14, %17 : vector<16x128xf32>
      %19 = arith.truncf %18 : vector<16x128xf32> to vector<16x128xbf16>
      %c0_16 = arith.constant 0 : index
      %c0_17 = arith.constant 0 : index
      %c0_18 = arith.constant 0 : index
      %20 = vector.load %arg7[%c0_16, %c0_17, %c0_18] : memref<1x16x128xbf16, #tpu.memory_space<vmem>>, vector<1x16x128xbf16>
      %21 = vector.shape_cast %20 : vector<1x16x128xbf16> to vector<16x128xbf16>
      %22 = vector.shape_cast %19 : vector<16x128xbf16> to vector<1x16x128xbf16>
      tpu.vector_store %arg7[%c0_16, %c0_17, %c0_18], %22 {strides = array<i32>} : memref<1x16x128xbf16, #tpu.memory_space<vmem>>, vector<1x16x128xbf16>,
    } else {
    }
    return
  }
  func.func @transform_0(%arg0: i32, %arg1: i32, %arg2: i32, %arg3: i32) -> (i32, i32, i32) {
    %c0_i32 = arith.constant 0 : i32
    return %arg0, %arg1, %arg3 : i32, i32, i32
  }
  func.func @transform_1(%arg0: i32, %arg1: i32, %arg2: i32, %arg3: i32) -> (i32, i32, i32) {
    %c0_i32 = arith.constant 0 : i32
    return %arg0, %arg3, %arg2 : i32, i32, i32
  }
  func.func @transform_2(%arg0: i32, %arg1: i32, %arg2: i32, %arg3: i32) -> (i32, i32, i32) {
    %c0_i32 = arith.constant 0 : i32
    %c0_i32_0 = arith.constant 0 : i32
    return %arg0, %c0_i32, %arg2 : i32, i32, i32
  }
  func.func @transform_3(%arg0: i32, %arg1: i32, %arg2: i32, %arg3: i32) -> (i32, i32, i32) {
    %c0_i32 = arith.constant 0 : i32
    return %arg0, %arg1, %arg2 : i32, i32, i32
  }
}

module attributes {stable_mosaic.version = 11 : i64} {
  func.func @_gemm_bias_kernel(%arg0: i32, %arg1: i32, %arg2: i32, %arg3: i32, %arg4: memref<1x16x256xbf16, #tpu.memory_space<vmem>>, %arg5: memref<1x256x256xbf16, #tpu.memory_space<vmem>>, %arg6: memref<1x1x256xf32, #tpu.memory_space<vmem>>, %arg7: memref<1x16x256xf32, #tpu.memory_space<vmem>>, %arg8: memref<16x256xf32, #tpu.memory_space<vmem>>) attributes {dimension_semantics = [#tpu.dimension_semantics<parallel>, #tpu.dimension_semantics<parallel>, #tpu.dimension_semantics<parallel>, #tpu.dimension_semantics<arbitrary>], iteration_bounds = array<i64: 1, 1, 1, 2>, scalar_prefetch = 0 : i64, scratch_operands = 1 : i64, tpu.core_type = #tpu.core_type<tc>, window_params = [{transform_indices = @transform_0, window_bounds = array<i64: 1, 16, 256>}, {transform_indices = @transform_1, window_bounds = array<i64: 1, 256, 256>}, {transform_indices = @transform_2, window_bounds = array<i64: 1, 1, 256>}, {transform_indices = @transform_3, window_bounds = array<i64: 1, 16, 256>}]} {
    %c0_i32 = arith.constant 0 : i32
    %0 = arith.cmpi eq, %arg3, %c0_i32 : i32
    %1 = arith.extui %0 : i1 to i32
    %c0_i32_0 = arith.constant 0 : i32
    %2 = arith.cmpi ne, %1, %c0_i32_0 : i32
    scf.if %2 {
      %cst_11 = arith.constant 0.000000e+00 : f32
      %14 = vector.broadcast %cst_11 : f32 to vector<16x256xf32>
      %c0_12 = arith.constant 0 : index
      %c0_13 = arith.constant 0 : index
      %15 = vector.load %arg8[%c0_12, %c0_13] : memref<16x256xf32, #tpu.memory_space<vmem>>, vector<16x256xf32>
      tpu.vector_store %arg8[%c0_12, %c0_13], %14 {strides = array<i32>} : memref<16x256xf32, #tpu.memory_space<vmem>>, vector<16x256xf32>,
    } else {
    }
    %c0 = arith.constant 0 : index
    %c0_1 = arith.constant 0 : index
    %3 = vector.load %arg8[%c0, %c0_1] : memref<16x256xf32, #tpu.memory_space<vmem>>, vector<16x256xf32>
    %c0_2 = arith.constant 0 : index
    %c0_3 = arith.constant 0 : index
    %c0_4 = arith.constant 0 : index
    %4 = vector.load %arg4[%c0_2, %c0_3, %c0_4] : memref<1x16x256xbf16, #tpu.memory_space<vmem>>, vector<1x16x256xbf16>
    %5 = vector.shape_cast %4 : vector<1x16x256xbf16> to vector<16x256xbf16>
    %c0_5 = arith.constant 0 : index
    %c0_6 = arith.constant 0 : index
    %c0_7 = arith.constant 0 : index
    %6 = vector.load %arg5[%c0_5, %c0_6, %c0_7] : memref<1x256x256xbf16, #tpu.memory_space<vmem>>, vector<1x256x256xbf16>
    %7 = vector.shape_cast %6 : vector<1x256x256xbf16> to vector<256x256xbf16>
    %cst = arith.constant dense<0.000000e+00> : vector<16x256xf32>
    %8 = tpu.matmul %5, %7, %cst {dimension_numbers = #tpu.dot_dimension_numbers<[1], [0], [0], [1], [0, 0, 1, 1], [], []>} : vector<16x256xbf16>, vector<256x256xbf16>, vector<16x256xf32> -> vector<16x256xf32>
    %9 = arith.addf %3, %8 : vector<16x256xf32>
    %c0_8 = arith.constant 0 : index
    %c0_9 = arith.constant 0 : index
    %10 = vector.load %arg8[%c0_8, %c0_9] : memref<16x256xf32, #tpu.memory_space<vmem>>, vector<16x256xf32>
    tpu.vector_store %arg8[%c0_8, %c0_9], %9 {strides = array<i32>} : memref<16x256xf32, #tpu.memory_space<vmem>>, vector<16x256xf32>,
    %c1_i32 = arith.constant 1 : i32
    %11 = arith.cmpi eq, %arg3, %c1_i32 : i32
    %12 = arith.extui %11 : i1 to i32
    %c0_i32_10 = arith.constant 0 : i32
    %13 = arith.cmpi ne, %12, %c0_i32_10 : i32
    scf.if %13 {
      %c0_11 = arith.constant 0 : index
      %c0_12 = arith.constant 0 : index
      %14 = vector.load %arg8[%c0_11, %c0_12] : memref<16x256xf32, #tpu.memory_space<vmem>>, vector<16x256xf32>
      %c0_13 = arith.constant 0 : index
      %c0_14 = arith.constant 0 : index
      %c0_15 = arith.constant 0 : index
      %15 = vector.load %arg6[%c0_13, %c0_14, %c0_15] : memref<1x1x256xf32, #tpu.memory_space<vmem>>, vector<1x1x256xf32>
      %16 = vector.shape_cast %15 : vector<1x1x256xf32> to vector<1x256xf32>
      %17 = vector.broadcast %16 : vector<1x256xf32> to vector<16x256xf32>
      %18 = arith.addf %14, %17 : vector<16x256xf32>
      %c0_16 = arith.constant 0 : index
      %c0_17 = arith.constant 0 : index
      %c0_18 = arith.constant 0 : index
      %19 = vector.load %arg7[%c0_16, %c0_17, %c0_18] : memref<1x16x256xf32, #tpu.memory_space<vmem>>, vector<1x16x256xf32>
      %20 = vector.shape_cast %19 : vector<1x16x256xf32> to vector<16x256xf32>
      %21 = vector.shape_cast %18 : vector<16x256xf32> to vector<1x16x256xf32>
      tpu.vector_store %arg7[%c0_16, %c0_17, %c0_18], %21 {strides = array<i32>} : memref<1x16x256xf32, #tpu.memory_space<vmem>>, vector<1x16x256xf32>,
    } else {
    }
    return
  }
  func.func @transform_0(%arg0: i32, %arg1: i32, %arg2: i32, %arg3: i32) -> (i32, i32, i32) {
    %c0_i32 = arith.constant 0 : i32
    return %arg0, %arg1, %arg3 : i32, i32, i32
  }
  func.func @transform_1(%arg0: i32, %arg1: i32, %arg2: i32, %arg3: i32) -> (i32, i32, i32) {
    %c0_i32 = arith.constant 0 : i32
    return %arg0, %arg3, %arg2 : i32, i32, i32
  }
  func.func @transform_2(%arg0: i32, %arg1: i32, %arg2: i32, %arg3: i32) -> (i32, i32, i32) {
    %c0_i32 = arith.constant 0 : i32
    %c0_i32_0 = arith.constant 0 : i32
    return %arg0, %c0_i32, %arg2 : i32, i32, i32
  }
  func.func @transform_3(%arg0: i32, %arg1: i32, %arg2: i32, %arg3: i32) -> (i32, i32, i32) {
    %c0_i32 = arith.constant 0 : i32
    return %arg0, %arg1, %arg2 : i32, i32, i32
  }
}

</mosaic_0001>

<llo_original>
// kernel: squeeze.6
$region0: #{squeeze.6}
  %s0 = inlined_call_operand.vmem [shape: bf16[1,32,256], index: 0, kind: input, shape index: {}]
  %s1 = inlined_call_operand.vmem [shape: bf16[2,4,4,256], index: 1, kind: output, shape index: {}]
  $region1: #{squeeze.6} parent=0
    #allocation0 [shape = 'u8[65536]{0}', space=vmem, size = 0x10000, scoped, tag = 'scoped mem for output reshape']
    #allocation1 [shape = 'u8[32768]{0}', space=vmem, size = 0x8000, scoped, tag = 'scoped mem for input reshape']
    %s3 = smul.u32 4, 2
    %s4 = sshllo.u32 0, %s3
    %s5 = smul.addr 4, 7
    %s6 = scalar_lea.vmem %s0, %s5
    %s7 = sshrl.u32 %s4, 1
    %s8 = sor.u32 %s4, %s7
    %s9 = sand.u32 %s8, 85
    %s10 = sshrl.u32 %s9, 1
    %s11 = sor.u32 %s9, %s10
    %s12 = sand.u32 51, %s11
    %s13 = sshrl.u32 %s12, 2
    %s14 = sor.u32 %s12, %s13
    %s15 = sand.u32 15, %s14
    %v16 = vld [vmem:[%s6] sm:%s15]
    %v17 = vunpack.c.l.bf16 %v16
    %v18 = vunpack.c.h.bf16 %v16
    %s19 = scalar_lea.vmem [#allocation1], 56
    %20 = vst [vmem:[%s19] sm:%s4] %v17
    %s21 = smul.addr 4, 6
    %s22 = scalar_lea.vmem %s0, %s21
    %s23 = sshrl.u32 %s4, 1
    %s24 = sor.u32 %s4, %s23
    %s25 = sand.u32 %s24, 85
    %s26 = sshrl.u32 %s25, 1
    %s27 = sor.u32 %s25, %s26
    %s28 = sand.u32 51, %s27
    %s29 = sshrl.u32 %s28, 2
    %s30 = sor.u32 %s28, %s29
    %s31 = sand.u32 15, %s30
    %v32 = vld [vmem:[%s22] sm:%s31]
    %v33 = vunpack.c.l.bf16 %v32
    %v34 = vunpack.c.h.bf16 %v32
    %s35 = scalar_lea.vmem [#allocation1], 48
    %36 = vst [vmem:[%s35] sm:%s4] %v33
    %s37 = smul.addr 4, 5
    %s38 = scalar_lea.vmem %s0, %s37
    %s39 = sshrl.u32 %s4, 1
    %s40 = sor.u32 %s4, %s39
    %s41 = sand.u32 %s40, 85
    %s42 = sshrl.u32 %s41, 1
    %s43 = sor.u32 %s41, %s42
    %s44 = sand.u32 51, %s43
    %s45 = sshrl.u32 %s44, 2
    %s46 = sor.u32 %s44, %s45
    %s47 = sand.u32 15, %s46
    %v48 = vld [vmem:[%s38] sm:%s47]
    %v49 = vunpack.c.l.bf16 %v48
    %v50 = vunpack.c.h.bf16 %v48
    %s51 = scalar_lea.vmem [#allocation1], 40
    %52 = vst [vmem:[%s51] sm:%s4] %v49
    %s53 = smul.addr 4, 4
    %s54 = scalar_lea.vmem %s0, %s53
    %s55 = sshrl.u32 %s4, 1
    %s56 = sor.u32 %s4, %s55
    %s57 = sand.u32 %s56, 85
    %s58 = sshrl.u32 %s57, 1
    %s59 = sor.u32 %s57, %s58
    %s60 = sand.u32 51, %s59
    %s61 = sshrl.u32 %s60, 2
    %s62 = sor.u32 %s60, %s61
    %s63 = sand.u32 15, %s62
    %v64 = vld [vmem:[%s54] sm:%s63]
    %v65 = vunpack.c.l.bf16 %v64
    %v66 = vunpack.c.h.bf16 %v64
    %s67 = scalar_lea.vmem [#allocation1], 32
    %68 = vst [vmem:[%s67] sm:%s4] %v65
    %s69 = smul.addr 4, 3
    %s70 = scalar_lea.vmem %s0, %s69
    %s71 = sshrl.u32 %s4, 1
    %s72 = sor.u32 %s4, %s71
    %s73 = sand.u32 %s72, 85
    %s74 = sshrl.u32 %s73, 1
    %s75 = sor.u32 %s73, %s74
    %s76 = sand.u32 51, %s75
    %s77 = sshrl.u32 %s76, 2
    %s78 = sor.u32 %s76, %s77
    %s79 = sand.u32 15, %s78
    %v80 = vld [vmem:[%s70] sm:%s79]
    %v81 = vunpack.c.l.bf16 %v80
    %v82 = vunpack.c.h.bf16 %v80
    %s83 = scalar_lea.vmem [#allocation1], 24
    %84 = vst [vmem:[%s83] sm:%s4] %v81
    %s85 = smul.addr 4, 2
    %s86 = scalar_lea.vmem %s0, %s85
    %s87 = sshrl.u32 %s4, 1
    %s88 = sor.u32 %s4, %s87
    %s89 = sand.u32 %s88, 85
    %s90 = sshrl.u32 %s89, 1
    %s91 = sor.u32 %s89, %s90
    %s92 = sand.u32 51, %s91
    %s93 = sshrl.u32 %s92, 2
    %s94 = sor.u32 %s92, %s93
    %s95 = sand.u32 15, %s94
    %v96 = vld [vmem:[%s86] sm:%s95]
    %v97 = vunpack.c.l.bf16 %v96
    %v98 = vunpack.c.h.bf16 %v96
    %s99 = scalar_lea.vmem [#allocation1], 16
    %100 = vst [vmem:[%s99] sm:%s4] %v97
    %s101 = scalar_lea.vmem %s0, 4
    %s102 = sshrl.u32 %s4, 1
    %s103 = sor.u32 %s4, %s102
    %s104 = sand.u32 %s103, 85
    %s105 = sshrl.u32 %s104, 1
    %s106 = sor.u32 %s104, %s105
    %s107 = sand.u32 51, %s106
    %s108 = sshrl.u32 %s107, 2
    %s109 = sor.u32 %s107, %s108
    %s110 = sand.u32 15, %s109
    %v111 = vld [vmem:[%s101] sm:%s110]
    %v112 = vunpack.c.l.bf16 %v111
    %v113 = vunpack.c.h.bf16 %v111
    %s114 = scalar_lea.vmem [#allocation1], 8
    %115 = vst [vmem:[%s114] sm:%s4] %v112
    %s116 = sshrl.u32 %s4, 1
    %s117 = sor.u32 %s4, %s116
    %s118 = sand.u32 %s117, 85
    %s119 = sshrl.u32 %s118, 1
    %s120 = sor.u32 %s118, %s119
    %s121 = sand.u32 51, %s120
    %s122 = sshrl.u32 %s121, 2
    %s123 = sor.u32 %s121, %s122
    %s124 = sand.u32 15, %s123
    %v125 = vld [vmem:[%s0] sm:%s124]
    %v126 = vunpack.c.l.bf16 %v125
    %v127 = vunpack.c.h.bf16 %v125
    %128 = vst [vmem:[#allocation1] sm:%s4] %v126
    %v129 = vld [vmem:[#allocation1] sm:$0xff]
    %130 = vst [vmem:[#allocation0] sm:$0xf] %v129
    %s131 = scalar_lea.vmem [#allocation0], 12
    %132 = vst [vmem:[%s131] sm:$0xf0] %v129
    %s133 = scalar_lea.vmem [#allocation1], 8
    %v134 = vld [vmem:[%s133] sm:$0xff]
    %s135 = scalar_lea.vmem [#allocation0], 8
    %136 = vst [vmem:[%s135] sm:$0xf] %v134
    %s137 = scalar_lea.vmem [#allocation0], 20
    %138 = vst [vmem:[%s137] sm:$0xf0] %v134
    %s139 = scalar_lea.vmem [#allocation1], 16
    %v140 = vld [vmem:[%s139] sm:$0xff]
    %s141 = scalar_lea.vmem [#allocation0], 32
    %142 = vst [vmem:[%s141] sm:$0xf] %v140
    %s143 = scalar_lea.vmem [#allocation0], 44
    %144 = vst [vmem:[%s143] sm:$0xf0] %v140
    %s145 = scalar_lea.vmem [#allocation1], 24
    %v146 = vld [vmem:[%s145] sm:$0xff]
    %s147 = scalar_lea.vmem [#allocation0], 40
    %148 = vst [vmem:[%s147] sm:$0xf] %v146
    %s149 = scalar_lea.vmem [#allocation0], 52
    %150 = vst [vmem:[%s149] sm:$0xf0] %v146
    %s151 = scalar_lea.vmem [#allocation1], 32
    %v152 = vld [vmem:[%s151] sm:$0xff]
    %s153 = scalar_lea.vmem [#allocation0], 64
    %154 = vst [vmem:[%s153] sm:$0xf] %v152
    %s155 = scalar_lea.vmem [#allocation0], 76
    %156 = vst [vmem:[%s155] sm:$0xf0] %v152
    %s157 = scalar_lea.vmem [#allocation1], 40
    %v158 = vld [vmem:[%s157] sm:$0xff]
    %s159 = scalar_lea.vmem [#allocation0], 72
    %160 = vst [vmem:[%s159] sm:$0xf] %v158
    %s161 = scalar_lea.vmem [#allocation0], 84
    %162 = vst [vmem:[%s161] sm:$0xf0] %v158
    %s163 = scalar_lea.vmem [#allocation1], 48
    %v164 = vld [vmem:[%s163] sm:$0xff]
    %s165 = scalar_lea.vmem [#allocation0], 96
    %166 = vst [vmem:[%s165] sm:$0xf] %v164
    %s167 = scalar_lea.vmem [#allocation0], 108
    %168 = vst [vmem:[%s167] sm:$0xf0] %v164
    %s169 = scalar_lea.vmem [#allocation1], 56
    %v170 = vld [vmem:[%s169] sm:$0xff]
    %s171 = scalar_lea.vmem [#allocation0], 104
    %172 = vst [vmem:[%s171] sm:$0xf] %v170
    %s173 = scalar_lea.vmem [#allocation0], 116
    %174 = vst [vmem:[%s173] sm:$0xf0] %v170
    %s176 = smul.u32 2, 2
    %s177 = sshllo.u32 0, %s176
    %s178 = sshrl.u32 %s176, 1
    %v179 = vld [vmem:[#allocation0] sm:%s177]
    %v180 = vpack.c.bf16 0.0, %v179
    %s181 = sshllo.u32 0, %s178
    %182 = vst [vmem:[%s1] sm:%s181] %v180
    %s183 = scalar_lea.vmem [#allocation0], 8
    %v184 = vld [vmem:[%s183] sm:%s177]
    %v185 = vpack.c.bf16 0.0, %v184
    %s186 = sshllo.u32 0, %s178
    %s187 = scalar_lea.vmem %s1, 2
    %188 = vst [vmem:[%s187] sm:%s186] %v185
    %s189 = scalar_lea.vmem [#allocation0], 16
    %v190 = vld [vmem:[%s189] sm:%s177]
    %v191 = vpack.c.bf16 0.0, %v190
    %s192 = sshllo.u32 0, %s178
    %s193 = smul.addr 2, 2
    %s194 = scalar_lea.vmem %s1, %s193
    %195 = vst [vmem:[%s194] sm:%s192] %v191
    %s196 = scalar_lea.vmem [#allocation0], 24
    %v197 = vld [vmem:[%s196] sm:%s177]
    %v198 = vpack.c.bf16 0.0, %v197
    %s199 = sshllo.u32 0, %s178
    %s200 = smul.addr 2, 3
    %s201 = scalar_lea.vmem %s1, %s200
    %202 = vst [vmem:[%s201] sm:%s199] %v198
    %s203 = scalar_lea.vmem [#allocation0], 32
    %v204 = vld [vmem:[%s203] sm:%s177]
    %v205 = vpack.c.bf16 0.0, %v204
    %s206 = sshllo.u32 0, %s178
    %s207 = smul.addr 2, 4
    %s208 = scalar_lea.vmem %s1, %s207
    %209 = vst [vmem:[%s208] sm:%s206] %v205
    %s210 = scalar_lea.vmem [#allocation0], 40
    %v211 = vld [vmem:[%s210] sm:%s177]
    %v212 = vpack.c.bf16 0.0, %v211
    %s213 = sshllo.u32 0, %s178
    %s214 = smul.addr 2, 5
    %s215 = scalar_lea.vmem %s1, %s214
    %216 = vst [vmem:[%s215] sm:%s213] %v212
    %s217 = scalar_lea.vmem [#allocation0], 48
    %v218 = vld [vmem:[%s217] sm:%s177]
    %v219 = vpack.c.bf16 0.0, %v218
    %s220 = sshllo.u32 0, %s178
    %s221 = smul.addr 2, 6
    %s222 = scalar_lea.vmem %s1, %s221
    %223 = vst [vmem:[%s222] sm:%s220] %v219
    %s224 = scalar_lea.vmem [#allocation0], 56
    %v225 = vld [vmem:[%s224] sm:%s177]
    %v226 = vpack.c.bf16 0.0, %v225
    %s227 = sshllo.u32 0, %s178
    %s228 = smul.addr 2, 7
    %s229 = scalar_lea.vmem %s1, %s228
    %230 = vst [vmem:[%s229] sm:%s227] %v226
    %s231 = scalar_lea.vmem [#allocation0], 64
    %v232 = vld [vmem:[%s231] sm:%s177]
    %v233 = vpack.c.bf16 0.0, %v232
    %s234 = sshllo.u32 0, %s178
    %s235 = smul.addr 2, 8
    %s236 = scalar_lea.vmem %s1, %s235
    %237 = vst [vmem:[%s236] sm:%s234] %v233
    %s238 = scalar_lea.vmem [#allocation0], 72
    %v239 = vld [vmem:[%s238] sm:%s177]
    %v240 = vpack.c.bf16 0.0, %v239
    %s241 = sshllo.u32 0, %s178
    %s242 = smul.addr 2, 9
    %s243 = scalar_lea.vmem %s1, %s242
    %244 = vst [vmem:[%s243] sm:%s241] %v240
    %s245 = scalar_lea.vmem [#allocation0], 80
    %v246 = vld [vmem:[%s245] sm:%s177]
    %v247 = vpack.c.bf16 0.0, %v246
    %s248 = sshllo.u32 0, %s178
    %s249 = smul.addr 2, 10
    %s250 = scalar_lea.vmem %s1, %s249
    %251 = vst [vmem:[%s250] sm:%s248] %v247
    %s252 = scalar_lea.vmem [#allocation0], 88
    %v253 = vld [vmem:[%s252] sm:%s177]
    %v254 = vpack.c.bf16 0.0, %v253
    %s255 = sshllo.u32 0, %s178
    %s256 = smul.addr 2, 11
    %s257 = scalar_lea.vmem %s1, %s256
    %258 = vst [vmem:[%s257] sm:%s255] %v254
    %s259 = scalar_lea.vmem [#allocation0], 96
    %v260 = vld [vmem:[%s259] sm:%s177]
    %v261 = vpack.c.bf16 0.0, %v260
    %s262 = sshllo.u32 0, %s178
    %s263 = smul.addr 2, 12
    %s264 = scalar_lea.vmem %s1, %s263
    %265 = vst [vmem:[%s264] sm:%s262] %v261
    %s266 = scalar_lea.vmem [#allocation0], 104
    %v267 = vld [vmem:[%s266] sm:%s177]
    %v268 = vpack.c.bf16 0.0, %v267
    %s269 = sshllo.u32 0, %s178
    %s270 = smul.addr 2, 13
    %s271 = scalar_lea.vmem %s1, %s270
    %272 = vst [vmem:[%s271] sm:%s269] %v268
    %s273 = scalar_lea.vmem [#allocation0], 112
    %v274 = vld [vmem:[%s273] sm:%s177]
    %v275 = vpack.c.bf16 0.0, %v274
    %s276 = sshllo.u32 0, %s178
    %s277 = smul.addr 2, 14
    %s278 = scalar_lea.vmem %s1, %s277
    %279 = vst [vmem:[%s278] sm:%s276] %v275
    %s280 = scalar_lea.vmem [#allocation0], 120
    %v281 = vld [vmem:[%s280] sm:%s177]
    %v282 = vpack.c.bf16 0.0, %v281
    %s283 = sshllo.u32 0, %s178
    %s284 = smul.addr 2, 15
    %s285 = scalar_lea.vmem %s1, %s284
    %286 = vst [vmem:[%s285] sm:%s283] %v282

// kernel: video_vae_encoder_forward.8
$region0: #{video_vae_encoder_forward.8}
  #allocation0 [shape = 'u32[]', space=smem, size = 0x4, offset = 0x4, fixed_abs, tag = 'smem constant byte address 0x4 - core index']
  #allocation1 [shape = 'u32[144,128]{1,0:T(1,128)}', space=vmem, size = 0x12000, scoped, tag = 'internal scratch']
  #allocation2 [shape = 'f32[128,128]{1,0:T(8,128)}', space=vmem, size = 0x10000, scoped, tag = 'scratch operand']
  %s0 = inlined_call_operand.vmem [shape: bf16[1,128,128], index: 0, kind: input, shape index: {}]
  %s1 = inlined_call_operand.vmem [shape: bf16[1,128,128], index: 1, kind: input, shape index: {}]
  %s2 = inlined_call_operand.vmem [shape: f32[1,1,128], index: 2, kind: input, shape index: {}]
  %s3 = inlined_call_operand.vmem [shape: bf16[1,128,128], index: 3, kind: output, shape index: {}]
  %s4 = sld [smem:[#allocation0]]
  $region30: #{video_vae_encoder_forward.8} parent=0
    _
  %s6 = ssub.s32 1, %s4
  %s7 = scalar_select 0, %s6, %s4
  // Predicated region
  $region2: #{video_vae_encoder_forward.8} parent=0 // pred_check
    _
  $region3: #{video_vae_encoder_forward.8} parent=0 // pred_check_branch
    %9 = sbr.rel (0) target = $region5
  $region4: #{video_vae_encoder_forward.8} parent=0 // pred_region
    _
  $region5: #{video_vae_encoder_forward.8} parent=0 // pred_fallthru
    _
  // Predicated region
  $region6: #{video_vae_encoder_forward.8} parent=0 // pred_check
    _
  $region7: #{video_vae_encoder_forward.8} parent=0 // pred_check_branch
    %11 = sbr.rel (0) target = $region9
  $region8: #{video_vae_encoder_forward.8} parent=0 // pred_region
    _
  $region9: #{video_vae_encoder_forward.8} parent=0 // pred_fallthru
    _
  // Predicated region
  $region10: #{video_vae_encoder_forward.8} parent=0 // pred_check
    _
  $region11: #{video_vae_encoder_forward.8} parent=0 // pred_check_branch
    %13 = sbr.rel (0) target = $region13
  $region12: #{video_vae_encoder_forward.8} parent=0 // pred_region
    _
  $region13: #{video_vae_encoder_forward.8} parent=0 // pred_fallthru
    _
  %p15 = scmp.eq.s32.totalorder 0, 0
  // Predicated region
  $region14: #{video_vae_encoder_forward.8} parent=0 // pred_check
    %p16 = pneg %p15
  $region15: #{video_vae_encoder_forward.8} parent=0 // pred_check_branch
    %18 = sbr.rel (%p16) target = $region17
  $region16: #{video_vae_encoder_forward.8} parent=0 // pred_region
    %19 = vst [vmem:[#allocation2] sm:$0xff] 0.0
    %20 = vst [vmem:[#allocation2 + $0x8] sm:$0xff] 0.0
    %21 = vst [vmem:[#allocation2 + $0x10] sm:$0xff] 0.0
    %22 = vst [vmem:[#allocation2 + $0x18] sm:$0xff] 0.0
    %23 = vst [vmem:[#allocation2 + $0x20] sm:$0xff] 0.0
    %24 = vst [vmem:[#allocation2 + $0x28] sm:$0xff] 0.0
    %25 = vst [vmem:[#allocation2 + $0x30] sm:$0xff] 0.0
    %26 = vst [vmem:[#allocation2 + $0x38] sm:$0xff] 0.0
    %27 = vst [vmem:[#allocation2 + $0x40] sm:$0xff] 0.0
    %28 = vst [vmem:[#allocation2 + $0x48] sm:$0xff] 0.0
    %29 = vst [vmem:[#allocation2 + $0x50] sm:$0xff] 0.0
    %30 = vst [vmem:[#allocation2 + $0x58] sm:$0xff] 0.0
    %31 = vst [vmem:[#allocation2 + $0x60] sm:$0xff] 0.0
    %32 = vst [vmem:[#allocation2 + $0x68] sm:$0xff] 0.0
    %33 = vst [vmem:[#allocation2 + $0x70] sm:$0xff] 0.0
    %34 = vst [vmem:[#allocation2 + $0x78] sm:$0xff] 0.0
  $region17: #{video_vae_encoder_forward.8} parent=0 // pred_fallthru
    _
  %v35 = vld [vmem:[#allocation2] sm:$0xff]
  %v36 = vld [vmem:[#allocation2 + $0x8] sm:$0xff]
  %v37 = vld [vmem:[#allocation2 + $0x10] sm:$0xff]
  %v38 = vld [vmem:[#allocation2 + $0x18] sm:$0xff]
  %v39 = vld [vmem:[#allocation2 + $0x20] sm:$0xff]
  %v40 = vld [vmem:[#allocation2 + $0x28] sm:$0xff]
  %v41 = vld [vmem:[#allocation2 + $0x30] sm:$0xff]
  %v42 = vld [vmem:[#allocation2 + $0x38] sm:$0xff]
  %v43 = vld [vmem:[#allocation2 + $0x40] sm:$0xff]
  %v44 = vld [vmem:[#allocation2 + $0x48] sm:$0xff]
  %v45 = vld [vmem:[#allocation2 + $0x50] sm:$0xff]
  %v46 = vld [vmem:[#allocation2 + $0x58] sm:$0xff]
  %v47 = vld [vmem:[#allocation2 + $0x60] sm:$0xff]
  %v48 = vld [vmem:[#allocation2 + $0x68] sm:$0xff]
  %v49 = vld [vmem:[#allocation2 + $0x70] sm:$0xff]
  %v50 = vld [vmem:[#allocation2 + $0x78] sm:$0xff]
  %v51 = vld [vmem:[%s0] sm:$0xf]
  %v52 = vld [vmem:[%s0 + $0x4] sm:$0xf]
  %v53 = vld [vmem:[%s0 + $0x8] sm:$0xf]
  %v54 = vld [vmem:[%s0 + $0xc] sm:$0xf]
  %v55 = vld [vmem:[%s0 + $0x10] sm:$0xf]
  %v56 = vld [vmem:[%s0 + $0x14] sm:$0xf]
  %v57 = vld [vmem:[%s0 + $0x18] sm:$0xf]
  %v58 = vld [vmem:[%s0 + $0x1c] sm:$0xf]
  %v59 = vld [vmem:[%s0 + $0x20] sm:$0xf]
  %v60 = vld [vmem:[%s0 + $0x24] sm:$0xf]
  %v61 = vld [vmem:[%s0 + $0x28] sm:$0xf]
  %v62 = vld [vmem:[%s0 + $0x2c] sm:$0xf]
  %v63 = vld [vmem:[%s0 + $0x30] sm:$0xf]
  %v64 = vld [vmem:[%s0 + $0x34] sm:$0xf]
  %v65 = vld [vmem:[%s0 + $0x38] sm:$0xf]
  %v66 = vld [vmem:[%s0 + $0x3c] sm:$0xf]
  %v67 = vld [vmem:[%s1] sm:$0xf]
  %v68 = vld [vmem:[%s1 + $0x4] sm:$0xf]
  %v69 = vld [vmem:[%s1 + $0x8] sm:$0xf]
  %v70 = vld [vmem:[%s1 + $0xc] sm:$0xf]
  %v71 = vld [vmem:[%s1 + $0x10] sm:$0xf]
  %v72 = vld [vmem:[%s1 + $0x14] sm:$0xf]
  %v73 = vld [vmem:[%s1 + $0x18] sm:$0xf]
  %v74 = vld [vmem:[%s1 + $0x1c] sm:$0xf]
  %v75 = vld [vmem:[%s1 + $0x20] sm:$0xf]
  %v76 = vld [vmem:[%s1 + $0x24] sm:$0xf]
  %v77 = vld [vmem:[%s1 + $0x28] sm:$0xf]
  %v78 = vld [vmem:[%s1 + $0x2c] sm:$0xf]
  %v79 = vld [vmem:[%s1 + $0x30] sm:$0xf]
  %v80 = vld [vmem:[%s1 + $0x34] sm:$0xf]
  %v81 = vld [vmem:[%s1 + $0x38] sm:$0xf]
  %v82 = vld [vmem:[%s1 + $0x3c] sm:$0xf]
  %v99 = vunpack.c.l.b16 %v51
  %v100 = vunpack.c.l.b16 %v52
  %v101 = vunpack.c.l.b16 %v53
  %v102 = vunpack.c.l.b16 %v54
  %v103 = vunpack.c.l.b16 %v55
  %v104 = vunpack.c.l.b16 %v56
  %v105 = vunpack.c.l.b16 %v57
  %v106 = vunpack.c.l.b16 %v58
  %v107 = vunpack.c.l.b16 %v59
  %v108 = vunpack.c.l.b16 %v60
  %v109 = vunpack.c.l.b16 %v61
  %v110 = vunpack.c.l.b16 %v62
  %v111 = vunpack.c.l.b16 %v63
  %v112 = vunpack.c.l.b16 %v64
  %v113 = vunpack.c.l.b16 %v65
  %v114 = vunpack.c.l.b16 %v66
  %v115 = vpack.c.b16 %v100, %v99
  %v116 = vpack.c.b16 %v102, %v101
  %v117 = vpack.c.b16 %v104, %v103
  %v118 = vpack.c.b16 %v106, %v105
  %v119 = vpack.c.b16 %v108, %v107
  %v120 = vpack.c.b16 %v110, %v109
  %v121 = vpack.c.b16 %v112, %v111
  %v122 = vpack.c.b16 %v114, %v113
  %v147 = vunpack.c.l.b16 %v67
  %v148 = vunpack.c.l.b16 %v68
  %v149 = vunpack.c.l.b16 %v69
  %v150 = vunpack.c.l.b16 %v70
  %v151 = vunpack.c.l.b16 %v71
  %v152 = vunpack.c.l.b16 %v72
  %v153 = vunpack.c.l.b16 %v73
  %v154 = vunpack.c.l.b16 %v74
  %v155 = vunpack.c.l.b16 %v75
  %v156 = vunpack.c.l.b16 %v76
  %v157 = vunpack.c.l.b16 %v77
  %v158 = vunpack.c.l.b16 %v78
  %v159 = vunpack.c.l.b16 %v79
  %v160 = vunpack.c.l.b16 %v80
  %v161 = vunpack.c.l.b16 %v81
  %v162 = vunpack.c.l.b16 %v82
  %v163 = vpack.c.b16 %v148, %v147
  %v164 = vpack.c.b16 %v150, %v149
  %v165 = vpack.c.b16 %v152, %v151
  %v166 = vpack.c.b16 %v154, %v153
  %v167 = vpack.c.b16 %v156, %v155
  %v168 = vpack.c.b16 %v158, %v157
  %v169 = vpack.c.b16 %v160, %v159
  %v170 = vpack.c.b16 %v162, %v161
  %179 = vmatprep.subr.bf16.mxu0 0
  %180 = vmatpush1.bf16.msra.mxu0 %v163
  %181 = vmatprep.subr.bf16.mxu0 0
  %182 = vmatpush1.bf16.msra.mxu0 %v164
  %183 = vmatprep.subr.bf16.mxu0 0
  %184 = vmatpush1.bf16.msra.mxu0 %v165
  %185 = vmatprep.subr.bf16.mxu0 0
  %186 = vmatpush1.bf16.msra.mxu0 %v166
  %187 = vmatprep.subr.bf16.mxu0 0
  %188 = vmatpush1.bf16.msra.mxu0 %v167
  %189 = vmatprep.subr.bf16.mxu0 0
  %190 = vmatpush1.bf16.msra.mxu0 %v168
  %191 = vmatprep.subr.bf16.mxu0 0
  %192 = vmatpush1.bf16.msra.mxu0 %v169
  %193 = vmatprep.subr.bf16.mxu0 0
  %194 = vmatpush1.bf16.msra.mxu0 %v170
  %195 = vmatprep.subr.bf16.mxu0 0
  %196 = vmatpush1.bf16.msra.mxu0 0
  %197 = vmatprep.subr.bf16.mxu0 0
  %198 = vmatpush1.bf16.msra.mxu0 0
  %199 = vmatprep.subr.bf16.mxu0 0
  %200 = vmatpush1.bf16.msra.mxu0 0
  %201 = vmatprep.subr.bf16.mxu0 0
  %202 = vmatpush1.bf16.msra.mxu0 0
  %203 = vmatprep.subr.bf16.mxu0 0
  %204 = vmatpush1.bf16.msra.mxu0 0
  %205 = vmatprep.subr.bf16.mxu0 0
  %206 = vmatpush1.bf16.msra.mxu0 0
  %207 = vmatprep.subr.bf16.mxu0 0
  %208 = vmatpush1.bf16.msra.mxu0 0
  %209 = vmatprep.subr.bf16.mxu0 0
  %210 = vmatpush1.bf16.msra.mxu0 0
  %211 = vmatprep.mubr.bf16.mxu0 0
  %212 = vmatmul.mubr.bf16.gmra.mrb[0].mxu0 %v115
  %v213 = vpop.f32.mrb[0].mxu0
  %v214 = vadd.f32 0.0, %v213
  %v215 = vpop.f32.mrb[0].mxu0
  %v216 = vpop.f32.mrb[0].mxu0
  %v217 = vadd.f32 0.0, %v216
  %v218 = vpop.f32.mrb[0].mxu0
  %219 = vmatprep.mubr.bf16.mxu0 0
  %220 = vmatmul.mubr.bf16.gmra.mrb[0].mxu0 %v116
  %v221 = vpop.f32.mrb[0].mxu0
  %v222 = vadd.f32 0.0, %v221
  %v223 = vpop.f32.mrb[0].mxu0
  %v224 = vpop.f32.mrb[0].mxu0
  %v225 = vadd.f32 0.0, %v224
  %v226 = vpop.f32.mrb[0].mxu0
  %227 = vmatprep.mubr.bf16.mxu0 0
  %228 = vmatmul.mubr.bf16.gmra.mrb[0].mxu0 %v117
  %v229 = vpop.f32.mrb[0].mxu0
  %v230 = vadd.f32 0.0, %v229
  %v231 = vpop.f32.mrb[0].mxu0
  %v232 = vpop.f32.mrb[0].mxu0
  %v233 = vadd.f32 0.0, %v232
  %v234 = vpop.f32.mrb[0].mxu0
  %235 = vmatprep.mubr.bf16.mxu0 0
  %236 = vmatmul.mubr.bf16.gmra.mrb[0].mxu0 %v118
  %v237 = vpop.f32.mrb[0].mxu0
  %v238 = vadd.f32 0.0, %v237
  %v239 = vpop.f32.mrb[0].mxu0
  %v240 = vpop.f32.mrb[0].mxu0
  %v241 = vadd.f32 0.0, %v240
  %v242 = vpop.f32.mrb[0].mxu0
  %243 = vmatprep.mubr.bf16.mxu0 0
  %244 = vmatmul.mubr.bf16.gmra.mrb[0].mxu0 %v119
  %v245 = vpop.f32.mrb[0].mxu0
  %v246 = vadd.f32 0.0, %v245
  %v247 = vpop.f32.mrb[0].mxu0
  %v248 = vpop.f32.mrb[0].mxu0
  %v249 = vadd.f32 0.0, %v248
  %v250 = vpop.f32.mrb[0].mxu0
  %251 = vmatprep.mubr.bf16.mxu0 0
  %252 = vmatmul.mubr.bf16.gmra.mrb[0].mxu0 %v120
  %v253 = vpop.f32.mrb[0].mxu0
  %v254 = vadd.f32 0.0, %v253
  %v255 = vpop.f32.mrb[0].mxu0
  %v256 = vpop.f32.mrb[0].mxu0
  %v257 = vadd.f32 0.0, %v256
  %v258 = vpop.f32.mrb[0].mxu0
  %259 = vmatprep.mubr.bf16.mxu0 0
  %260 = vmatmul.mubr.bf16.gmra.mrb[0].mxu0 %v121
  %v261 = vpop.f32.mrb[0].mxu0
  %v262 = vadd.f32 0.0, %v261
  %v263 = vpop.f32.mrb[0].mxu0
  %v264 = vpop.f32.mrb[0].mxu0
  %v265 = vadd.f32 0.0, %v264
  %v266 = vpop.f32.mrb[0].mxu0
  %267 = vmatprep.mubr.bf16.mxu0 0
  %268 = vmatmul.mubr.bf16.gmra.mrb[0].mxu0 %v122
  %v269 = vpop.f32.mrb[0].mxu0
  %v270 = vadd.f32 0.0, %v269
  %v271 = vpop.f32.mrb[0].mxu0
  %v272 = vpop.f32.mrb[0].mxu0
  %v273 = vadd.f32 0.0, %v272
  %v274 = vpop.f32.mrb[0].mxu0
  %275 = vdwg.mxu0
  %v276 = vadd.f32 %v35, %v214
  %v277 = vadd.f32 %v36, %v217
  %v278 = vadd.f32 %v37, %v222
  %v279 = vadd.f32 %v38, %v225
  %v280 = vadd.f32 %v39, %v230
  %v281 = vadd.f32 %v40, %v233
  %v282 = vadd.f32 %v41, %v238
  %v283 = vadd.f32 %v42, %v241
  %v284 = vadd.f32 %v43, %v246
  %v285 = vadd.f32 %v44, %v249
  %v286 = vadd.f32 %v45, %v254
  %v287 = vadd.f32 %v46, %v257
  %v288 = vadd.f32 %v47, %v262
  %v289 = vadd.f32 %v48, %v265
  %v290 = vadd.f32 %v49, %v270
  %v291 = vadd.f32 %v50, %v273
  %292 = vst [vmem:[#allocation2] sm:$0xff] %v276
  %293 = vst [vmem:[#allocation2 + $0x8] sm:$0xff] %v277
  %294 = vst [vmem:[#allocation2 + $0x10] sm:$0xff] %v278
  %295 = vst [vmem:[#allocation2 + $0x18] sm:$0xff] %v279
  %296 = vst [vmem:[#allocation2 + $0x20] sm:$0xff] %v280
  %297 = vst [vmem:[#allocation2 + $0x28] sm:$0xff] %v281
  %298 = vst [vmem:[#allocation2 + $0x30] sm:$0xff] %v282
  %299 = vst [vmem:[#allocation2 + $0x38] sm:$0xff] %v283
  %300 = vst [vmem:[#allocation2 + $0x40] sm:$0xff] %v284
  %301 = vst [vmem:[#allocation2 + $0x48] sm:$0xff] %v285
  %302 = vst [vmem:[#allocation2 + $0x50] sm:$0xff] %v286
  %303 = vst [vmem:[#allocation2 + $0x58] sm:$0xff] %v287
  %304 = vst [vmem:[#allocation2 + $0x60] sm:$0xff] %v288
  %305 = vst [vmem:[#allocation2 + $0x68] sm:$0xff] %v289
  %306 = vst [vmem:[#allocation2 + $0x70] sm:$0xff] %v290
  %307 = vst [vmem:[#allocation2 + $0x78] sm:$0xff] %v291
  // Predicated region
  $region18: #{video_vae_encoder_forward.8} parent=0 // pred_check
    %p308 = pneg %p15
  $region19: #{video_vae_encoder_forward.8} parent=0 // pred_check_branch
    %310 = sbr.rel (%p308) target = $region21
  $region20: #{video_vae_encoder_forward.8} parent=0 // pred_region
    %v311 = vld [vmem:[#allocation2] sm:$0xff]
    %v312 = vld [vmem:[#allocation2 + $0x8] sm:$0xff]
    %v313 = vld [vmem:[#allocation2 + $0x10] sm:$0xff]
    %v314 = vld [vmem:[#allocation2 + $0x18] sm:$0xff]
    %v315 = vld [vmem:[#allocation2 + $0x20] sm:$0xff]
    %v316 = vld [vmem:[#allocation2 + $0x28] sm:$0xff]
    %v317 = vld [vmem:[#allocation2 + $0x30] sm:$0xff]
    %v318 = vld [vmem:[#allocation2 + $0x38] sm:$0xff]
    %v319 = vld [vmem:[#allocation2 + $0x40] sm:$0xff]
    %v320 = vld [vmem:[#allocation2 + $0x48] sm:$0xff]
    %v321 = vld [vmem:[#allocation2 + $0x50] sm:$0xff]
    %v322 = vld [vmem:[#allocation2 + $0x58] sm:$0xff]
    %v323 = vld [vmem:[#allocation2 + $0x60] sm:$0xff]
    %v324 = vld [vmem:[#allocation2 + $0x68] sm:$0xff]
    %v325 = vld [vmem:[#allocation2 + $0x70] sm:$0xff]
    %v326 = vld [vmem:[#allocation2 + $0x78] sm:$0xff]
    %v327 = vld [vmem:[%s2] sm:$0x1]
    %v329 = vlaneseq
    %v330 = vshrl.u32 %v329, 7
    %v331 = vsub.s32 0, %v330
    %v332 = vrot.slane %v327, %v331
    %v334 = vadd.f32 %v311, %v332
    %v335 = vadd.f32 %v312, %v332
    %v336 = vadd.f32 %v313, %v332
    %v337 = vadd.f32 %v314, %v332
    %v338 = vadd.f32 %v315, %v332
    %v339 = vadd.f32 %v316, %v332
    %v340 = vadd.f32 %v317, %v332
    %v341 = vadd.f32 %v318, %v332
    %v342 = vadd.f32 %v319, %v332
    %v343 = vadd.f32 %v320, %v332
    %v344 = vadd.f32 %v321, %v332
    %v345 = vadd.f32 %v322, %v332
    %v346 = vadd.f32 %v323, %v332
    %v347 = vadd.f32 %v324, %v332
    %v348 = vadd.f32 %v325, %v332
    %v349 = vadd.f32 %v326, %v332
    %v350 = vpack.c.bf16 %v335, %v334
    %v351 = vpack.c.bf16 %v337, %v336
    %v352 = vpack.c.bf16 %v339, %v338
    %v353 = vpack.c.bf16 %v341, %v340
    %v354 = vpack.c.bf16 %v343, %v342
    %v355 = vpack.c.bf16 %v345, %v344
    %v356 = vpack.c.bf16 %v347, %v346
    %v357 = vpack.c.bf16 %v349, %v348
    %v366 = vunpack.c.l.b16 %v350
    %v367 = vunpack.c.h.b16 %v350
    %v368 = vunpack.c.l.b16 %v351
    %v369 = vunpack.c.h.b16 %v351
    %v370 = vunpack.c.l.b16 %v352
    %v371 = vunpack.c.h.b16 %v352
    %v372 = vunpack.c.l.b16 %v353
    %v373 = vunpack.c.h.b16 %v353
    %v374 = vunpack.c.l.b16 %v354
    %v375 = vunpack.c.h.b16 %v354
    %v376 = vunpack.c.l.b16 %v355
    %v377 = vunpack.c.h.b16 %v355
    %v378 = vunpack.c.l.b16 %v356
    %v379 = vunpack.c.h.b16 %v356
    %v380 = vunpack.c.l.b16 %v357
    %v381 = vunpack.c.h.b16 %v357
    %v382 = vpack.c.b16 %v366, %v366
    %v383 = vpack.c.b16 %v367, %v367
    %v384 = vpack.c.b16 %v368, %v368
    %v385 = vpack.c.b16 %v369, %v369
    %v386 = vpack.c.b16 %v370, %v370
    %v387 = vpack.c.b16 %v371, %v371
    %v388 = vpack.c.b16 %v372, %v372
    %v389 = vpack.c.b16 %v373, %v373
    %v390 = vpack.c.b16 %v374, %v374
    %v391 = vpack.c.b16 %v375, %v375
    %v392 = vpack.c.b16 %v376, %v376
    %v393 = vpack.c.b16 %v377, %v377
    %v394 = vpack.c.b16 %v378, %v378
    %v395 = vpack.c.b16 %v379, %v379
    %v396 = vpack.c.b16 %v380, %v380
    %v397 = vpack.c.b16 %v381, %v381
    %414 = vst [vmem:[%s3] sm:$0xf] %v382
    %415 = vst [vmem:[%s3 + $0x4] sm:$0xf] %v383
    %416 = vst [vmem:[%s3 + $0x8] sm:$0xf] %v384
    %417 = vst [vmem:[%s3 + $0xc] sm:$0xf] %v385
    %418 = vst [vmem:[%s3 + $0x10] sm:$0xf] %v386
    %419 = vst [vmem:[%s3 + $0x14] sm:$0xf] %v387
    %420 = vst [vmem:[%s3 + $0x18] sm:$0xf] %v388
    %421 = vst [vmem:[%s3 + $0x1c] sm:$0xf] %v389
    %422 = vst [vmem:[%s3 + $0x20] sm:$0xf] %v390
    %423 = vst [vmem:[%s3 + $0x24] sm:$0xf] %v391
    %424 = vst [vmem:[%s3 + $0x28] sm:$0xf] %v392
    %425 = vst [vmem:[%s3 + $0x2c] sm:$0xf] %v393
    %426 = vst [vmem:[%s3 + $0x30] sm:$0xf] %v394
    %427 = vst [vmem:[%s3 + $0x34] sm:$0xf] %v395
    %428 = vst [vmem:[%s3 + $0x38] sm:$0xf] %v396
    %429 = vst [vmem:[%s3 + $0x3c] sm:$0xf] %v397
  $region21: #{video_vae_encoder_forward.8} parent=0 // pred_fallthru
    _
  // Predicated region
  $region22: #{video_vae_encoder_forward.8} parent=0 // pred_check
    _
  $region23: #{video_vae_encoder_forward.8} parent=0 // pred_check_branch
    %431 = sbr.rel (0) target = $region25
  $region24: #{video_vae_encoder_forward.8} parent=0 // pred_region
    _
  $region25: #{video_vae_encoder_forward.8} parent=0 // pred_fallthru
    _
  // Predicated region
  $region26: #{video_vae_encoder_forward.8} parent=0 // pred_check
    _
  $region27: #{video_vae_encoder_forward.8} parent=0 // pred_check_branch
    %433 = sbr.rel (0) target = $region29
  $region28: #{video_vae_encoder_forward.8} parent=0 // pred_region
    _
  $region29: #{video_vae_encoder_forward.8} parent=0 // pred_fallthru
    _

// kernel: video_vae_encoder_forward.10
$region0: #{video_vae_encoder_forward.10}
  #allocation0 [shape = 'u32[]', space=smem, size = 0x4, offset = 0x4, fixed_abs, tag = 'smem constant byte address 0x4 - core index']
  #allocation1 [shape = 'u32[144,128]{1,0:T(1,128)}', space=vmem, size = 0x12000, scoped, tag = 'internal scratch']
  #allocation2 [shape = 'f32[32,256]{1,0:T(8,128)}', space=vmem, size = 0x8000, scoped, tag = 'scratch operand']
  %s0 = inlined_call_operand.vmem [shape: bf16[1,32,384], index: 0, kind: input, shape index: {}]
  %s1 = inlined_call_operand.vmem [shape: bf16[1,384,256], index: 1, kind: input, shape index: {}]
  %s2 = inlined_call_operand.vmem [shape: f32[1,1,256], index: 2, kind: input, shape index: {}]
  %s3 = inlined_call_operand.vmem [shape: bf16[1,32,256], index: 3, kind: output, shape index: {}]
  %s4 = sld [smem:[#allocation0]]
  $region94: #{video_vae_encoder_forward.10} parent=0
    _
  %s6 = ssub.s32 1, %s4
  %s7 = scalar_select 0, %s6, %s4
  $region1: #{video_vae_encoder_forward.10} parent=0
    #allocation3 [shape = 'u8[16384]{0}', space=vmem, size = 0x4000, scoped, tag = 'input window, operand 0']
    loop: start=0, step=1, limit=5
    $region2: #{video_vae_encoder_forward.10} parent=1 // loop_pre_header
      _
    $region3: #{video_vae_encoder_forward.10} parent=1 // loop_header
      %s9 = sphi 0, %s13
      %p10 = scmp.ge.s32.totalorder %s9, 5
      %s16 = sphi 0, %s42
      %s17 = sphi 0, %s38
      %s18 = sphi 0, %s34
      %s19 = sphi 0, %s30
      %s20 = sphi 0, %s16
      %s21 = sphi 0, %s17
      %s22 = sphi 0, %s18
      %s23 = sphi 0, %s19
      %s24 = sphi 0, %s20
      %s25 = sphi 0, %s21
      %s26 = sphi 0, %s22
      %s27 = sphi 0, %s23
      %s49 = sphi 0, %s51
      %s52 = sphi 0, %s49
      %s53 = sphi 0, %s52
      %s69 = sphi 0, %s53
      %s79 = sphi 0, %s81
      %s82 = sphi 0, %s79
      %s83 = sphi 0, %s82
      %s99 = sphi 0, %s83
      %s107 = sphi 0, %s109
      %s110 = sphi 0, %s107
      %s111 = sphi 0, %s110
      %s127 = sphi 0, %s111
      %s137 = sphi 0, %s139
      %s140 = sphi 0, %s137
      %s141 = sphi 0, %s140
      %s157 = sphi 0, %s141
    $region4: #{video_vae_encoder_forward.10} parent=1 // loop_header_branch
      %12 = sbr.rel (%p10) target = $region8
    $region5: #{video_vae_encoder_forward.10} parent=1 // loop_body
      %s14 = ssub.s32 %s9, 1
      %s15 = ssub.s32 %s9, 2
      %s28 = sadd.s32 1, %s19
      %p29 = scmp.ge.s32.totalorder %s28, 3
      %s30 = scalar_select %p29, 0, %s28
      %s31 = sadd.s32 1, %s18
      %s32 = scalar_select %p29, %s31, %s18
      %p33 = scmp.ge.s32.totalorder %s32, 1
      %s34 = scalar_select %p33, 0, %s32
      %s35 = sadd.s32 1, %s17
      %s36 = scalar_select %p33, %s35, %s17
      %p37 = scmp.ge.s32.totalorder %s36, 1
      %s38 = scalar_select %p37, 0, %s36
      %s39 = sadd.s32 1, %s16
      %s40 = scalar_select %p37, %s39, %s16
      %p41 = scmp.ge.s32.totalorder %s40, 1
      %s42 = scalar_select %p41, 0, %s40
      %s43 = ssub.s32 %s16, %s42
      %s44 = ssub.s32 %s17, %s38
      %s45 = sor.u32 %s43, %s44
      %s46 = ssub.s32 %s19, %s30
      %s47 = sor.u32 %s45, %s46
      %p48 = scmp.eq.s32.totalorder %s47, 0
      %s50 = sadd.s32 %s49, 1
      %s51 = scalar_select %p48, %s49, %s50
      %p54 = pneg %p48
      %p55 = scmp.eq.s32.totalorder %s9, 2
      %p56 = por %p54, %p55
      %p57 = scmp.ne.s32.totalorder %s49, %s52
      %p58 = scmp.eq.s32.totalorder %s9, 0
      %p59 = por %p57, %p58
      %p60 = scmp.ne.s32.totalorder %s49, %s52
      %p61 = scmp.eq.s32.totalorder %s14, 2
      %p62 = por %p60, %p61
      %p63 = scmp.ne.s32.totalorder %s52, %s53
      %p64 = scmp.eq.s32.totalorder %s14, 0
      %p65 = por %p63, %p64
      %p66 = scmp.ne.s32.totalorder %s52, %s53
      %p67 = scmp.eq.s32.totalorder %s15, 2
      %p68 = por %p66, %p67
      %p70 = scmp.ne.s32.totalorder %s53, %s69
      %p71 = scmp.eq.s32.totalorder %s15, 0
      %p72 = por %p70, %p71
      %s73 = ssub.s32 %s16, %s42
      %s74 = ssub.s32 %s19, %s30
      %s75 = sor.u32 %s73, %s74
      %s76 = ssub.s32 %s18, %s34
      %s77 = sor.u32 %s75, %s76
      %p78 = scmp.eq.s32.totalorder %s77, 0
      %s80 = sadd.s32 %s79, 1
      %s81 = scalar_select %p78, %s79, %s80
      %p84 = pneg %p78
      %p85 = scmp.eq.s32.totalorder %s9, 2
      %p86 = por %p84, %p85
      %p87 = scmp.ne.s32.totalorder %s79, %s82
      %p88 = scmp.eq.s32.totalorder %s9, 0
      %p89 = por %p87, %p88
      %p90 = scmp.ne.s32.totalorder %s79, %s82
      %p91 = scmp.eq.s32.totalorder %s14, 2
      %p92 = por %p90, %p91
      %p93 = scmp.ne.s32.totalorder %s82, %s83
      %p94 = scmp.eq.s32.totalorder %s14, 0
      %p95 = por %p93, %p94
      %p96 = scmp.ne.s32.totalorder %s82, %s83
      %p97 = scmp.eq.s32.totalorder %s15, 2
      %p98 = por %p96, %p97
      %p100 = scmp.ne.s32.totalorder %s83, %s99
      %p101 = scmp.eq.s32.totalorder %s15, 0
      %p102 = por %p100, %p101
      %s103 = ssub.s32 %s16, %s42
      %s104 = ssub.s32 %s18, %s34
      %s105 = sor.u32 %s103, %s104
      %p106 = scmp.eq.s32.totalorder %s105, 0
      %s108 = sadd.s32 %s107, 1
      %s109 = scalar_select %p106, %s107, %s108
      %p112 = pneg %p106
      %p113 = scmp.eq.s32.totalorder %s9, 2
      %p114 = por %p112, %p113
      %p115 = scmp.ne.s32.totalorder %s107, %s110
      %p116 = scmp.eq.s32.totalorder %s9, 0
      %p117 = por %p115, %p116
      %p118 = scmp.ne.s32.totalorder %s107, %s110
      %p119 = scmp.eq.s32.totalorder %s14, 2
      %p120 = por %p118, %p119
      %p121 = scmp.ne.s32.totalorder %s110, %s111
      %p122 = scmp.eq.s32.totalorder %s14, 0
      %p123 = por %p121, %p122
      %p124 = scmp.ne.s32.totalorder %s110, %s111
      %p125 = scmp.eq.s32.totalorder %s15, 2
      %p126 = por %p124, %p125
      %p128 = scmp.ne.s32.totalorder %s111, %s127
      %p129 = scmp.eq.s32.totalorder %s15, 0
      %p130 = por %p128, %p129
      %s131 = ssub.s32 %s16, %s42
      %s132 = ssub.s32 %s17, %s38
      %s133 = sor.u32 %s131, %s132
      %s134 = ssub.s32 %s18, %s34
      %s135 = sor.u32 %s133, %s134
      %p136 = scmp.eq.s32.totalorder %s135, 0
      %s138 = sadd.s32 %s137, 1
      %s139 = scalar_select %p136, %s137, %s138
      %p142 = pneg %p136
      %p143 = scmp.eq.s32.totalorder %s9, 2
      %p144 = por %p142, %p143
      %p145 = scmp.ne.s32.totalorder %s137, %s140
      %p146 = scmp.eq.s32.totalorder %s9, 0
      %p147 = por %p145, %p146
      %p148 = scmp.ne.s32.totalorder %s137, %s140
      %p149 = scmp.eq.s32.totalorder %s14, 2
      %p150 = por %p148, %p149
      %p151 = scmp.ne.s32.totalorder %s140, %s141
      %p152 = scmp.eq.s32.totalorder %s14, 0
      %p153 = por %p151, %p152
      %p154 = scmp.ne.s32.totalorder %s140, %s141
      %p155 = scmp.eq.s32.totalorder %s15, 2
      %p156 = por %p154, %p155
      %p158 = scmp.ne.s32.totalorder %s141, %s157
      %p159 = scmp.eq.s32.totalorder %s15, 0
      %p160 = por %p158, %p159
      %p161 = scmp.le.s32.totalorder 1, %s9
      %p162 = scmp.lt.s32.totalorder %s9, 4
      %p163 = pnand %p161, %p162
      %p164 = pneg %p163
      // Predicated region
      $region9: #{video_vae_encoder_forward.10} parent=5 // pred_check
        _
      $region10: #{video_vae_encoder_forward.10} parent=5 // pred_check_branch
        %166 = sbr.rel (%p163) target = $region12
      $region11: #{video_vae_encoder_forward.10} parent=5 // pred_region
        %s167 = ssub.s32 %s9, 1
        // Predicated region
        $region13: #{video_vae_encoder_forward.10} parent=11 // pred_check
          %p168 = pneg %p123
        $region14: #{video_vae_encoder_forward.10} parent=11 // pred_check_branch
          %170 = sbr.rel (%p168) target = $region16
        $region15: #{video_vae_encoder_forward.10} parent=11 // pred_region
          %s171 = smul.u32 2, %s22
          %p172 = scmp.lt.s32.totalorder %s20, 0
          %s173 = scalar_select %p172, %s20, 0
          %p174 = scmp.lt.s32.totalorder %s171, 1
          %s175 = scalar_select %p174, %s171, 1
          %s176 = smul.addr %s173, 2
          %s177 = sadd.s32 %s175, %s176
          %s178 = scalar_lea.vmem %s2, %s177
          %s179 = smul.u32 2, %s22
        $region16: #{video_vae_encoder_forward.10} parent=11 // pred_fallthru
          _
      $region12: #{video_vae_encoder_forward.10} parent=5 // pred_fallthru
        _
      %p180 = scmp.lt.s32.totalorder %s9, 3
      // Predicated region
      $region17: #{video_vae_encoder_forward.10} parent=5 // pred_check
        %p181 = pneg %p180
      $region18: #{video_vae_encoder_forward.10} parent=5 // pred_check_branch
        %183 = sbr.rel (%p181) target = $region20
      $region19: #{video_vae_encoder_forward.10} parent=5 // pred_region
        // Predicated region
        $region21: #{video_vae_encoder_forward.10} parent=19 // pred_check
          %p184 = pneg %p59
        $region22: #{video_vae_encoder_forward.10} parent=19 // pred_check_branch
          %186 = sbr.rel (%p184) target = $region24
        $region23: #{video_vae_encoder_forward.10} parent=19 // pred_region
          %s187 = sand.u32 %s49, 1
          %s188 = sand.u32 %s49, 1
          %s189 = smul.addr %s188, 16
          %s190 = scalar_lea.vmem [#allocation3], %s189
          %s191 = smul.u32 4, %s17
          %s192 = smul.addr %s191, 3
          %s193 = sadd.s32 %s19, %s192
          %s194 = smul.addr %s16, 12
          %s195 = sadd.s32 %s193, %s194
          %s196 = smul.addr %s195, 4
          %s197 = scalar_lea.vmem %s0, %s196
          // Predicated region
          $region25: #{video_vae_encoder_forward.10} parent=23 // pred_check
            _
          $region26: #{video_vae_encoder_forward.10} parent=23 // pred_check_branch
            %199 = sbr.rel (0) target = $region28
          $region27: #{video_vae_encoder_forward.10} parent=23 // pred_region
            // Predicated region
            $region29: #{video_vae_encoder_forward.10} parent=27 // pred_check
              _
            $region30: #{video_vae_encoder_forward.10} parent=27 // pred_check_branch
              %201 = sbr.rel target = $region32
            $region31: #{video_vae_encoder_forward.10} parent=27 // pred_region
              // Predicated region
              $region44: #{video_vae_encoder_forward.10} parent=31 // pred_check
                _
              $region45: #{video_vae_encoder_forward.10} parent=31 // pred_check_branch
                %222 = sbr.rel (0) target = $region47
              $region46: #{video_vae_encoder_forward.10} parent=31 // pred_region
                loop: start=0, step=1, limit=1
                $region48: #{video_vae_encoder_forward.10} parent=46 // loop_pre_header
                  _
                $region49: #{video_vae_encoder_forward.10} parent=46 // loop_header
                  %s224 = sphi 0, %s228
                  %p225 = scmp.ge.s32.totalorder %s224, 1
                  %s229 = sphi %s197, %s197
                  %s230 = sphi %s190, %s190
                $region50: #{video_vae_encoder_forward.10} parent=46 // loop_header_branch
                  %227 = sbr.rel (%p225) target = $region54
                $region51: #{video_vae_encoder_forward.10} parent=46 // loop_body
                  _
                $region52: #{video_vae_encoder_forward.10} parent=46 // loop_footer
                  %s228 = sadd.s32 1, %s224
                $region53: #{video_vae_encoder_forward.10} parent=46 // loop_footer_branch
                  %223 = sbr.rel target = $region49
                $region54: #{video_vae_encoder_forward.10} parent=46 // loop_exit
                  _
                loop: start=0, step=1, limit=1
                $region55: #{video_vae_encoder_forward.10} parent=46 // loop_pre_header
                  _
                $region56: #{video_vae_encoder_forward.10} parent=46 // loop_header
                  %s233 = sphi 0, %s237
                  %p234 = scmp.ge.s32.totalorder %s233, 1
                  %s238 = sphi %s197, %s197
                  %s239 = sphi %s190, %s190
                $region57: #{video_vae_encoder_forward.10} parent=46 // loop_header_branch
                  %236 = sbr.rel (%p234) target = $region61
                $region58: #{video_vae_encoder_forward.10} parent=46 // loop_body
                  %v240 = vld [vmem:[%s238] sm:$0xf]
                  %241 = vst [vmem:[%s239] sm:$0xf] %v240
                  %v242 = vld [vmem:[%s238 + $0xc] sm:$0xf]
                  %243 = vst [vmem:[%s239 + $0x4] sm:$0xf] %v242
                  %v244 = vld [vmem:[%s238 + $0x18] sm:$0xf]
                  %245 = vst [vmem:[%s239 + $0x8] sm:$0xf] %v244
                  %v246 = vld [vmem:[%s238 + $0x24] sm:$0xf]
                  %247 = vst [vmem:[%s239 + $0xc] sm:$0xf] %v246
                $region59: #{video_vae_encoder_forward.10} parent=46 // loop_footer
                  %s237 = sadd.s32 1, %s233
                $region60: #{video_vae_encoder_forward.10} parent=46 // loop_footer_branch
                  %232 = sbr.rel target = $region56
                $region61: #{video_vae_encoder_forward.10} parent=46 // loop_exit
                  _
              $region47: #{video_vae_encoder_forward.10} parent=31 // pred_fallthru
                _
            $region32: #{video_vae_encoder_forward.10} parent=27 // pred_fallthru
              _
            // Predicated region
            $region33: #{video_vae_encoder_forward.10} parent=27 // pred_check
              _
            $region34: #{video_vae_encoder_forward.10} parent=27 // pred_check_branch
              %203 = sbr.rel (0) target = $region36
            $region35: #{video_vae_encoder_forward.10} parent=27 // pred_region
              loop: start=0, step=1, limit=1
              $region37: #{video_vae_encoder_forward.10} parent=35 // loop_pre_header
                _
              $region38: #{video_vae_encoder_forward.10} parent=35 // loop_header
                %s206 = sphi 0, %s210
                %p207 = scmp.ge.s32.totalorder %s206, 1
                %s211 = sphi %s197, %s197
                %s212 = sphi %s190, %s190
              $region39: #{video_vae_encoder_forward.10} parent=35 // loop_header_branch
                %209 = sbr.rel (%p207) target = $region43
              $region40: #{video_vae_encoder_forward.10} parent=35 // loop_body
                %v213 = vld [vmem:[%s211] sm:$0xf]
                %214 = vst [vmem:[%s212] sm:$0xf] %v213
                %v215 = vld [vmem:[%s211 + $0xc] sm:$0xf]
                %216 = vst [vmem:[%s212 + $0x4] sm:$0xf] %v215
                %v217 = vld [vmem:[%s211 + $0x18] sm:$0xf]
                %218 = vst [vmem:[%s212 + $0x8] sm:$0xf] %v217
                %v219 = vld [vmem:[%s211 + $0x24] sm:$0xf]
                %220 = vst [vmem:[%s212 + $0xc] sm:$0xf] %v219
              $region41: #{video_vae_encoder_forward.10} parent=35 // loop_footer
                %s210 = sadd.s32 1, %s206
              $region42: #{video_vae_encoder_forward.10} parent=35 // loop_footer_branch
                %205 = sbr.rel target = $region38
              $region43: #{video_vae_encoder_forward.10} parent=35 // loop_exit
                _
            $region36: #{video_vae_encoder_forward.10} parent=27 // pred_fallthru
              _
          $region28: #{video_vae_encoder_forward.10} parent=23 // pred_fallthru
            _
          %248 = vnop
        $region24: #{video_vae_encoder_forward.10} parent=19 // pred_fallthru
          _
        // Predicated region
        $region62: #{video_vae_encoder_forward.10} parent=19 // pred_check
          %p249 = pneg %p89
        $region63: #{video_vae_encoder_forward.10} parent=19 // pred_check_branch
          %251 = sbr.rel (%p249) target = $region65
        $region64: #{video_vae_encoder_forward.10} parent=19 // pred_region
          %s252 = smul.u32 16, %s19
          %s253 = smul.u32 2, %s18
          %p254 = scmp.lt.s32.totalorder %s16, 0
          %s255 = scalar_select %p254, %s16, 0
          %p256 = scmp.lt.s32.totalorder %s252, 47
          %s257 = scalar_select %p256, %s252, 47
          %p258 = scmp.lt.s32.totalorder %s253, 1
          %s259 = scalar_select %p258, %s253, 1
          %s260 = smul.addr %s257, 2
          %s261 = sadd.s32 %s259, %s260
          %s262 = smul.addr %s255, 96
          %s263 = sadd.s32 %s261, %s262
          %s264 = smul.addr %s263, 4
          %s265 = scalar_lea.vmem %s1, %s264
          %s266 = smul.u32 16, %s19
          %s267 = smul.u32 2, %s18
        $region65: #{video_vae_encoder_forward.10} parent=19 // pred_fallthru
          _
      $region20: #{video_vae_encoder_forward.10} parent=5 // pred_fallthru
        _
      %p268 = scmp.le.s32.totalorder 1, %s9
      %p269 = scmp.lt.s32.totalorder %s9, 4
      %p270 = pnand %p268, %p269
      %p271 = pneg %p270
      // Predicated region
      $region66: #{video_vae_encoder_forward.10} parent=5 // pred_check
        _
      $region67: #{video_vae_encoder_forward.10} parent=5 // pred_check_branch
        %273 = sbr.rel (%p270) target = $region69
      $region68: #{video_vae_encoder_forward.10} parent=5 // pred_region
        %s274 = ssub.s32 %s9, 1
        %s275 = sand.u32 %s52, 1
        %s276 = sand.u32 %s52, 1
        %s277 = smul.addr %s276, 16
        %s278 = scalar_lea.vmem [#allocation3], %s277
        // Predicated region
        $region70: #{video_vae_encoder_forward.10} parent=68 // pred_check
          %p279 = pneg %p65
        $region71: #{video_vae_encoder_forward.10} parent=68 // pred_check_branch
          %281 = sbr.rel (%p279) target = $region73
        $region72: #{video_vae_encoder_forward.10} parent=68 // pred_region
          _
        $region73: #{video_vae_encoder_forward.10} parent=68 // pred_fallthru
          _
        %s282 = sand.u32 %s52, 1
        %s283 = sand.u32 %s52, 1
        %s284 = smul.addr %s283, 16
        %s285 = scalar_lea.vmem [#allocation3], %s284
        %p286 = pneg %p65
        %p287 = pneg %p62
        %s288 = smul.u32 16, %s23
        %s289 = smul.u32 2, %s22
        %p290 = scmp.lt.s32.totalorder %s20, 0
        %s291 = scalar_select %p290, %s20, 0
        %p292 = scmp.lt.s32.totalorder %s288, 47
        %s293 = scalar_select %p292, %s288, 47
        %p294 = scmp.lt.s32.totalorder %s289, 1
        %s295 = scalar_select %p294, %s289, 1
        %s296 = smul.addr %s293, 2
        %s297 = sadd.s32 %s295, %s296
        %s298 = smul.addr %s291, 96
        %s299 = sadd.s32 %s297, %s298
        %s300 = smul.addr %s299, 4
        %s301 = scalar_lea.vmem %s1, %s300
        %p302 = pneg %p95
        %p303 = pneg %p92
        %s304 = smul.u32 2, %s22
        %p305 = scmp.lt.s32.totalorder %s20, 0
        %s306 = scalar_select %p305, %s20, 0
        %p307 = scmp.lt.s32.totalorder %s304, 1
        %s308 = scalar_select %p307, %s304, 1
        %s309 = smul.addr %s306, 2
        %s310 = sadd.s32 %s308, %s309
        %s311 = scalar_lea.vmem %s2, %s310
        %p312 = pneg %p123
        %p313 = pneg %p120
        %p314 = pneg %p153
        %p315 = pneg %p150
        %s316 = smul.u32 4, %s21
        %s317 = smul.u32 2, %s22
        %p318 = scmp.lt.s32.totalorder %s20, 0
        %s319 = scalar_select %p318, %s20, 0
        %p320 = scmp.lt.s32.totalorder %s316, 3
        %s321 = scalar_select %p320, %s316, 3
        %p322 = scmp.lt.s32.totalorder %s317, 1
        %s323 = scalar_select %p322, %s317, 1
        %s324 = smul.addr %s321, 2
        %s325 = sadd.s32 %s323, %s324
        %s326 = smul.addr %s319, 8
        %s327 = sadd.s32 %s325, %s326
        %s328 = smul.addr %s327, 4
        %s329 = scalar_lea.vmem %s3, %s328
        %s330 = smul.u32 4, %s21
        %s331 = smul.u32 16, %s23
        %s332 = smul.u32 2, %s22
        %p333 = scmp.lt.s32.totalorder %s20, 0
        %s334 = scalar_select %p333, %s20, 0
        %p335 = scmp.lt.s32.totalorder %s331, 47
        %s336 = scalar_select %p335, %s331, 47
        %p337 = scmp.lt.s32.totalorder %s332, 1
        %s338 = scalar_select %p337, %s332, 1
        %s339 = smul.addr %s336, 2
        %s340 = sadd.s32 %s338, %s339
        %s341 = smul.addr %s334, 96
        %s342 = sadd.s32 %s340, %s341
        %s343 = smul.addr %s342, 4
        %s344 = scalar_lea.vmem %s1, %s343
        %s345 = smul.u32 16, %s23
        %s346 = smul.u32 2, %s22
        %s347 = smul.u32 2, %s22
        %p348 = scmp.lt.s32.totalorder %s20, 0
        %s349 = scalar_select %p348, %s20, 0
        %p350 = scmp.lt.s32.totalorder %s347, 1
        %s351 = scalar_select %p350, %s347, 1
        %s352 = smul.addr %s349, 2
        %s353 = sadd.s32 %s351, %s352
        %s354 = scalar_lea.vmem %s2, %s353
        %s355 = smul.u32 2, %s22
        %s356 = smul.u32 4, %s21
        %s357 = smul.u32 2, %s22
        %p358 = scmp.lt.s32.totalorder %s20, 0
        %s359 = scalar_select %p358, %s20, 0
        %p360 = scmp.lt.s32.totalorder %s356, 3
        %s361 = scalar_select %p360, %s356, 3
        %p362 = scmp.lt.s32.totalorder %s357, 1
        %s363 = scalar_select %p362, %s357, 1
        %s364 = smul.addr %s361, 2
        %s365 = sadd.s32 %s363, %s364
        %s366 = smul.addr %s359, 8
        %s367 = sadd.s32 %s365, %s366
        %s368 = smul.addr %s367, 4
        %s369 = scalar_lea.vmem %s3, %s368
        %s370 = smul.u32 4, %s21
        %s371 = smul.u32 2, %s22
        %p373 = scmp.eq.s32.totalorder %s23, 0
        // Predicated region
        $region74: #{video_vae_encoder_forward.10} parent=68 // pred_check
          %p374 = pneg %p373
        $region75: #{video_vae_encoder_forward.10} parent=68 // pred_check_branch
          %376 = sbr.rel (%p374) target = $region77
        $region76: #{video_vae_encoder_forward.10} parent=68 // pred_region
          %377 = vst [vmem:[#allocation2] sm:$0xff] 0.0
          %378 = vst [vmem:[#allocation2 + $0x8] sm:$0xff] 0.0
          %379 = vst [vmem:[#allocation2 + $0x10] sm:$0xff] 0.0
          %380 = vst [vmem:[#allocation2 + $0x18] sm:$0xff] 0.0
          %381 = vst [vmem:[#allocation2 + $0x20] sm:$0xff] 0.0
          %382 = vst [vmem:[#allocation2 + $0x28] sm:$0xff] 0.0
          %383 = vst [vmem:[#allocation2 + $0x30] sm:$0xff] 0.0
          %384 = vst [vmem:[#allocation2 + $0x38] sm:$0xff] 0.0
        $region77: #{video_vae_encoder_forward.10} parent=68 // pred_fallthru
          _
        %v385 = vld [vmem:[#allocation2] sm:$0xff]
        %v386 = vld [vmem:[#allocation2 + $0x8] sm:$0xff]
        %v387 = vld [vmem:[#allocation2 + $0x10] sm:$0xff]
        %v388 = vld [vmem:[#allocation2 + $0x18] sm:$0xff]
        %v389 = vld [vmem:[#allocation2 + $0x20] sm:$0xff]
        %v390 = vld [vmem:[#allocation2 + $0x28] sm:$0xff]
        %v391 = vld [vmem:[#allocation2 + $0x30] sm:$0xff]
        %v392 = vld [vmem:[#allocation2 + $0x38] sm:$0xff]
        %v393 = vld [vmem:[%s278] sm:$0xf]
        %v394 = vld [vmem:[%s278 + $0x4] sm:$0xf]
        %v395 = vld [vmem:[%s278 + $0x8] sm:$0xf]
        %v396 = vld [vmem:[%s278 + $0xc] sm:$0xf]
        %v397 = vld [vmem:[%s344] sm:$0xff]
        %v398 = vld [vmem:[%s344 + $0x8] sm:$0xff]
        %v399 = vld [vmem:[%s344 + $0x10] sm:$0xff]
        %v400 = vld [vmem:[%s344 + $0x18] sm:$0xff]
        %v401 = vld [vmem:[%s344 + $0x20] sm:$0xff]
        %v402 = vld [vmem:[%s344 + $0x28] sm:$0xff]
        %v403 = vld [vmem:[%s344 + $0x30] sm:$0xff]
        %v404 = vld [vmem:[%s344 + $0x38] sm:$0xff]
        %v405 = vld [vmem:[%s344 + $0x40] sm:$0xff]
        %v406 = vld [vmem:[%s344 + $0x48] sm:$0xff]
        %v407 = vld [vmem:[%s344 + $0x50] sm:$0xff]
        %v408 = vld [vmem:[%s344 + $0x58] sm:$0xff]
        %v409 = vld [vmem:[%s344 + $0x60] sm:$0xff]
        %v410 = vld [vmem:[%s344 + $0x68] sm:$0xff]
        %v411 = vld [vmem:[%s344 + $0x70] sm:$0xff]
        %v412 = vld [vmem:[%s344 + $0x78] sm:$0xff]
        %v417 = vunpack.c.l.b16 %v393
        %v418 = vunpack.c.l.b16 %v394
        %v419 = vunpack.c.l.b16 %v395
        %v420 = vunpack.c.l.b16 %v396
        %v421 = vpack.c.b16 %v418, %v417
        %v422 = vpack.c.b16 %v420, %v419
        %v441 = vunpack.c.l.b16 %v397
        %v442 = vunpack.c.h.b16 %v397
        %v443 = vunpack.c.l.b16 %v398
        %v444 = vunpack.c.h.b16 %v398
        %v445 = vunpack.c.l.b16 %v399
        %v446 = vunpack.c.h.b16 %v399
        %v447 = vunpack.c.l.b16 %v400
        %v448 = vunpack.c.h.b16 %v400
        %v449 = vunpack.c.l.b16 %v401
        %v450 = vunpack.c.h.b16 %v401
        %v451 = vunpack.c.l.b16 %v402
        %v452 = vunpack.c.h.b16 %v402
        %v453 = vunpack.c.l.b16 %v403
        %v454 = vunpack.c.h.b16 %v403
        %v455 = vunpack.c.l.b16 %v404
        %v456 = vunpack.c.h.b16 %v404
        %v457 = vunpack.c.l.b16 %v405
        %v458 = vunpack.c.h.b16 %v405
        %v459 = vunpack.c.l.b16 %v406
        %v460 = vunpack.c.h.b16 %v406
        %v461 = vunpack.c.l.b16 %v407
        %v462 = vunpack.c.h.b16 %v407
        %v463 = vunpack.c.l.b16 %v408
        %v464 = vunpack.c.h.b16 %v408
        %v465 = vunpack.c.l.b16 %v409
        %v466 = vunpack.c.h.b16 %v409
        %v467 = vunpack.c.l.b16 %v410
        %v468 = vunpack.c.h.b16 %v410
        %v469 = vunpack.c.l.b16 %v411
        %v470 = vunpack.c.h.b16 %v411
        %v471 = vunpack.c.l.b16 %v412
        %v472 = vunpack.c.h.b16 %v412
        %v473 = vpack.c.b16 %v443, %v441
        %v474 = vpack.c.b16 %v444, %v442
        %v475 = vpack.c.b16 %v447, %v445
        %v476 = vpack.c.b16 %v448, %v446
        %v477 = vpack.c.b16 %v451, %v449
        %v478 = vpack.c.b16 %v452, %v450
        %v479 = vpack.c.b16 %v455, %v453
        %v480 = vpack.c.b16 %v456, %v454
        %v481 = vpack.c.b16 %v459, %v457
        %v482 = vpack.c.b16 %v460, %v458
        %v483 = vpack.c.b16 %v463, %v461
        %v484 = vpack.c.b16 %v464, %v462
        %v485 = vpack.c.b16 %v467, %v465
        %v486 = vpack.c.b16 %v468, %v466
        %v487 = vpack.c.b16 %v471, %v469
        %v488 = vpack.c.b16 %v472, %v470
        %505 = vmatprep.subr.bf16.mxu0 %v474
        %506 = vmatpush1.bf16.msra.mxu0 %v473
        %507 = vmatprep.subr.bf16.mxu0 %v476
        %508 = vmatpush1.bf16.msra.mxu0 %v475
        %509 = vmatprep.subr.bf16.mxu0 %v478
        %510 = vmatpush1.bf16.msra.mxu0 %v477
        %511 = vmatprep.subr.bf16.mxu0 %v480
        %512 = vmatpush1.bf16.msra.mxu0 %v479
        %513 = vmatprep.subr.bf16.mxu0 %v482
        %514 = vmatpush1.bf16.msra.mxu0 %v481
        %515 = vmatprep.subr.bf16.mxu0 %v484
        %516 = vmatpush1.bf16.msra.mxu0 %v483
        %517 = vmatprep.subr.bf16.mxu0 %v486
        %518 = vmatpush1.bf16.msra.mxu0 %v485
        %519 = vmatprep.subr.bf16.mxu0 %v488
        %520 = vmatpush1.bf16.msra.mxu0 %v487
        %521 = vmatprep.subr.bf16.mxu0 0
        %522 = vmatpush1.bf16.msra.mxu0 0
        %523 = vmatprep.subr.bf16.mxu0 0
        %524 = vmatpush1.bf16.msra.mxu0 0
        %525 = vmatprep.subr.bf16.mxu0 0
        %526 = vmatpush1.bf16.msra.mxu0 0
        %527 = vmatprep.subr.bf16.mxu0 0
        %528 = vmatpush1.bf16.msra.mxu0 0
        %529 = vmatprep.subr.bf16.mxu0 0
        %530 = vmatpush1.bf16.msra.mxu0 0
        %531 = vmatprep.subr.bf16.mxu0 0
        %532 = vmatpush1.bf16.msra.mxu0 0
        %533 = vmatprep.subr.bf16.mxu0 0
        %534 = vmatpush1.bf16.msra.mxu0 0
        %535 = vmatprep.subr.bf16.mxu0 0
        %536 = vmatpush1.bf16.msra.mxu0 0
        %537 = vmatprep.mubr.bf16.mxu0 0
        %538 = vmatmul.mubr.bf16.gmra.mrb[0].mxu0 %v421
        %v539 = vpop.f32.mrb[0].mxu0
        %v540 = vadd.f32 0.0, %v539
        %v541 = vpop.f32.mrb[0].mxu0
        %v542 = vadd.f32 0.0, %v541
        %v543 = vpop.f32.mrb[0].mxu0
        %v544 = vadd.f32 0.0, %v543
        %v545 = vpop.f32.mrb[0].mxu0
        %v546 = vadd.f32 0.0, %v545
        %547 = vmatprep.mubr.bf16.mxu0 0
        %548 = vmatmul.mubr.bf16.gmra.mrb[0].mxu0 %v422
        %v549 = vpop.f32.mrb[0].mxu0
        %v550 = vadd.f32 0.0, %v549
        %v551 = vpop.f32.mrb[0].mxu0
        %v552 = vadd.f32 0.0, %v551
        %v553 = vpop.f32.mrb[0].mxu0
        %v554 = vadd.f32 0.0, %v553
        %v555 = vpop.f32.mrb[0].mxu0
        %v556 = vadd.f32 0.0, %v555
        %557 = vdwg.mxu0
        %v558 = vadd.f32 %v385, %v540
        %v559 = vadd.f32 %v386, %v542
        %v560 = vadd.f32 %v387, %v544
        %v561 = vadd.f32 %v388, %v546
        %v562 = vadd.f32 %v389, %v550
        %v563 = vadd.f32 %v390, %v552
        %v564 = vadd.f32 %v391, %v554
        %v565 = vadd.f32 %v392, %v556
        %566 = vst [vmem:[#allocation2] sm:$0xff] %v558
        %567 = vst [vmem:[#allocation2 + $0x8] sm:$0xff] %v559
        %568 = vst [vmem:[#allocation2 + $0x10] sm:$0xff] %v560
        %569 = vst [vmem:[#allocation2 + $0x18] sm:$0xff] %v561
        %570 = vst [vmem:[#allocation2 + $0x20] sm:$0xff] %v562
        %571 = vst [vmem:[#allocation2 + $0x28] sm:$0xff] %v563
        %572 = vst [vmem:[#allocation2 + $0x30] sm:$0xff] %v564
        %573 = vst [vmem:[#allocation2 + $0x38] sm:$0xff] %v565
        %p574 = scmp.eq.s32.totalorder %s23, 2
        // Predicated region
        $region78: #{video_vae_encoder_forward.10} parent=68 // pred_check
          %p575 = pneg %p574
        $region79: #{video_vae_encoder_forward.10} parent=68 // pred_check_branch
          %577 = sbr.rel (%p575) target = $region81
        $region80: #{video_vae_encoder_forward.10} parent=68 // pred_region
          %v578 = vld [vmem:[#allocation2] sm:$0xff]
          %v579 = vld [vmem:[#allocation2 + $0x8] sm:$0xff]
          %v580 = vld [vmem:[#allocation2 + $0x10] sm:$0xff]
          %v581 = vld [vmem:[#allocation2 + $0x18] sm:$0xff]
          %v582 = vld [vmem:[#allocation2 + $0x20] sm:$0xff]
          %v583 = vld [vmem:[#allocation2 + $0x28] sm:$0xff]
          %v584 = vld [vmem:[#allocation2 + $0x30] sm:$0xff]
          %v585 = vld [vmem:[#allocation2 + $0x38] sm:$0xff]
          %v586 = vld [vmem:[%s354] sm:$0x3]
          %v588 = vlaneseq
          %v589 = vshrl.u32 %v588, 7
          %v590 = vsub.s32 0, %v589
          %v591 = vrot.slane %v586, %v590
          %v592 = vlaneseq
          %v593 = vshrl.u32 %v592, 7
          %v594 = vsub.s32 1, %v593
          %v595 = vrot.slane %v586, %v594
          %v598 = vadd.f32 %v578, %v591
          %v599 = vadd.f32 %v579, %v595
          %v600 = vadd.f32 %v580, %v591
          %v601 = vadd.f32 %v581, %v595
          %v602 = vadd.f32 %v582, %v591
          %v603 = vadd.f32 %v583, %v595
          %v604 = vadd.f32 %v584, %v591
          %v605 = vadd.f32 %v585, %v595
          %v606 = vpack.c.bf16 %v600, %v598
          %v607 = vpack.c.bf16 %v601, %v599
          %v608 = vpack.c.bf16 %v604, %v602
          %v609 = vpack.c.bf16 %v605, %v603
          %v614 = vunpack.c.l.b16 %v606
          %v615 = vunpack.c.l.b16 %v607
          %v616 = vunpack.c.h.b16 %v606
          %v617 = vunpack.c.h.b16 %v607
          %v618 = vunpack.c.l.b16 %v608
          %v619 = vunpack.c.l.b16 %v609
          %v620 = vunpack.c.h.b16 %v608
          %v621 = vunpack.c.h.b16 %v609
          %v622 = vpack.c.b16 %v615, %v614
          %v623 = vpack.c.b16 %v617, %v616
          %v624 = vpack.c.b16 %v619, %v618
          %v625 = vpack.c.b16 %v621, %v620
          %630 = vst [vmem:[%s369] sm:$0xff] %v622
          %631 = vst [vmem:[%s369 + $0x8] sm:$0xff] %v623
          %632 = vst [vmem:[%s369 + $0x10] sm:$0xff] %v624
          %633 = vst [vmem:[%s369 + $0x18] sm:$0xff] %v625
        $region81: #{video_vae_encoder_forward.10} parent=68 // pred_fallthru
          _
        %s634 = smul.u32 4, %s21
        %s635 = smul.u32 2, %s22
        %p636 = scmp.lt.s32.totalorder %s20, 0
        %s637 = scalar_select %p636, %s20, 0
        %p638 = scmp.lt.s32.totalorder %s634, 3
        %s639 = scalar_select %p638, %s634, 3
        %p640 = scmp.lt.s32.totalorder %s635, 1
        %s641 = scalar_select %p640, %s635, 1
        %s642 = smul.addr %s639, 2
        %s643 = sadd.s32 %s641, %s642
        %s644 = smul.addr %s637, 8
        %s645 = sadd.s32 %s643, %s644
        %s646 = smul.addr %s645, 4
        %s647 = scalar_lea.vmem %s3, %s646
        // Predicated region
        $region82: #{video_vae_encoder_forward.10} parent=68 // pred_check
          %p648 = pneg %p150
        $region83: #{video_vae_encoder_forward.10} parent=68 // pred_check_branch
          %650 = sbr.rel (%p648) target = $region85
        $region84: #{video_vae_encoder_forward.10} parent=68 // pred_region
          %s651 = smul.u32 4, %s21
          %s652 = smul.u32 2, %s22
        $region85: #{video_vae_encoder_forward.10} parent=68 // pred_fallthru
          _
        // Predicated region
        $region86: #{video_vae_encoder_forward.10} parent=68 // pred_check
          %p653 = pneg %p150
        $region87: #{video_vae_encoder_forward.10} parent=68 // pred_check_branch
          %655 = sbr.rel (%p653) target = $region89
        $region88: #{video_vae_encoder_forward.10} parent=68 // pred_region
          %s656 = smul.u32 4, %s21
          %s657 = smul.u32 2, %s22
          %p658 = scmp.lt.s32.totalorder %s20, 0
          %s659 = scalar_select %p658, %s20, 0
          %p660 = scmp.lt.s32.totalorder %s656, 3
          %s661 = scalar_select %p660, %s656, 3
          %p662 = scmp.lt.s32.totalorder %s657, 1
          %s663 = scalar_select %p662, %s657, 1
          %s664 = smul.addr %s661, 2
          %s665 = sadd.s32 %s663, %s664
          %s666 = smul.addr %s659, 8
          %s667 = sadd.s32 %s665, %s666
          %s668 = smul.addr %s667, 4
          %s669 = scalar_lea.vmem %s3, %s668
        $region89: #{video_vae_encoder_forward.10} parent=68 // pred_fallthru
          _
      $region69: #{video_vae_encoder_forward.10} parent=5 // pred_fallthru
        _
      %p670 = scmp.le.s32.totalorder 2, %s9
      // Predicated region
      $region90: #{video_vae_encoder_forward.10} parent=5 // pred_check
        %p671 = pneg %p670
      $region91: #{video_vae_encoder_forward.10} parent=5 // pred_check_branch
        %673 = sbr.rel (%p671) target = $region93
      $region92: #{video_vae_encoder_forward.10} parent=5 // pred_region
        %s674 = ssub.s32 %s9, 2
      $region93: #{video_vae_encoder_forward.10} parent=5 // pred_fallthru
        _
    $region6: #{video_vae_encoder_forward.10} parent=1 // loop_footer
      %s13 = sadd.s32 1, %s9
    $region7: #{video_vae_encoder_forward.10} parent=1 // loop_footer_branch
      %8 = sbr.rel target = $region3
    $region8: #{video_vae_encoder_forward.10} parent=1 // loop_exit
      _

// kernel: video_vae_encoder_forward.11
$region0: #{video_vae_encoder_forward.11}
  #allocation0 [shape = 'u32[]', space=smem, size = 0x4, offset = 0x4, fixed_abs, tag = 'smem constant byte address 0x4 - core index']
  #allocation1 [shape = 'u32[144,128]{1,0:T(1,128)}', space=vmem, size = 0x12000, scoped, tag = 'internal scratch']
  #allocation2 [shape = 'f32[128,128]{1,0:T(8,128)}', space=vmem, size = 0x10000, scoped, tag = 'scratch operand']
  %s0 = inlined_call_operand.vmem [shape: bf16[4,128,128], index: 0, kind: input, shape index: {}]
  %s1 = inlined_call_operand.vmem [shape: bf16[4,128,128], index: 1, kind: input, shape index: {}]
  %s2 = inlined_call_operand.vmem [shape: f32[4,1,128], index: 2, kind: input, shape index: {}]
  %s3 = inlined_call_operand.vmem [shape: bf16[4,128,128], index: 3, kind: output, shape index: {}]
  %s4 = sld [smem:[#allocation0]]
  $region53: #{video_vae_encoder_forward.11} parent=0
    _
  %s6 = ssub.s32 1, %s4
  %s7 = scalar_select 0, %s6, %s4
  loop: start=0, step=1, limit=6
  $region2: #{video_vae_encoder_forward.11} parent=0 // loop_pre_header
    _
  $region3: #{video_vae_encoder_forward.11} parent=0 // loop_header
    %s9 = sphi 0, %s13
    %p10 = scmp.ge.s32.totalorder %s9, 6
    %s16 = sphi 0, %s42
    %s17 = sphi 0, %s38
    %s18 = sphi 0, %s34
    %s19 = sphi 0, %s30
    %s20 = sphi 0, %s16
    %s21 = sphi 0, %s17
    %s22 = sphi 0, %s18
    %s23 = sphi 0, %s19
    %s24 = sphi 0, %s20
    %s25 = sphi 0, %s21
    %s26 = sphi 0, %s22
    %s27 = sphi 0, %s23
    %s49 = sphi 0, %s51
    %s52 = sphi 0, %s49
    %s53 = sphi 0, %s52
    %s69 = sphi 0, %s53
    %s79 = sphi 0, %s81
    %s82 = sphi 0, %s79
    %s83 = sphi 0, %s82
    %s99 = sphi 0, %s83
    %s107 = sphi 0, %s109
    %s110 = sphi 0, %s107
    %s111 = sphi 0, %s110
    %s127 = sphi 0, %s111
    %s137 = sphi 0, %s139
    %s140 = sphi 0, %s137
    %s141 = sphi 0, %s140
    %s157 = sphi 0, %s141
  $region4: #{video_vae_encoder_forward.11} parent=0 // loop_header_branch
    %12 = sbr.rel (%p10) target = $region8
  $region5: #{video_vae_encoder_forward.11} parent=0 // loop_body
    %s14 = ssub.s32 %s9, 1
    %s15 = ssub.s32 %s9, 2
    %s28 = sadd.s32 1, %s19
    %p29 = scmp.ge.s32.totalorder %s28, 1
    %s30 = scalar_select %p29, 0, %s28
    %s31 = sadd.s32 1, %s18
    %s32 = scalar_select %p29, %s31, %s18
    %p33 = scmp.ge.s32.totalorder %s32, 1
    %s34 = scalar_select %p33, 0, %s32
    %s35 = sadd.s32 1, %s17
    %s36 = scalar_select %p33, %s35, %s17
    %p37 = scmp.ge.s32.totalorder %s36, 1
    %s38 = scalar_select %p37, 0, %s36
    %s39 = sadd.s32 1, %s16
    %s40 = scalar_select %p37, %s39, %s16
    %p41 = scmp.ge.s32.totalorder %s40, 4
    %s42 = scalar_select %p41, 0, %s40
    %s43 = ssub.s32 %s16, %s42
    %s44 = ssub.s32 %s17, %s38
    %s45 = sor.u32 %s43, %s44
    %s46 = ssub.s32 %s19, %s30
    %s47 = sor.u32 %s45, %s46
    %p48 = scmp.eq.s32.totalorder %s47, 0
    %s50 = sadd.s32 %s49, 1
    %s51 = scalar_select %p48, %s49, %s50
    %p54 = pneg %p48
    %p55 = scmp.eq.s32.totalorder %s9, 3
    %p56 = por %p54, %p55
    %p57 = scmp.ne.s32.totalorder %s49, %s52
    %p58 = scmp.eq.s32.totalorder %s9, 0
    %p59 = por %p57, %p58
    %p60 = scmp.ne.s32.totalorder %s49, %s52
    %p61 = scmp.eq.s32.totalorder %s14, 3
    %p62 = por %p60, %p61
    %p63 = scmp.ne.s32.totalorder %s52, %s53
    %p64 = scmp.eq.s32.totalorder %s14, 0
    %p65 = por %p63, %p64
    %p66 = scmp.ne.s32.totalorder %s52, %s53
    %p67 = scmp.eq.s32.totalorder %s15, 3
    %p68 = por %p66, %p67
    %p70 = scmp.ne.s32.totalorder %s53, %s69
    %p71 = scmp.eq.s32.totalorder %s15, 0
    %p72 = por %p70, %p71
    %s73 = ssub.s32 %s16, %s42
    %s74 = ssub.s32 %s19, %s30
    %s75 = sor.u32 %s73, %s74
    %s76 = ssub.s32 %s18, %s34
    %s77 = sor.u32 %s75, %s76
    %p78 = scmp.eq.s32.totalorder %s77, 0
    %s80 = sadd.s32 %s79, 1
    %s81 = scalar_select %p78, %s79, %s80
    %p84 = pneg %p78
    %p85 = scmp.eq.s32.totalorder %s9, 3
    %p86 = por %p84, %p85
    %p87 = scmp.ne.s32.totalorder %s79, %s82
    %p88 = scmp.eq.s32.totalorder %s9, 0
    %p89 = por %p87, %p88
    %p90 = scmp.ne.s32.totalorder %s79, %s82
    %p91 = scmp.eq.s32.totalorder %s14, 3
    %p92 = por %p90, %p91
    %p93 = scmp.ne.s32.totalorder %s82, %s83
    %p94 = scmp.eq.s32.totalorder %s14, 0
    %p95 = por %p93, %p94
    %p96 = scmp.ne.s32.totalorder %s82, %s83
    %p97 = scmp.eq.s32.totalorder %s15, 3
    %p98 = por %p96, %p97
    %p100 = scmp.ne.s32.totalorder %s83, %s99
    %p101 = scmp.eq.s32.totalorder %s15, 0
    %p102 = por %p100, %p101
    %s103 = ssub.s32 %s16, %s42
    %s104 = ssub.s32 %s18, %s34
    %s105 = sor.u32 %s103, %s104
    %p106 = scmp.eq.s32.totalorder %s105, 0
    %s108 = sadd.s32 %s107, 1
    %s109 = scalar_select %p106, %s107, %s108
    %p112 = pneg %p106
    %p113 = scmp.eq.s32.totalorder %s9, 3
    %p114 = por %p112, %p113
    %p115 = scmp.ne.s32.totalorder %s107, %s110
    %p116 = scmp.eq.s32.totalorder %s9, 0
    %p117 = por %p115, %p116
    %p118 = scmp.ne.s32.totalorder %s107, %s110
    %p119 = scmp.eq.s32.totalorder %s14, 3
    %p120 = por %p118, %p119
    %p121 = scmp.ne.s32.totalorder %s110, %s111
    %p122 = scmp.eq.s32.totalorder %s14, 0
    %p123 = por %p121, %p122
    %p124 = scmp.ne.s32.totalorder %s110, %s111
    %p125 = scmp.eq.s32.totalorder %s15, 3
    %p126 = por %p124, %p125
    %p128 = scmp.ne.s32.totalorder %s111, %s127
    %p129 = scmp.eq.s32.totalorder %s15, 0
    %p130 = por %p128, %p129
    %s131 = ssub.s32 %s16, %s42
    %s132 = ssub.s32 %s17, %s38
    %s133 = sor.u32 %s131, %s132
    %s134 = ssub.s32 %s18, %s34
    %s135 = sor.u32 %s133, %s134
    %p136 = scmp.eq.s32.totalorder %s135, 0
    %s138 = sadd.s32 %s137, 1
    %s139 = scalar_select %p136, %s137, %s138
    %p142 = pneg %p136
    %p143 = scmp.eq.s32.totalorder %s9, 3
    %p144 = por %p142, %p143
    %p145 = scmp.ne.s32.totalorder %s137, %s140
    %p146 = scmp.eq.s32.totalorder %s9, 0
    %p147 = por %p145, %p146
    %p148 = scmp.ne.s32.totalorder %s137, %s140
    %p149 = scmp.eq.s32.totalorder %s14, 3
    %p150 = por %p148, %p149
    %p151 = scmp.ne.s32.totalorder %s140, %s141
    %p152 = scmp.eq.s32.totalorder %s14, 0
    %p153 = por %p151, %p152
    %p154 = scmp.ne.s32.totalorder %s140, %s141
    %p155 = scmp.eq.s32.totalorder %s15, 3
    %p156 = por %p154, %p155
    %p158 = scmp.ne.s32.totalorder %s141, %s157
    %p159 = scmp.eq.s32.totalorder %s15, 0
    %p160 = por %p158, %p159
    %p161 = scmp.le.s32.totalorder 1, %s9
    %p162 = scmp.lt.s32.totalorder %s9, 5
    %p163 = pnand %p161, %p162
    %p164 = pneg %p163
    // Predicated region
    $region9: #{video_vae_encoder_forward.11} parent=5 // pred_check
      _
    $region10: #{video_vae_encoder_forward.11} parent=5 // pred_check_branch
      %166 = sbr.rel (%p163) target = $region12
    $region11: #{video_vae_encoder_forward.11} parent=5 // pred_region
      %s167 = ssub.s32 %s9, 1
    $region12: #{video_vae_encoder_forward.11} parent=5 // pred_fallthru
      _
    %p168 = scmp.lt.s32.totalorder %s9, 4
    // Predicated region
    $region13: #{video_vae_encoder_forward.11} parent=5 // pred_check
      %p169 = pneg %p168
    $region14: #{video_vae_encoder_forward.11} parent=5 // pred_check_branch
      %171 = sbr.rel (%p169) target = $region16
    $region15: #{video_vae_encoder_forward.11} parent=5 // pred_region
      // Predicated region
      $region17: #{video_vae_encoder_forward.11} parent=15 // pred_check
        %p172 = pneg %p59
      $region18: #{video_vae_encoder_forward.11} parent=15 // pred_check_branch
        %174 = sbr.rel (%p172) target = $region20
      $region19: #{video_vae_encoder_forward.11} parent=15 // pred_region
        %s175 = smul.u32 16, %s17
        %p176 = scmp.lt.s32.totalorder %s16, 3
        %s177 = scalar_select %p176, %s16, 3
        %p178 = scmp.lt.s32.totalorder %s175, 15
        %s179 = scalar_select %p178, %s175, 15
        %p180 = scmp.lt.s32.totalorder %s19, 0
        %s181 = scalar_select %p180, %s19, 0
        %s182 = sadd.s32 %s181, %s179
        %s183 = smul.addr %s177, 16
        %s184 = sadd.s32 %s182, %s183
        %s185 = smul.addr %s184, 4
        %s186 = scalar_lea.vmem %s0, %s185
        %s187 = smul.u32 16, %s17
      $region20: #{video_vae_encoder_forward.11} parent=15 // pred_fallthru
        _
      // Predicated region
      $region21: #{video_vae_encoder_forward.11} parent=15 // pred_check
        %p188 = pneg %p89
      $region22: #{video_vae_encoder_forward.11} parent=15 // pred_check_branch
        %190 = sbr.rel (%p188) target = $region24
      $region23: #{video_vae_encoder_forward.11} parent=15 // pred_region
        %s191 = smul.u32 16, %s19
        %p192 = scmp.lt.s32.totalorder %s16, 3
        %s193 = scalar_select %p192, %s16, 3
        %p194 = scmp.lt.s32.totalorder %s191, 15
        %s195 = scalar_select %p194, %s191, 15
        %p196 = scmp.lt.s32.totalorder %s18, 0
        %s197 = scalar_select %p196, %s18, 0
        %s198 = sadd.s32 %s197, %s195
        %s199 = smul.addr %s193, 16
        %s200 = sadd.s32 %s198, %s199
        %s201 = smul.addr %s200, 4
        %s202 = scalar_lea.vmem %s1, %s201
        %s203 = smul.u32 16, %s19
      $region24: #{video_vae_encoder_forward.11} parent=15 // pred_fallthru
        _
      // Predicated region
      $region25: #{video_vae_encoder_forward.11} parent=15 // pred_check
        %p204 = pneg %p117
      $region26: #{video_vae_encoder_forward.11} parent=15 // pred_check_branch
        %206 = sbr.rel (%p204) target = $region28
      $region27: #{video_vae_encoder_forward.11} parent=15 // pred_region
        %p207 = scmp.lt.s32.totalorder %s16, 3
        %s208 = scalar_select %p207, %s16, 3
        %p209 = scmp.lt.s32.totalorder %s18, 0
        %s210 = scalar_select %p209, %s18, 0
        %s211 = sadd.s32 %s210, %s208
        %s212 = scalar_lea.vmem %s2, %s211
      $region28: #{video_vae_encoder_forward.11} parent=15 // pred_fallthru
        _
    $region16: #{video_vae_encoder_forward.11} parent=5 // pred_fallthru
      _
    %p213 = scmp.le.s32.totalorder 1, %s9
    %p214 = scmp.lt.s32.totalorder %s9, 5
    %p215 = pnand %p213, %p214
    %p216 = pneg %p215
    // Predicated region
    $region29: #{video_vae_encoder_forward.11} parent=5 // pred_check
      _
    $region30: #{video_vae_encoder_forward.11} parent=5 // pred_check_branch
      %218 = sbr.rel (%p215) target = $region32
    $region31: #{video_vae_encoder_forward.11} parent=5 // pred_region
      %s219 = ssub.s32 %s9, 1
      %s220 = smul.u32 16, %s21
      %p221 = scmp.lt.s32.totalorder %s20, 3
      %s222 = scalar_select %p221, %s20, 3
      %p223 = scmp.lt.s32.totalorder %s220, 15
      %s224 = scalar_select %p223, %s220, 15
      %p225 = scmp.lt.s32.totalorder %s23, 0
      %s226 = scalar_select %p225, %s23, 0
      %s227 = sadd.s32 %s226, %s224
      %s228 = smul.addr %s222, 16
      %s229 = sadd.s32 %s227, %s228
      %s230 = smul.addr %s229, 4
      %s231 = scalar_lea.vmem %s0, %s230
      %p232 = pneg %p65
      %p233 = pneg %p62
      %s234 = smul.u32 16, %s23
      %p235 = scmp.lt.s32.totalorder %s20, 3
      %s236 = scalar_select %p235, %s20, 3
      %p237 = scmp.lt.s32.totalorder %s234, 15
      %s238 = scalar_select %p237, %s234, 15
      %p239 = scmp.lt.s32.totalorder %s22, 0
      %s240 = scalar_select %p239, %s22, 0
      %s241 = sadd.s32 %s240, %s238
      %s242 = smul.addr %s236, 16
      %s243 = sadd.s32 %s241, %s242
      %s244 = smul.addr %s243, 4
      %s245 = scalar_lea.vmem %s1, %s244
      %p246 = pneg %p95
      %p247 = pneg %p92
      %p248 = scmp.lt.s32.totalorder %s20, 3
      %s249 = scalar_select %p248, %s20, 3
      %p250 = scmp.lt.s32.totalorder %s22, 0
      %s251 = scalar_select %p250, %s22, 0
      %s252 = sadd.s32 %s251, %s249
      %s253 = scalar_lea.vmem %s2, %s252
      %p254 = pneg %p123
      %p255 = pneg %p120
      %p256 = pneg %p153
      %p257 = pneg %p150
      %s258 = smul.u32 16, %s21
      %p259 = scmp.lt.s32.totalorder %s20, 3
      %s260 = scalar_select %p259, %s20, 3
      %p261 = scmp.lt.s32.totalorder %s258, 15
      %s262 = scalar_select %p261, %s258, 15
      %p263 = scmp.lt.s32.totalorder %s22, 0
      %s264 = scalar_select %p263, %s22, 0
      %s265 = sadd.s32 %s264, %s262
      %s266 = smul.addr %s260, 16
      %s267 = sadd.s32 %s265, %s266
      %s268 = smul.addr %s267, 4
      %s269 = scalar_lea.vmem %s3, %s268
      %s270 = smul.u32 16, %s21
      %p271 = scmp.lt.s32.totalorder %s20, 3
      %s272 = scalar_select %p271, %s20, 3
      %p273 = scmp.lt.s32.totalorder %s270, 15
      %s274 = scalar_select %p273, %s270, 15
      %p275 = scmp.lt.s32.totalorder %s23, 0
      %s276 = scalar_select %p275, %s23, 0
      %s277 = sadd.s32 %s276, %s274
      %s278 = smul.addr %s272, 16
      %s279 = sadd.s32 %s277, %s278
      %s280 = smul.addr %s279, 4
      %s281 = scalar_lea.vmem %s0, %s280
      %s282 = smul.u32 16, %s21
      %s283 = smul.u32 16, %s23
      %p284 = scmp.lt.s32.totalorder %s20, 3
      %s285 = scalar_select %p284, %s20, 3
      %p286 = scmp.lt.s32.totalorder %s283, 15
      %s287 = scalar_select %p286, %s283, 15
      %p288 = scmp.lt.s32.totalorder %s22, 0
      %s289 = scalar_select %p288, %s22, 0
      %s290 = sadd.s32 %s289, %s287
      %s291 = smul.addr %s285, 16
      %s292 = sadd.s32 %s290, %s291
      %s293 = smul.addr %s292, 4
      %s294 = scalar_lea.vmem %s1, %s293
      %s295 = smul.u32 16, %s23
      %p296 = scmp.lt.s32.totalorder %s20, 3
      %s297 = scalar_select %p296, %s20, 3
      %p298 = scmp.lt.s32.totalorder %s22, 0
      %s299 = scalar_select %p298, %s22, 0
      %s300 = sadd.s32 %s299, %s297
      %s301 = scalar_lea.vmem %s2, %s300
      %s302 = smul.u32 16, %s21
      %p303 = scmp.lt.s32.totalorder %s20, 3
      %s304 = scalar_select %p303, %s20, 3
      %p305 = scmp.lt.s32.totalorder %s302, 15
      %s306 = scalar_select %p305, %s302, 15
      %p307 = scmp.lt.s32.totalorder %s22, 0
      %s308 = scalar_select %p307, %s22, 0
      %s309 = sadd.s32 %s308, %s306
      %s310 = smul.addr %s304, 16
      %s311 = sadd.s32 %s309, %s310
      %s312 = smul.addr %s311, 4
      %s313 = scalar_lea.vmem %s3, %s312
      %s314 = smul.u32 16, %s21
      %p316 = scmp.eq.s32.totalorder %s23, 0
      // Predicated region
      $region33: #{video_vae_encoder_forward.11} parent=31 // pred_check
        %p317 = pneg %p316
      $region34: #{video_vae_encoder_forward.11} parent=31 // pred_check_branch
        %319 = sbr.rel (%p317) target = $region36
      $region35: #{video_vae_encoder_forward.11} parent=31 // pred_region
        %320 = vst [vmem:[#allocation2] sm:$0xff] 0.0
        %321 = vst [vmem:[#allocation2 + $0x8] sm:$0xff] 0.0
        %322 = vst [vmem:[#allocation2 + $0x10] sm:$0xff] 0.0
        %323 = vst [vmem:[#allocation2 + $0x18] sm:$0xff] 0.0
        %324 = vst [vmem:[#allocation2 + $0x20] sm:$0xff] 0.0
        %325 = vst [vmem:[#allocation2 + $0x28] sm:$0xff] 0.0
        %326 = vst [vmem:[#allocation2 + $0x30] sm:$0xff] 0.0
        %327 = vst [vmem:[#allocation2 + $0x38] sm:$0xff] 0.0
        %328 = vst [vmem:[#allocation2 + $0x40] sm:$0xff] 0.0
        %329 = vst [vmem:[#allocation2 + $0x48] sm:$0xff] 0.0
        %330 = vst [vmem:[#allocation2 + $0x50] sm:$0xff] 0.0
        %331 = vst [vmem:[#allocation2 + $0x58] sm:$0xff] 0.0
        %332 = vst [vmem:[#allocation2 + $0x60] sm:$0xff] 0.0
        %333 = vst [vmem:[#allocation2 + $0x68] sm:$0xff] 0.0
        %334 = vst [vmem:[#allocation2 + $0x70] sm:$0xff] 0.0
        %335 = vst [vmem:[#allocation2 + $0x78] sm:$0xff] 0.0
      $region36: #{video_vae_encoder_forward.11} parent=31 // pred_fallthru
        _
      %v336 = vld [vmem:[#allocation2] sm:$0xff]
      %v337 = vld [vmem:[#allocation2 + $0x8] sm:$0xff]
      %v338 = vld [vmem:[#allocation2 + $0x10] sm:$0xff]
      %v339 = vld [vmem:[#allocation2 + $0x18] sm:$0xff]
      %v340 = vld [vmem:[#allocation2 + $0x20] sm:$0xff]
      %v341 = vld [vmem:[#allocation2 + $0x28] sm:$0xff]
      %v342 = vld [vmem:[#allocation2 + $0x30] sm:$0xff]
      %v343 = vld [vmem:[#allocation2 + $0x38] sm:$0xff]
      %v344 = vld [vmem:[#allocation2 + $0x40] sm:$0xff]
      %v345 = vld [vmem:[#allocation2 + $0x48] sm:$0xff]
      %v346 = vld [vmem:[#allocation2 + $0x50] sm:$0xff]
      %v347 = vld [vmem:[#allocation2 + $0x58] sm:$0xff]
      %v348 = vld [vmem:[#allocation2 + $0x60] sm:$0xff]
      %v349 = vld [vmem:[#allocation2 + $0x68] sm:$0xff]
      %v350 = vld [vmem:[#allocation2 + $0x70] sm:$0xff]
      %v351 = vld [vmem:[#allocation2 + $0x78] sm:$0xff]
      %v352 = vld [vmem:[%s281] sm:$0xf]
      %v353 = vld [vmem:[%s281 + $0x4] sm:$0xf]
      %v354 = vld [vmem:[%s281 + $0x8] sm:$0xf]
      %v355 = vld [vmem:[%s281 + $0xc] sm:$0xf]
      %v356 = vld [vmem:[%s281 + $0x10] sm:$0xf]
      %v357 = vld [vmem:[%s281 + $0x14] sm:$0xf]
      %v358 = vld [vmem:[%s281 + $0x18] sm:$0xf]
      %v359 = vld [vmem:[%s281 + $0x1c] sm:$0xf]
      %v360 = vld [vmem:[%s281 + $0x20] sm:$0xf]
      %v361 = vld [vmem:[%s281 + $0x24] sm:$0xf]
      %v362 = vld [vmem:[%s281 + $0x28] sm:$0xf]
      %v363 = vld [vmem:[%s281 + $0x2c] sm:$0xf]
      %v364 = vld [vmem:[%s281 + $0x30] sm:$0xf]
      %v365 = vld [vmem:[%s281 + $0x34] sm:$0xf]
      %v366 = vld [vmem:[%s281 + $0x38] sm:$0xf]
      %v367 = vld [vmem:[%s281 + $0x3c] sm:$0xf]
      %v368 = vld [vmem:[%s294] sm:$0xf]
      %v369 = vld [vmem:[%s294 + $0x4] sm:$0xf]
      %v370 = vld [vmem:[%s294 + $0x8] sm:$0xf]
      %v371 = vld [vmem:[%s294 + $0xc] sm:$0xf]
      %v372 = vld [vmem:[%s294 + $0x10] sm:$0xf]
      %v373 = vld [vmem:[%s294 + $0x14] sm:$0xf]
      %v374 = vld [vmem:[%s294 + $0x18] sm:$0xf]
      %v375 = vld [vmem:[%s294 + $0x1c] sm:$0xf]
      %v376 = vld [vmem:[%s294 + $0x20] sm:$0xf]
      %v377 = vld [vmem:[%s294 + $0x24] sm:$0xf]
      %v378 = vld [vmem:[%s294 + $0x28] sm:$0xf]
      %v379 = vld [vmem:[%s294 + $0x2c] sm:$0xf]
      %v380 = vld [vmem:[%s294 + $0x30] sm:$0xf]
      %v381 = vld [vmem:[%s294 + $0x34] sm:$0xf]
      %v382 = vld [vmem:[%s294 + $0x38] sm:$0xf]
      %v383 = vld [vmem:[%s294 + $0x3c] sm:$0xf]
      %v400 = vunpack.c.l.b16 %v352
      %v401 = vunpack.c.l.b16 %v353
      %v402 = vunpack.c.l.b16 %v354
      %v403 = vunpack.c.l.b16 %v355
      %v404 = vunpack.c.l.b16 %v356
      %v405 = vunpack.c.l.b16 %v357
      %v406 = vunpack.c.l.b16 %v358
      %v407 = vunpack.c.l.b16 %v359
      %v408 = vunpack.c.l.b16 %v360
      %v409 = vunpack.c.l.b16 %v361
      %v410 = vunpack.c.l.b16 %v362
      %v411 = vunpack.c.l.b16 %v363
      %v412 = vunpack.c.l.b16 %v364
      %v413 = vunpack.c.l.b16 %v365
      %v414 = vunpack.c.l.b16 %v366
      %v415 = vunpack.c.l.b16 %v367
      %v416 = vpack.c.b16 %v401, %v400
      %v417 = vpack.c.b16 %v403, %v402
      %v418 = vpack.c.b16 %v405, %v404
      %v419 = vpack.c.b16 %v407, %v406
      %v420 = vpack.c.b16 %v409, %v408
      %v421 = vpack.c.b16 %v411, %v410
      %v422 = vpack.c.b16 %v413, %v412
      %v423 = vpack.c.b16 %v415, %v414
      %v448 = vunpack.c.l.b16 %v368
      %v449 = vunpack.c.l.b16 %v369
      %v450 = vunpack.c.l.b16 %v370
      %v451 = vunpack.c.l.b16 %v371
      %v452 = vunpack.c.l.b16 %v372
      %v453 = vunpack.c.l.b16 %v373
      %v454 = vunpack.c.l.b16 %v374
      %v455 = vunpack.c.l.b16 %v375
      %v456 = vunpack.c.l.b16 %v376
      %v457 = vunpack.c.l.b16 %v377
      %v458 = vunpack.c.l.b16 %v378
      %v459 = vunpack.c.l.b16 %v379
      %v460 = vunpack.c.l.b16 %v380
      %v461 = vunpack.c.l.b16 %v381
      %v462 = vunpack.c.l.b16 %v382
      %v463 = vunpack.c.l.b16 %v383
      %v464 = vpack.c.b16 %v449, %v448
      %v465 = vpack.c.b16 %v451, %v450
      %v466 = vpack.c.b16 %v453, %v452
      %v467 = vpack.c.b16 %v455, %v454
      %v468 = vpack.c.b16 %v457, %v456
      %v469 = vpack.c.b16 %v459, %v458
      %v470 = vpack.c.b16 %v461, %v460
      %v471 = vpack.c.b16 %v463, %v462
      %480 = vmatprep.subr.bf16.mxu0 0
      %481 = vmatpush1.bf16.msra.mxu0 %v464
      %482 = vmatprep.subr.bf16.mxu0 0
      %483 = vmatpush1.bf16.msra.mxu0 %v465
      %484 = vmatprep.subr.bf16.mxu0 0
      %485 = vmatpush1.bf16.msra.mxu0 %v466
      %486 = vmatprep.subr.bf16.mxu0 0
      %487 = vmatpush1.bf16.msra.mxu0 %v467
      %488 = vmatprep.subr.bf16.mxu0 0
      %489 = vmatpush1.bf16.msra.mxu0 %v468
      %490 = vmatprep.subr.bf16.mxu0 0
      %491 = vmatpush1.bf16.msra.mxu0 %v469
      %492 = vmatprep.subr.bf16.mxu0 0
      %493 = vmatpush1.bf16.msra.mxu0 %v470
      %494 = vmatprep.subr.bf16.mxu0 0
      %495 = vmatpush1.bf16.msra.mxu0 %v471
      %496 = vmatprep.subr.bf16.mxu0 0
      %497 = vmatpush1.bf16.msra.mxu0 0
      %498 = vmatprep.subr.bf16.mxu0 0
      %499 = vmatpush1.bf16.msra.mxu0 0
      %500 = vmatprep.subr.bf16.mxu0 0
      %501 = vmatpush1.bf16.msra.mxu0 0
      %502 = vmatprep.subr.bf16.mxu0 0
      %503 = vmatpush1.bf16.msra.mxu0 0
      %504 = vmatprep.subr.bf16.mxu0 0
      %505 = vmatpush1.bf16.msra.mxu0 0
      %506 = vmatprep.subr.bf16.mxu0 0
      %507 = vmatpush1.bf16.msra.mxu0 0
      %508 = vmatprep.subr.bf16.mxu0 0
      %509 = vmatpush1.bf16.msra.mxu0 0
      %510 = vmatprep.subr.bf16.mxu0 0
      %511 = vmatpush1.bf16.msra.mxu0 0
      %512 = vmatprep.mubr.bf16.mxu0 0
      %513 = vmatmul.mubr.bf16.gmra.mrb[0].mxu0 %v416
      %v514 = vpop.f32.mrb[0].mxu0
      %v515 = vadd.f32 0.0, %v514
      %v516 = vpop.f32.mrb[0].mxu0
      %v517 = vpop.f32.mrb[0].mxu0
      %v518 = vadd.f32 0.0, %v517
      %v519 = vpop.f32.mrb[0].mxu0
      %520 = vmatprep.mubr.bf16.mxu0 0
      %521 = vmatmul.mubr.bf16.gmra.mrb[0].mxu0 %v417
      %v522 = vpop.f32.mrb[0].mxu0
      %v523 = vadd.f32 0.0, %v522
      %v524 = vpop.f32.mrb[0].mxu0
      %v525 = vpop.f32.mrb[0].mxu0
      %v526 = vadd.f32 0.0, %v525
      %v527 = vpop.f32.mrb[0].mxu0
      %528 = vmatprep.mubr.bf16.mxu0 0
      %529 = vmatmul.mubr.bf16.gmra.mrb[0].mxu0 %v418
      %v530 = vpop.f32.mrb[0].mxu0
      %v531 = vadd.f32 0.0, %v530
      %v532 = vpop.f32.mrb[0].mxu0
      %v533 = vpop.f32.mrb[0].mxu0
      %v534 = vadd.f32 0.0, %v533
      %v535 = vpop.f32.mrb[0].mxu0
      %536 = vmatprep.mubr.bf16.mxu0 0
      %537 = vmatmul.mubr.bf16.gmra.mrb[0].mxu0 %v419
      %v538 = vpop.f32.mrb[0].mxu0
      %v539 = vadd.f32 0.0, %v538
      %v540 = vpop.f32.mrb[0].mxu0
      %v541 = vpop.f32.mrb[0].mxu0
      %v542 = vadd.f32 0.0, %v541
      %v543 = vpop.f32.mrb[0].mxu0
      %544 = vmatprep.mubr.bf16.mxu0 0
      %545 = vmatmul.mubr.bf16.gmra.mrb[0].mxu0 %v420
      %v546 = vpop.f32.mrb[0].mxu0
      %v547 = vadd.f32 0.0, %v546
      %v548 = vpop.f32.mrb[0].mxu0
      %v549 = vpop.f32.mrb[0].mxu0
      %v550 = vadd.f32 0.0, %v549
      %v551 = vpop.f32.mrb[0].mxu0
      %552 = vmatprep.mubr.bf16.mxu0 0
      %553 = vmatmul.mubr.bf16.gmra.mrb[0].mxu0 %v421
      %v554 = vpop.f32.mrb[0].mxu0
      %v555 = vadd.f32 0.0, %v554
      %v556 = vpop.f32.mrb[0].mxu0
      %v557 = vpop.f32.mrb[0].mxu0
      %v558 = vadd.f32 0.0, %v557
      %v559 = vpop.f32.mrb[0].mxu0
      %560 = vmatprep.mubr.bf16.mxu0 0
      %561 = vmatmul.mubr.bf16.gmra.mrb[0].mxu0 %v422
      %v562 = vpop.f32.mrb[0].mxu0
      %v563 = vadd.f32 0.0, %v562
      %v564 = vpop.f32.mrb[0].mxu0
      %v565 = vpop.f32.mrb[0].mxu0
      %v566 = vadd.f32 0.0, %v565
      %v567 = vpop.f32.mrb[0].mxu0
      %568 = vmatprep.mubr.bf16.mxu0 0
      %569 = vmatmul.mubr.bf16.gmra.mrb[0].mxu0 %v423
      %v570 = vpop.f32.mrb[0].mxu0
      %v571 = vadd.f32 0.0, %v570
      %v572 = vpop.f32.mrb[0].mxu0
      %v573 = vpop.f32.mrb[0].mxu0
      %v574 = vadd.f32 0.0, %v573
      %v575 = vpop.f32.mrb[0].mxu0
      %576 = vdwg.mxu0
      %v577 = vadd.f32 %v336, %v515
      %v578 = vadd.f32 %v337, %v518
      %v579 = vadd.f32 %v338, %v523
      %v580 = vadd.f32 %v339, %v526
      %v581 = vadd.f32 %v340, %v531
      %v582 = vadd.f32 %v341, %v534
      %v583 = vadd.f32 %v342, %v539
      %v584 = vadd.f32 %v343, %v542
      %v585 = vadd.f32 %v344, %v547
      %v586 = vadd.f32 %v345, %v550
      %v587 = vadd.f32 %v346, %v555
      %v588 = vadd.f32 %v347, %v558
      %v589 = vadd.f32 %v348, %v563
      %v590 = vadd.f32 %v349, %v566
      %v591 = vadd.f32 %v350, %v571
      %v592 = vadd.f32 %v351, %v574
      %593 = vst [vmem:[#allocation2] sm:$0xff] %v577
      %594 = vst [vmem:[#allocation2 + $0x8] sm:$0xff] %v578
      %595 = vst [vmem:[#allocation2 + $0x10] sm:$0xff] %v579
      %596 = vst [vmem:[#allocation2 + $0x18] sm:$0xff] %v580
      %597 = vst [vmem:[#allocation2 + $0x20] sm:$0xff] %v581
      %598 = vst [vmem:[#allocation2 + $0x28] sm:$0xff] %v582
      %599 = vst [vmem:[#allocation2 + $0x30] sm:$0xff] %v583
      %600 = vst [vmem:[#allocation2 + $0x38] sm:$0xff] %v584
      %601 = vst [vmem:[#allocation2 + $0x40] sm:$0xff] %v585
      %602 = vst [vmem:[#allocation2 + $0x48] sm:$0xff] %v586
      %603 = vst [vmem:[#allocation2 + $0x50] sm:$0xff] %v587
      %604 = vst [vmem:[#allocation2 + $0x58] sm:$0xff] %v588
      %605 = vst [vmem:[#allocation2 + $0x60] sm:$0xff] %v589
      %606 = vst [vmem:[#allocation2 + $0x68] sm:$0xff] %v590
      %607 = vst [vmem:[#allocation2 + $0x70] sm:$0xff] %v591
      %608 = vst [vmem:[#allocation2 + $0x78] sm:$0xff] %v592
      // Predicated region
      $region37: #{video_vae_encoder_forward.11} parent=31 // pred_check
        %p609 = pneg %p316
      $region38: #{video_vae_encoder_forward.11} parent=31 // pred_check_branch
        %611 = sbr.rel (%p609) target = $region40
      $region39: #{video_vae_encoder_forward.11} parent=31 // pred_region
        %v612 = vld [vmem:[#allocation2] sm:$0xff]
        %v613 = vld [vmem:[#allocation2 + $0x8] sm:$0xff]
        %v614 = vld [vmem:[#allocation2 + $0x10] sm:$0xff]
        %v615 = vld [vmem:[#allocation2 + $0x18] sm:$0xff]
        %v616 = vld [vmem:[#allocation2 + $0x20] sm:$0xff]
        %v617 = vld [vmem:[#allocation2 + $0x28] sm:$0xff]
        %v618 = vld [vmem:[#allocation2 + $0x30] sm:$0xff]
        %v619 = vld [vmem:[#allocation2 + $0x38] sm:$0xff]
        %v620 = vld [vmem:[#allocation2 + $0x40] sm:$0xff]
        %v621 = vld [vmem:[#allocation2 + $0x48] sm:$0xff]
        %v622 = vld [vmem:[#allocation2 + $0x50] sm:$0xff]
        %v623 = vld [vmem:[#allocation2 + $0x58] sm:$0xff]
        %v624 = vld [vmem:[#allocation2 + $0x60] sm:$0xff]
        %v625 = vld [vmem:[#allocation2 + $0x68] sm:$0xff]
        %v626 = vld [vmem:[#allocation2 + $0x70] sm:$0xff]
        %v627 = vld [vmem:[#allocation2 + $0x78] sm:$0xff]
        %v628 = vld [vmem:[%s301] sm:$0x1]
        %v630 = vlaneseq
        %v631 = vshrl.u32 %v630, 7
        %v632 = vsub.s32 0, %v631
        %v633 = vrot.slane %v628, %v632
        %v635 = vadd.f32 %v612, %v633
        %v636 = vadd.f32 %v613, %v633
        %v637 = vadd.f32 %v614, %v633
        %v638 = vadd.f32 %v615, %v633
        %v639 = vadd.f32 %v616, %v633
        %v640 = vadd.f32 %v617, %v633
        %v641 = vadd.f32 %v618, %v633
        %v642 = vadd.f32 %v619, %v633
        %v643 = vadd.f32 %v620, %v633
        %v644 = vadd.f32 %v621, %v633
        %v645 = vadd.f32 %v622, %v633
        %v646 = vadd.f32 %v623, %v633
        %v647 = vadd.f32 %v624, %v633
        %v648 = vadd.f32 %v625, %v633
        %v649 = vadd.f32 %v626, %v633
        %v650 = vadd.f32 %v627, %v633
        %v651 = vpack.c.bf16 %v636, %v635
        %v652 = vpack.c.bf16 %v638, %v637
        %v653 = vpack.c.bf16 %v640, %v639
        %v654 = vpack.c.bf16 %v642, %v641
        %v655 = vpack.c.bf16 %v644, %v643
        %v656 = vpack.c.bf16 %v646, %v645
        %v657 = vpack.c.bf16 %v648, %v647
        %v658 = vpack.c.bf16 %v650, %v649
        %v667 = vunpack.c.l.b16 %v651
        %v668 = vunpack.c.h.b16 %v651
        %v669 = vunpack.c.l.b16 %v652
        %v670 = vunpack.c.h.b16 %v652
        %v671 = vunpack.c.l.b16 %v653
        %v672 = vunpack.c.h.b16 %v653
        %v673 = vunpack.c.l.b16 %v654
        %v674 = vunpack.c.h.b16 %v654
        %v675 = vunpack.c.l.b16 %v655
        %v676 = vunpack.c.h.b16 %v655
        %v677 = vunpack.c.l.b16 %v656
        %v678 = vunpack.c.h.b16 %v656
        %v679 = vunpack.c.l.b16 %v657
        %v680 = vunpack.c.h.b16 %v657
        %v681 = vunpack.c.l.b16 %v658
        %v682 = vunpack.c.h.b16 %v658
        %v683 = vpack.c.b16 %v667, %v667
        %v684 = vpack.c.b16 %v668, %v668
        %v685 = vpack.c.b16 %v669, %v669
        %v686 = vpack.c.b16 %v670, %v670
        %v687 = vpack.c.b16 %v671, %v671
        %v688 = vpack.c.b16 %v672, %v672
        %v689 = vpack.c.b16 %v673, %v673
        %v690 = vpack.c.b16 %v674, %v674
        %v691 = vpack.c.b16 %v675, %v675
        %v692 = vpack.c.b16 %v676, %v676
        %v693 = vpack.c.b16 %v677, %v677
        %v694 = vpack.c.b16 %v678, %v678
        %v695 = vpack.c.b16 %v679, %v679
        %v696 = vpack.c.b16 %v680, %v680
        %v697 = vpack.c.b16 %v681, %v681
        %v698 = vpack.c.b16 %v682, %v682
        %715 = vst [vmem:[%s313] sm:$0xf] %v683
        %716 = vst [vmem:[%s313 + $0x4] sm:$0xf] %v684
        %717 = vst [vmem:[%s313 + $0x8] sm:$0xf] %v685
        %718 = vst [vmem:[%s313 + $0xc] sm:$0xf] %v686
        %719 = vst [vmem:[%s313 + $0x10] sm:$0xf] %v687
        %720 = vst [vmem:[%s313 + $0x14] sm:$0xf] %v688
        %721 = vst [vmem:[%s313 + $0x18] sm:$0xf] %v689
        %722 = vst [vmem:[%s313 + $0x1c] sm:$0xf] %v690
        %723 = vst [vmem:[%s313 + $0x20] sm:$0xf] %v691
        %724 = vst [vmem:[%s313 + $0x24] sm:$0xf] %v692
        %725 = vst [vmem:[%s313 + $0x28] sm:$0xf] %v693
        %726 = vst [vmem:[%s313 + $0x2c] sm:$0xf] %v694
        %727 = vst [vmem:[%s313 + $0x30] sm:$0xf] %v695
        %728 = vst [vmem:[%s313 + $0x34] sm:$0xf] %v696
        %729 = vst [vmem:[%s313 + $0x38] sm:$0xf] %v697
        %730 = vst [vmem:[%s313 + $0x3c] sm:$0xf] %v698
      $region40: #{video_vae_encoder_forward.11} parent=31 // pred_fallthru
        _
      %s731 = smul.u32 16, %s21
      %p732 = scmp.lt.s32.totalorder %s20, 3
      %s733 = scalar_select %p732, %s20, 3
      %p734 = scmp.lt.s32.totalorder %s731, 15
      %s735 = scalar_select %p734, %s731, 15
      %p736 = scmp.lt.s32.totalorder %s22, 0
      %s737 = scalar_select %p736, %s22, 0
      %s738 = sadd.s32 %s737, %s735
      %s739 = smul.addr %s733, 16
      %s740 = sadd.s32 %s738, %s739
      %s741 = smul.addr %s740, 4
      %s742 = scalar_lea.vmem %s3, %s741
      // Predicated region
      $region41: #{video_vae_encoder_forward.11} parent=31 // pred_check
        %p743 = pneg %p150
      $region42: #{video_vae_encoder_forward.11} parent=31 // pred_check_branch
        %745 = sbr.rel (%p743) target = $region44
      $region43: #{video_vae_encoder_forward.11} parent=31 // pred_region
        %s746 = smul.u32 16, %s21
      $region44: #{video_vae_encoder_forward.11} parent=31 // pred_fallthru
        _
    $region32: #{video_vae_encoder_forward.11} parent=5 // pred_fallthru
      _
    %p747 = scmp.le.s32.totalorder 2, %s9
    // Predicated region
    $region45: #{video_vae_encoder_forward.11} parent=5 // pred_check
      %p748 = pneg %p747
    $region46: #{video_vae_encoder_forward.11} parent=5 // pred_check_branch
      %750 = sbr.rel (%p748) target = $region48
    $region47: #{video_vae_encoder_forward.11} parent=5 // pred_region
      %s751 = ssub.s32 %s9, 2
      // Predicated region
      $region49: #{video_vae_encoder_forward.11} parent=47 // pred_check
        %p752 = pneg %p156
      $region50: #{video_vae_encoder_forward.11} parent=47 // pred_check_branch
        %754 = sbr.rel (%p752) target = $region52
      $region51: #{video_vae_encoder_forward.11} parent=47 // pred_region
        %s755 = smul.u32 16, %s25
        %p756 = scmp.lt.s32.totalorder %s24, 3
        %s757 = scalar_select %p756, %s24, 3
        %p758 = scmp.lt.s32.totalorder %s755, 15
        %s759 = scalar_select %p758, %s755, 15
        %p760 = scmp.lt.s32.totalorder %s26, 0
        %s761 = scalar_select %p760, %s26, 0
        %s762 = sadd.s32 %s761, %s759
        %s763 = smul.addr %s757, 16
        %s764 = sadd.s32 %s762, %s763
        %s765 = smul.addr %s764, 4
        %s766 = scalar_lea.vmem %s3, %s765
      $region52: #{video_vae_encoder_forward.11} parent=47 // pred_fallthru
        _
    $region48: #{video_vae_encoder_forward.11} parent=5 // pred_fallthru
      _
  $region6: #{video_vae_encoder_forward.11} parent=0 // loop_footer
    %s13 = sadd.s32 1, %s9
  $region7: #{video_vae_encoder_forward.11} parent=0 // loop_footer_branch
    %8 = sbr.rel target = $region3
  $region8: #{video_vae_encoder_forward.11} parent=0 // loop_exit
    _

// kernel: video_vae_encoder_forward.9
$region0: #{video_vae_encoder_forward.9}
  #allocation0 [shape = 'u32[]', space=smem, size = 0x4, offset = 0x4, fixed_abs, tag = 'smem constant byte address 0x4 - core index']
  #allocation1 [shape = 'u32[144,128]{1,0:T(1,128)}', space=vmem, size = 0x12000, scoped, tag = 'internal scratch']
  #allocation2 [shape = 'f32[128,128]{1,0:T(8,128)}', space=vmem, size = 0x10000, scoped, tag = 'scratch operand']
  %s0 = inlined_call_operand.vmem [shape: bf16[1,128,384], index: 0, kind: input, shape index: {}]
  %s1 = inlined_call_operand.vmem [shape: bf16[1,384,128], index: 1, kind: input, shape index: {}]
  %s2 = inlined_call_operand.vmem [shape: f32[1,1,128], index: 2, kind: input, shape index: {}]
  %s3 = inlined_call_operand.vmem [shape: bf16[1,128,128], index: 3, kind: output, shape index: {}]
  %s4 = sld [smem:[#allocation0]]
  $region94: #{video_vae_encoder_forward.9} parent=0
    _
  %s6 = ssub.s32 1, %s4
  %s7 = scalar_select 0, %s6, %s4
  $region1: #{video_vae_encoder_forward.9} parent=0
    #allocation3 [shape = 'u8[65536]{0}', space=vmem, size = 0x10000, scoped, tag = 'input window, operand 0']
    loop: start=0, step=1, limit=5
    $region2: #{video_vae_encoder_forward.9} parent=1 // loop_pre_header
      _
    $region3: #{video_vae_encoder_forward.9} parent=1 // loop_header
      %s9 = sphi 0, %s13
      %p10 = scmp.ge.s32.totalorder %s9, 5
      %s16 = sphi 0, %s42
      %s17 = sphi 0, %s38
      %s18 = sphi 0, %s34
      %s19 = sphi 0, %s30
      %s20 = sphi 0, %s16
      %s21 = sphi 0, %s17
      %s22 = sphi 0, %s18
      %s23 = sphi 0, %s19
      %s24 = sphi 0, %s20
      %s25 = sphi 0, %s21
      %s26 = sphi 0, %s22
      %s27 = sphi 0, %s23
      %s49 = sphi 0, %s51
      %s52 = sphi 0, %s49
      %s53 = sphi 0, %s52
      %s69 = sphi 0, %s53
      %s79 = sphi 0, %s81
      %s82 = sphi 0, %s79
      %s83 = sphi 0, %s82
      %s99 = sphi 0, %s83
      %s107 = sphi 0, %s109
      %s110 = sphi 0, %s107
      %s111 = sphi 0, %s110
      %s127 = sphi 0, %s111
      %s137 = sphi 0, %s139
      %s140 = sphi 0, %s137
      %s141 = sphi 0, %s140
      %s157 = sphi 0, %s141
    $region4: #{video_vae_encoder_forward.9} parent=1 // loop_header_branch
      %12 = sbr.rel (%p10) target = $region8
    $region5: #{video_vae_encoder_forward.9} parent=1 // loop_body
      %s14 = ssub.s32 %s9, 1
      %s15 = ssub.s32 %s9, 2
      %s28 = sadd.s32 1, %s19
      %p29 = scmp.ge.s32.totalorder %s28, 3
      %s30 = scalar_select %p29, 0, %s28
      %s31 = sadd.s32 1, %s18
      %s32 = scalar_select %p29, %s31, %s18
      %p33 = scmp.ge.s32.totalorder %s32, 1
      %s34 = scalar_select %p33, 0, %s32
      %s35 = sadd.s32 1, %s17
      %s36 = scalar_select %p33, %s35, %s17
      %p37 = scmp.ge.s32.totalorder %s36, 1
      %s38 = scalar_select %p37, 0, %s36
      %s39 = sadd.s32 1, %s16
      %s40 = scalar_select %p37, %s39, %s16
      %p41 = scmp.ge.s32.totalorder %s40, 1
      %s42 = scalar_select %p41, 0, %s40
      %s43 = ssub.s32 %s16, %s42
      %s44 = ssub.s32 %s17, %s38
      %s45 = sor.u32 %s43, %s44
      %s46 = ssub.s32 %s19, %s30
      %s47 = sor.u32 %s45, %s46
      %p48 = scmp.eq.s32.totalorder %s47, 0
      %s50 = sadd.s32 %s49, 1
      %s51 = scalar_select %p48, %s49, %s50
      %p54 = pneg %p48
      %p55 = scmp.eq.s32.totalorder %s9, 2
      %p56 = por %p54, %p55
      %p57 = scmp.ne.s32.totalorder %s49, %s52
      %p58 = scmp.eq.s32.totalorder %s9, 0
      %p59 = por %p57, %p58
      %p60 = scmp.ne.s32.totalorder %s49, %s52
      %p61 = scmp.eq.s32.totalorder %s14, 2
      %p62 = por %p60, %p61
      %p63 = scmp.ne.s32.totalorder %s52, %s53
      %p64 = scmp.eq.s32.totalorder %s14, 0
      %p65 = por %p63, %p64
      %p66 = scmp.ne.s32.totalorder %s52, %s53
      %p67 = scmp.eq.s32.totalorder %s15, 2
      %p68 = por %p66, %p67
      %p70 = scmp.ne.s32.totalorder %s53, %s69
      %p71 = scmp.eq.s32.totalorder %s15, 0
      %p72 = por %p70, %p71
      %s73 = ssub.s32 %s16, %s42
      %s74 = ssub.s32 %s19, %s30
      %s75 = sor.u32 %s73, %s74
      %s76 = ssub.s32 %s18, %s34
      %s77 = sor.u32 %s75, %s76
      %p78 = scmp.eq.s32.totalorder %s77, 0
      %s80 = sadd.s32 %s79, 1
      %s81 = scalar_select %p78, %s79, %s80
      %p84 = pneg %p78
      %p85 = scmp.eq.s32.totalorder %s9, 2
      %p86 = por %p84, %p85
      %p87 = scmp.ne.s32.totalorder %s79, %s82
      %p88 = scmp.eq.s32.totalorder %s9, 0
      %p89 = por %p87, %p88
      %p90 = scmp.ne.s32.totalorder %s79, %s82
      %p91 = scmp.eq.s32.totalorder %s14, 2
      %p92 = por %p90, %p91
      %p93 = scmp.ne.s32.totalorder %s82, %s83
      %p94 = scmp.eq.s32.totalorder %s14, 0
      %p95 = por %p93, %p94
      %p96 = scmp.ne.s32.totalorder %s82, %s83
      %p97 = scmp.eq.s32.totalorder %s15, 2
      %p98 = por %p96, %p97
      %p100 = scmp.ne.s32.totalorder %s83, %s99
      %p101 = scmp.eq.s32.totalorder %s15, 0
      %p102 = por %p100, %p101
      %s103 = ssub.s32 %s16, %s42
      %s104 = ssub.s32 %s18, %s34
      %s105 = sor.u32 %s103, %s104
      %p106 = scmp.eq.s32.totalorder %s105, 0
      %s108 = sadd.s32 %s107, 1
      %s109 = scalar_select %p106, %s107, %s108
      %p112 = pneg %p106
      %p113 = scmp.eq.s32.totalorder %s9, 2
      %p114 = por %p112, %p113
      %p115 = scmp.ne.s32.totalorder %s107, %s110
      %p116 = scmp.eq.s32.totalorder %s9, 0
      %p117 = por %p115, %p116
      %p118 = scmp.ne.s32.totalorder %s107, %s110
      %p119 = scmp.eq.s32.totalorder %s14, 2
      %p120 = por %p118, %p119
      %p121 = scmp.ne.s32.totalorder %s110, %s111
      %p122 = scmp.eq.s32.totalorder %s14, 0
      %p123 = por %p121, %p122
      %p124 = scmp.ne.s32.totalorder %s110, %s111
      %p125 = scmp.eq.s32.totalorder %s15, 2
      %p126 = por %p124, %p125
      %p128 = scmp.ne.s32.totalorder %s111, %s127
      %p129 = scmp.eq.s32.totalorder %s15, 0
      %p130 = por %p128, %p129
      %s131 = ssub.s32 %s16, %s42
      %s132 = ssub.s32 %s17, %s38
      %s133 = sor.u32 %s131, %s132
      %s134 = ssub.s32 %s18, %s34
      %s135 = sor.u32 %s133, %s134
      %p136 = scmp.eq.s32.totalorder %s135, 0
      %s138 = sadd.s32 %s137, 1
      %s139 = scalar_select %p136, %s137, %s138
      %p142 = pneg %p136
      %p143 = scmp.eq.s32.totalorder %s9, 2
      %p144 = por %p142, %p143
      %p145 = scmp.ne.s32.totalorder %s137, %s140
      %p146 = scmp.eq.s32.totalorder %s9, 0
      %p147 = por %p145, %p146
      %p148 = scmp.ne.s32.totalorder %s137, %s140
      %p149 = scmp.eq.s32.totalorder %s14, 2
      %p150 = por %p148, %p149
      %p151 = scmp.ne.s32.totalorder %s140, %s141
      %p152 = scmp.eq.s32.totalorder %s14, 0
      %p153 = por %p151, %p152
      %p154 = scmp.ne.s32.totalorder %s140, %s141
      %p155 = scmp.eq.s32.totalorder %s15, 2
      %p156 = por %p154, %p155
      %p158 = scmp.ne.s32.totalorder %s141, %s157
      %p159 = scmp.eq.s32.totalorder %s15, 0
      %p160 = por %p158, %p159
      %p161 = scmp.le.s32.totalorder 1, %s9
      %p162 = scmp.lt.s32.totalorder %s9, 4
      %p163 = pnand %p161, %p162
      %p164 = pneg %p163
      // Predicated region
      $region9: #{video_vae_encoder_forward.9} parent=5 // pred_check
        _
      $region10: #{video_vae_encoder_forward.9} parent=5 // pred_check_branch
        %166 = sbr.rel (%p163) target = $region12
      $region11: #{video_vae_encoder_forward.9} parent=5 // pred_region
        %s167 = ssub.s32 %s9, 1
        // Predicated region
        $region13: #{video_vae_encoder_forward.9} parent=11 // pred_check
          %p168 = pneg %p123
        $region14: #{video_vae_encoder_forward.9} parent=11 // pred_check_branch
          %170 = sbr.rel (%p168) target = $region16
        $region15: #{video_vae_encoder_forward.9} parent=11 // pred_region
          %p171 = scmp.lt.s32.totalorder %s20, 0
          %s172 = scalar_select %p171, %s20, 0
          %p173 = scmp.lt.s32.totalorder %s22, 0
          %s174 = scalar_select %p173, %s22, 0
          %s175 = sadd.s32 %s174, %s172
          %s176 = scalar_lea.vmem %s2, %s175
        $region16: #{video_vae_encoder_forward.9} parent=11 // pred_fallthru
          _
      $region12: #{video_vae_encoder_forward.9} parent=5 // pred_fallthru
        _
      %p177 = scmp.lt.s32.totalorder %s9, 3
      // Predicated region
      $region17: #{video_vae_encoder_forward.9} parent=5 // pred_check
        %p178 = pneg %p177
      $region18: #{video_vae_encoder_forward.9} parent=5 // pred_check_branch
        %180 = sbr.rel (%p178) target = $region20
      $region19: #{video_vae_encoder_forward.9} parent=5 // pred_region
        // Predicated region
        $region21: #{video_vae_encoder_forward.9} parent=19 // pred_check
          %p181 = pneg %p59
        $region22: #{video_vae_encoder_forward.9} parent=19 // pred_check_branch
          %183 = sbr.rel (%p181) target = $region24
        $region23: #{video_vae_encoder_forward.9} parent=19 // pred_region
          %s184 = sand.u32 %s49, 1
          %s185 = sand.u32 %s49, 1
          %s186 = smul.addr %s185, 64
          %s187 = scalar_lea.vmem [#allocation3], %s186
          %s188 = smul.u32 16, %s17
          %s189 = smul.addr %s188, 3
          %s190 = sadd.s32 %s19, %s189
          %s191 = smul.addr %s16, 48
          %s192 = sadd.s32 %s190, %s191
          %s193 = smul.addr %s192, 4
          %s194 = scalar_lea.vmem %s0, %s193
          // Predicated region
          $region25: #{video_vae_encoder_forward.9} parent=23 // pred_check
            _
          $region26: #{video_vae_encoder_forward.9} parent=23 // pred_check_branch
            %196 = sbr.rel (0) target = $region28
          $region27: #{video_vae_encoder_forward.9} parent=23 // pred_region
            // Predicated region
            $region29: #{video_vae_encoder_forward.9} parent=27 // pred_check
              _
            $region30: #{video_vae_encoder_forward.9} parent=27 // pred_check_branch
              %198 = sbr.rel target = $region32
            $region31: #{video_vae_encoder_forward.9} parent=27 // pred_region
              // Predicated region
              $region44: #{video_vae_encoder_forward.9} parent=31 // pred_check
                _
              $region45: #{video_vae_encoder_forward.9} parent=31 // pred_check_branch
                %243 = sbr.rel (0) target = $region47
              $region46: #{video_vae_encoder_forward.9} parent=31 // pred_region
                loop: start=0, step=1, limit=1
                $region48: #{video_vae_encoder_forward.9} parent=46 // loop_pre_header
                  _
                $region49: #{video_vae_encoder_forward.9} parent=46 // loop_header
                  %s245 = sphi 0, %s249
                  %p246 = scmp.ge.s32.totalorder %s245, 1
                  %s250 = sphi %s194, %s194
                  %s251 = sphi %s187, %s187
                $region50: #{video_vae_encoder_forward.9} parent=46 // loop_header_branch
                  %248 = sbr.rel (%p246) target = $region54
                $region51: #{video_vae_encoder_forward.9} parent=46 // loop_body
                  _
                $region52: #{video_vae_encoder_forward.9} parent=46 // loop_footer
                  %s249 = sadd.s32 1, %s245
                $region53: #{video_vae_encoder_forward.9} parent=46 // loop_footer_branch
                  %244 = sbr.rel target = $region49
                $region54: #{video_vae_encoder_forward.9} parent=46 // loop_exit
                  _
                loop: start=0, step=1, limit=1
                $region55: #{video_vae_encoder_forward.9} parent=46 // loop_pre_header
                  _
                $region56: #{video_vae_encoder_forward.9} parent=46 // loop_header
                  %s254 = sphi 0, %s258
                  %p255 = scmp.ge.s32.totalorder %s254, 1
                  %s259 = sphi %s194, %s194
                  %s260 = sphi %s187, %s187
                $region57: #{video_vae_encoder_forward.9} parent=46 // loop_header_branch
                  %257 = sbr.rel (%p255) target = $region61
                $region58: #{video_vae_encoder_forward.9} parent=46 // loop_body
                  %v261 = vld [vmem:[%s259] sm:$0xf]
                  %262 = vst [vmem:[%s260] sm:$0xf] %v261
                  %v263 = vld [vmem:[%s259 + $0xc] sm:$0xf]
                  %264 = vst [vmem:[%s260 + $0x4] sm:$0xf] %v263
                  %v265 = vld [vmem:[%s259 + $0x18] sm:$0xf]
                  %266 = vst [vmem:[%s260 + $0x8] sm:$0xf] %v265
                  %v267 = vld [vmem:[%s259 + $0x24] sm:$0xf]
                  %268 = vst [vmem:[%s260 + $0xc] sm:$0xf] %v267
                  %v269 = vld [vmem:[%s259 + $0x30] sm:$0xf]
                  %270 = vst [vmem:[%s260 + $0x10] sm:$0xf] %v269
                  %v271 = vld [vmem:[%s259 + $0x3c] sm:$0xf]
                  %272 = vst [vmem:[%s260 + $0x14] sm:$0xf] %v271
                  %v273 = vld [vmem:[%s259 + $0x48] sm:$0xf]
                  %274 = vst [vmem:[%s260 + $0x18] sm:$0xf] %v273
                  %v275 = vld [vmem:[%s259 + $0x54] sm:$0xf]
                  %276 = vst [vmem:[%s260 + $0x1c] sm:$0xf] %v275
                  %v277 = vld [vmem:[%s259 + $0x60] sm:$0xf]
                  %278 = vst [vmem:[%s260 + $0x20] sm:$0xf] %v277
                  %v279 = vld [vmem:[%s259 + $0x6c] sm:$0xf]
                  %280 = vst [vmem:[%s260 + $0x24] sm:$0xf] %v279
                  %v281 = vld [vmem:[%s259 + $0x78] sm:$0xf]
                  %282 = vst [vmem:[%s260 + $0x28] sm:$0xf] %v281
                  %v283 = vld [vmem:[%s259 + $0x84] sm:$0xf]
                  %284 = vst [vmem:[%s260 + $0x2c] sm:$0xf] %v283
                  %v285 = vld [vmem:[%s259 + $0x90] sm:$0xf]
                  %286 = vst [vmem:[%s260 + $0x30] sm:$0xf] %v285
                  %v287 = vld [vmem:[%s259 + $0x9c] sm:$0xf]
                  %288 = vst [vmem:[%s260 + $0x34] sm:$0xf] %v287
                  %v289 = vld [vmem:[%s259 + $0xa8] sm:$0xf]
                  %290 = vst [vmem:[%s260 + $0x38] sm:$0xf] %v289
                  %v291 = vld [vmem:[%s259 + $0xb4] sm:$0xf]
                  %292 = vst [vmem:[%s260 + $0x3c] sm:$0xf] %v291
                $region59: #{video_vae_encoder_forward.9} parent=46 // loop_footer
                  %s258 = sadd.s32 1, %s254
                $region60: #{video_vae_encoder_forward.9} parent=46 // loop_footer_branch
                  %253 = sbr.rel target = $region56
                $region61: #{video_vae_encoder_forward.9} parent=46 // loop_exit
                  _
              $region47: #{video_vae_encoder_forward.9} parent=31 // pred_fallthru
                _
            $region32: #{video_vae_encoder_forward.9} parent=27 // pred_fallthru
              _
            // Predicated region
            $region33: #{video_vae_encoder_forward.9} parent=27 // pred_check
              _
            $region34: #{video_vae_encoder_forward.9} parent=27 // pred_check_branch
              %200 = sbr.rel (0) target = $region36
            $region35: #{video_vae_encoder_forward.9} parent=27 // pred_region
              loop: start=0, step=1, limit=1
              $region37: #{video_vae_encoder_forward.9} parent=35 // loop_pre_header
                _
              $region38: #{video_vae_encoder_forward.9} parent=35 // loop_header
                %s203 = sphi 0, %s207
                %p204 = scmp.ge.s32.totalorder %s203, 1
                %s208 = sphi %s194, %s194
                %s209 = sphi %s187, %s187
              $region39: #{video_vae_encoder_forward.9} parent=35 // loop_header_branch
                %206 = sbr.rel (%p204) target = $region43
              $region40: #{video_vae_encoder_forward.9} parent=35 // loop_body
                %v210 = vld [vmem:[%s208] sm:$0xf]
                %211 = vst [vmem:[%s209] sm:$0xf] %v210
                %v212 = vld [vmem:[%s208 + $0xc] sm:$0xf]
                %213 = vst [vmem:[%s209 + $0x4] sm:$0xf] %v212
                %v214 = vld [vmem:[%s208 + $0x18] sm:$0xf]
                %215 = vst [vmem:[%s209 + $0x8] sm:$0xf] %v214
                %v216 = vld [vmem:[%s208 + $0x24] sm:$0xf]
                %217 = vst [vmem:[%s209 + $0xc] sm:$0xf] %v216
                %v218 = vld [vmem:[%s208 + $0x30] sm:$0xf]
                %219 = vst [vmem:[%s209 + $0x10] sm:$0xf] %v218
                %v220 = vld [vmem:[%s208 + $0x3c] sm:$0xf]
                %221 = vst [vmem:[%s209 + $0x14] sm:$0xf] %v220
                %v222 = vld [vmem:[%s208 + $0x48] sm:$0xf]
                %223 = vst [vmem:[%s209 + $0x18] sm:$0xf] %v222
                %v224 = vld [vmem:[%s208 + $0x54] sm:$0xf]
                %225 = vst [vmem:[%s209 + $0x1c] sm:$0xf] %v224
                %v226 = vld [vmem:[%s208 + $0x60] sm:$0xf]
                %227 = vst [vmem:[%s209 + $0x20] sm:$0xf] %v226
                %v228 = vld [vmem:[%s208 + $0x6c] sm:$0xf]
                %229 = vst [vmem:[%s209 + $0x24] sm:$0xf] %v228
                %v230 = vld [vmem:[%s208 + $0x78] sm:$0xf]
                %231 = vst [vmem:[%s209 + $0x28] sm:$0xf] %v230
                %v232 = vld [vmem:[%s208 + $0x84] sm:$0xf]
                %233 = vst [vmem:[%s209 + $0x2c] sm:$0xf] %v232
                %v234 = vld [vmem:[%s208 + $0x90] sm:$0xf]
                %235 = vst [vmem:[%s209 + $0x30] sm:$0xf] %v234
                %v236 = vld [vmem:[%s208 + $0x9c] sm:$0xf]
                %237 = vst [vmem:[%s209 + $0x34] sm:$0xf] %v236
                %v238 = vld [vmem:[%s208 + $0xa8] sm:$0xf]
                %239 = vst [vmem:[%s209 + $0x38] sm:$0xf] %v238
                %v240 = vld [vmem:[%s208 + $0xb4] sm:$0xf]
                %241 = vst [vmem:[%s209 + $0x3c] sm:$0xf] %v240
              $region41: #{video_vae_encoder_forward.9} parent=35 // loop_footer
                %s207 = sadd.s32 1, %s203
              $region42: #{video_vae_encoder_forward.9} parent=35 // loop_footer_branch
                %202 = sbr.rel target = $region38
              $region43: #{video_vae_encoder_forward.9} parent=35 // loop_exit
                _
            $region36: #{video_vae_encoder_forward.9} parent=27 // pred_fallthru
              _
          $region28: #{video_vae_encoder_forward.9} parent=23 // pred_fallthru
            _
          %293 = vnop
        $region24: #{video_vae_encoder_forward.9} parent=19 // pred_fallthru
          _
        // Predicated region
        $region62: #{video_vae_encoder_forward.9} parent=19 // pred_check
          %p294 = pneg %p89
        $region63: #{video_vae_encoder_forward.9} parent=19 // pred_check_branch
          %296 = sbr.rel (%p294) target = $region65
        $region64: #{video_vae_encoder_forward.9} parent=19 // pred_region
          %s297 = smul.u32 16, %s19
          %p298 = scmp.lt.s32.totalorder %s16, 0
          %s299 = scalar_select %p298, %s16, 0
          %p300 = scmp.lt.s32.totalorder %s297, 47
          %s301 = scalar_select %p300, %s297, 47
          %p302 = scmp.lt.s32.totalorder %s18, 0
          %s303 = scalar_select %p302, %s18, 0
          %s304 = sadd.s32 %s303, %s301
          %s305 = smul.addr %s299, 48
          %s306 = sadd.s32 %s304, %s305
          %s307 = smul.addr %s306, 4
          %s308 = scalar_lea.vmem %s1, %s307
          %s309 = smul.u32 16, %s19
        $region65: #{video_vae_encoder_forward.9} parent=19 // pred_fallthru
          _
      $region20: #{video_vae_encoder_forward.9} parent=5 // pred_fallthru
        _
      %p310 = scmp.le.s32.totalorder 1, %s9
      %p311 = scmp.lt.s32.totalorder %s9, 4
      %p312 = pnand %p310, %p311
      %p313 = pneg %p312
      // Predicated region
      $region66: #{video_vae_encoder_forward.9} parent=5 // pred_check
        _
      $region67: #{video_vae_encoder_forward.9} parent=5 // pred_check_branch
        %315 = sbr.rel (%p312) target = $region69
      $region68: #{video_vae_encoder_forward.9} parent=5 // pred_region
        %s316 = ssub.s32 %s9, 1
        %s317 = sand.u32 %s52, 1
        %s318 = sand.u32 %s52, 1
        %s319 = smul.addr %s318, 64
        %s320 = scalar_lea.vmem [#allocation3], %s319
        // Predicated region
        $region70: #{video_vae_encoder_forward.9} parent=68 // pred_check
          %p321 = pneg %p65
        $region71: #{video_vae_encoder_forward.9} parent=68 // pred_check_branch
          %323 = sbr.rel (%p321) target = $region73
        $region72: #{video_vae_encoder_forward.9} parent=68 // pred_region
          _
        $region73: #{video_vae_encoder_forward.9} parent=68 // pred_fallthru
          _
        %s324 = sand.u32 %s52, 1
        %s325 = sand.u32 %s52, 1
        %s326 = smul.addr %s325, 64
        %s327 = scalar_lea.vmem [#allocation3], %s326
        %p328 = pneg %p65
        %p329 = pneg %p62
        %s330 = smul.u32 16, %s23
        %p331 = scmp.lt.s32.totalorder %s20, 0
        %s332 = scalar_select %p331, %s20, 0
        %p333 = scmp.lt.s32.totalorder %s330, 47
        %s334 = scalar_select %p333, %s330, 47
        %p335 = scmp.lt.s32.totalorder %s22, 0
        %s336 = scalar_select %p335, %s22, 0
        %s337 = sadd.s32 %s336, %s334
        %s338 = smul.addr %s332, 48
        %s339 = sadd.s32 %s337, %s338
        %s340 = smul.addr %s339, 4
        %s341 = scalar_lea.vmem %s1, %s340
        %p342 = pneg %p95
        %p343 = pneg %p92
        %p344 = scmp.lt.s32.totalorder %s20, 0
        %s345 = scalar_select %p344, %s20, 0
        %p346 = scmp.lt.s32.totalorder %s22, 0
        %s347 = scalar_select %p346, %s22, 0
        %s348 = sadd.s32 %s347, %s345
        %s349 = scalar_lea.vmem %s2, %s348
        %p350 = pneg %p123
        %p351 = pneg %p120
        %p352 = pneg %p153
        %p353 = pneg %p150
        %s354 = smul.u32 16, %s21
        %p355 = scmp.lt.s32.totalorder %s20, 0
        %s356 = scalar_select %p355, %s20, 0
        %p357 = scmp.lt.s32.totalorder %s354, 15
        %s358 = scalar_select %p357, %s354, 15
        %p359 = scmp.lt.s32.totalorder %s22, 0
        %s360 = scalar_select %p359, %s22, 0
        %s361 = sadd.s32 %s360, %s358
        %s362 = smul.addr %s356, 16
        %s363 = sadd.s32 %s361, %s362
        %s364 = smul.addr %s363, 4
        %s365 = scalar_lea.vmem %s3, %s364
        %s366 = smul.u32 16, %s21
        %s367 = smul.u32 16, %s23
        %p368 = scmp.lt.s32.totalorder %s20, 0
        %s369 = scalar_select %p368, %s20, 0
        %p370 = scmp.lt.s32.totalorder %s367, 47
        %s371 = scalar_select %p370, %s367, 47
        %p372 = scmp.lt.s32.totalorder %s22, 0
        %s373 = scalar_select %p372, %s22, 0
        %s374 = sadd.s32 %s373, %s371
        %s375 = smul.addr %s369, 48
        %s376 = sadd.s32 %s374, %s375
        %s377 = smul.addr %s376, 4
        %s378 = scalar_lea.vmem %s1, %s377
        %s379 = smul.u32 16, %s23
        %p380 = scmp.lt.s32.totalorder %s20, 0
        %s381 = scalar_select %p380, %s20, 0
        %p382 = scmp.lt.s32.totalorder %s22, 0
        %s383 = scalar_select %p382, %s22, 0
        %s384 = sadd.s32 %s383, %s381
        %s385 = scalar_lea.vmem %s2, %s384
        %s386 = smul.u32 16, %s21
        %p387 = scmp.lt.s32.totalorder %s20, 0
        %s388 = scalar_select %p387, %s20, 0
        %p389 = scmp.lt.s32.totalorder %s386, 15
        %s390 = scalar_select %p389, %s386, 15
        %p391 = scmp.lt.s32.totalorder %s22, 0
        %s392 = scalar_select %p391, %s22, 0
        %s393 = sadd.s32 %s392, %s390
        %s394 = smul.addr %s388, 16
        %s395 = sadd.s32 %s393, %s394
        %s396 = smul.addr %s395, 4
        %s397 = scalar_lea.vmem %s3, %s396
        %s398 = smul.u32 16, %s21
        %p400 = scmp.eq.s32.totalorder %s23, 0
        // Predicated region
        $region74: #{video_vae_encoder_forward.9} parent=68 // pred_check
          %p401 = pneg %p400
        $region75: #{video_vae_encoder_forward.9} parent=68 // pred_check_branch
          %403 = sbr.rel (%p401) target = $region77
        $region76: #{video_vae_encoder_forward.9} parent=68 // pred_region
          %404 = vst [vmem:[#allocation2] sm:$0xff] 0.0
          %405 = vst [vmem:[#allocation2 + $0x8] sm:$0xff] 0.0
          %406 = vst [vmem:[#allocation2 + $0x10] sm:$0xff] 0.0
          %407 = vst [vmem:[#allocation2 + $0x18] sm:$0xff] 0.0
          %408 = vst [vmem:[#allocation2 + $0x20] sm:$0xff] 0.0
          %409 = vst [vmem:[#allocation2 + $0x28] sm:$0xff] 0.0
          %410 = vst [vmem:[#allocation2 + $0x30] sm:$0xff] 0.0
          %411 = vst [vmem:[#allocation2 + $0x38] sm:$0xff] 0.0
          %412 = vst [vmem:[#allocation2 + $0x40] sm:$0xff] 0.0
          %413 = vst [vmem:[#allocation2 + $0x48] sm:$0xff] 0.0
          %414 = vst [vmem:[#allocation2 + $0x50] sm:$0xff] 0.0
          %415 = vst [vmem:[#allocation2 + $0x58] sm:$0xff] 0.0
          %416 = vst [vmem:[#allocation2 + $0x60] sm:$0xff] 0.0
          %417 = vst [vmem:[#allocation2 + $0x68] sm:$0xff] 0.0
          %418 = vst [vmem:[#allocation2 + $0x70] sm:$0xff] 0.0
          %419 = vst [vmem:[#allocation2 + $0x78] sm:$0xff] 0.0
        $region77: #{video_vae_encoder_forward.9} parent=68 // pred_fallthru
          _
        %v420 = vld [vmem:[#allocation2] sm:$0xff]
        %v421 = vld [vmem:[#allocation2 + $0x8] sm:$0xff]
        %v422 = vld [vmem:[#allocation2 + $0x10] sm:$0xff]
        %v423 = vld [vmem:[#allocation2 + $0x18] sm:$0xff]
        %v424 = vld [vmem:[#allocation2 + $0x20] sm:$0xff]
        %v425 = vld [vmem:[#allocation2 + $0x28] sm:$0xff]
        %v426 = vld [vmem:[#allocation2 + $0x30] sm:$0xff]
        %v427 = vld [vmem:[#allocation2 + $0x38] sm:$0xff]
        %v428 = vld [vmem:[#allocation2 + $0x40] sm:$0xff]
        %v429 = vld [vmem:[#allocation2 + $0x48] sm:$0xff]
        %v430 = vld [vmem:[#allocation2 + $0x50] sm:$0xff]
        %v431 = vld [vmem:[#allocation2 + $0x58] sm:$0xff]
        %v432 = vld [vmem:[#allocation2 + $0x60] sm:$0xff]
        %v433 = vld [vmem:[#allocation2 + $0x68] sm:$0xff]
        %v434 = vld [vmem:[#allocation2 + $0x70] sm:$0xff]
        %v435 = vld [vmem:[#allocation2 + $0x78] sm:$0xff]
        %v436 = vld [vmem:[%s320] sm:$0xf]
        %v437 = vld [vmem:[%s320 + $0x4] sm:$0xf]
        %v438 = vld [vmem:[%s320 + $0x8] sm:$0xf]
        %v439 = vld [vmem:[%s320 + $0xc] sm:$0xf]
        %v440 = vld [vmem:[%s320 + $0x10] sm:$0xf]
        %v441 = vld [vmem:[%s320 + $0x14] sm:$0xf]
        %v442 = vld [vmem:[%s320 + $0x18] sm:$0xf]
        %v443 = vld [vmem:[%s320 + $0x1c] sm:$0xf]
        %v444 = vld [vmem:[%s320 + $0x20] sm:$0xf]
        %v445 = vld [vmem:[%s320 + $0x24] sm:$0xf]
        %v446 = vld [vmem:[%s320 + $0x28] sm:$0xf]
        %v447 = vld [vmem:[%s320 + $0x2c] sm:$0xf]
        %v448 = vld [vmem:[%s320 + $0x30] sm:$0xf]
        %v449 = vld [vmem:[%s320 + $0x34] sm:$0xf]
        %v450 = vld [vmem:[%s320 + $0x38] sm:$0xf]
        %v451 = vld [vmem:[%s320 + $0x3c] sm:$0xf]
        %v452 = vld [vmem:[%s378] sm:$0xf]
        %v453 = vld [vmem:[%s378 + $0x4] sm:$0xf]
        %v454 = vld [vmem:[%s378 + $0x8] sm:$0xf]
        %v455 = vld [vmem:[%s378 + $0xc] sm:$0xf]
        %v456 = vld [vmem:[%s378 + $0x10] sm:$0xf]
        %v457 = vld [vmem:[%s378 + $0x14] sm:$0xf]
        %v458 = vld [vmem:[%s378 + $0x18] sm:$0xf]
        %v459 = vld [vmem:[%s378 + $0x1c] sm:$0xf]
        %v460 = vld [vmem:[%s378 + $0x20] sm:$0xf]
        %v461 = vld [vmem:[%s378 + $0x24] sm:$0xf]
        %v462 = vld [vmem:[%s378 + $0x28] sm:$0xf]
        %v463 = vld [vmem:[%s378 + $0x2c] sm:$0xf]
        %v464 = vld [vmem:[%s378 + $0x30] sm:$0xf]
        %v465 = vld [vmem:[%s378 + $0x34] sm:$0xf]
        %v466 = vld [vmem:[%s378 + $0x38] sm:$0xf]
        %v467 = vld [vmem:[%s378 + $0x3c] sm:$0xf]
        %v484 = vunpack.c.l.b16 %v436
        %v485 = vunpack.c.l.b16 %v437
        %v486 = vunpack.c.l.b16 %v438
        %v487 = vunpack.c.l.b16 %v439
        %v488 = vunpack.c.l.b16 %v440
        %v489 = vunpack.c.l.b16 %v441
        %v490 = vunpack.c.l.b16 %v442
        %v491 = vunpack.c.l.b16 %v443
        %v492 = vunpack.c.l.b16 %v444
        %v493 = vunpack.c.l.b16 %v445
        %v494 = vunpack.c.l.b16 %v446
        %v495 = vunpack.c.l.b16 %v447
        %v496 = vunpack.c.l.b16 %v448
        %v497 = vunpack.c.l.b16 %v449
        %v498 = vunpack.c.l.b16 %v450
        %v499 = vunpack.c.l.b16 %v451
        %v500 = vpack.c.b16 %v485, %v484
        %v501 = vpack.c.b16 %v487, %v486
        %v502 = vpack.c.b16 %v489, %v488
        %v503 = vpack.c.b16 %v491, %v490
        %v504 = vpack.c.b16 %v493, %v492
        %v505 = vpack.c.b16 %v495, %v494
        %v506 = vpack.c.b16 %v497, %v496
        %v507 = vpack.c.b16 %v499, %v498
        %v532 = vunpack.c.l.b16 %v452
        %v533 = vunpack.c.l.b16 %v453
        %v534 = vunpack.c.l.b16 %v454
        %v535 = vunpack.c.l.b16 %v455
        %v536 = vunpack.c.l.b16 %v456
        %v537 = vunpack.c.l.b16 %v457
        %v538 = vunpack.c.l.b16 %v458
        %v539 = vunpack.c.l.b16 %v459
        %v540 = vunpack.c.l.b16 %v460
        %v541 = vunpack.c.l.b16 %v461
        %v542 = vunpack.c.l.b16 %v462
        %v543 = vunpack.c.l.b16 %v463
        %v544 = vunpack.c.l.b16 %v464
        %v545 = vunpack.c.l.b16 %v465
        %v546 = vunpack.c.l.b16 %v466
        %v547 = vunpack.c.l.b16 %v467
        %v548 = vpack.c.b16 %v533, %v532
        %v549 = vpack.c.b16 %v535, %v534
        %v550 = vpack.c.b16 %v537, %v536
        %v551 = vpack.c.b16 %v539, %v538
        %v552 = vpack.c.b16 %v541, %v540
        %v553 = vpack.c.b16 %v543, %v542
        %v554 = vpack.c.b16 %v545, %v544
        %v555 = vpack.c.b16 %v547, %v546
        %564 = vmatprep.subr.bf16.mxu0 0
        %565 = vmatpush1.bf16.msra.mxu0 %v548
        %566 = vmatprep.subr.bf16.mxu0 0
        %567 = vmatpush1.bf16.msra.mxu0 %v549
        %568 = vmatprep.subr.bf16.mxu0 0
        %569 = vmatpush1.bf16.msra.mxu0 %v550
        %570 = vmatprep.subr.bf16.mxu0 0
        %571 = vmatpush1.bf16.msra.mxu0 %v551
        %572 = vmatprep.subr.bf16.mxu0 0
        %573 = vmatpush1.bf16.msra.mxu0 %v552
        %574 = vmatprep.subr.bf16.mxu0 0
        %575 = vmatpush1.bf16.msra.mxu0 %v553
        %576 = vmatprep.subr.bf16.mxu0 0
        %577 = vmatpush1.bf16.msra.mxu0 %v554
        %578 = vmatprep.subr.bf16.mxu0 0
        %579 = vmatpush1.bf16.msra.mxu0 %v555
        %580 = vmatprep.subr.bf16.mxu0 0
        %581 = vmatpush1.bf16.msra.mxu0 0
        %582 = vmatprep.subr.bf16.mxu0 0
        %583 = vmatpush1.bf16.msra.mxu0 0
        %584 = vmatprep.subr.bf16.mxu0 0
        %585 = vmatpush1.bf16.msra.mxu0 0
        %586 = vmatprep.subr.bf16.mxu0 0
        %587 = vmatpush1.bf16.msra.mxu0 0
        %588 = vmatprep.subr.bf16.mxu0 0
        %589 = vmatpush1.bf16.msra.mxu0 0
        %590 = vmatprep.subr.bf16.mxu0 0
        %591 = vmatpush1.bf16.msra.mxu0 0
        %592 = vmatprep.subr.bf16.mxu0 0
        %593 = vmatpush1.bf16.msra.mxu0 0
        %594 = vmatprep.subr.bf16.mxu0 0
        %595 = vmatpush1.bf16.msra.mxu0 0
        %596 = vmatprep.mubr.bf16.mxu0 0
        %597 = vmatmul.mubr.bf16.gmra.mrb[0].mxu0 %v500
        %v598 = vpop.f32.mrb[0].mxu0
        %v599 = vadd.f32 0.0, %v598
        %v600 = vpop.f32.mrb[0].mxu0
        %v601 = vpop.f32.mrb[0].mxu0
        %v602 = vadd.f32 0.0, %v601
        %v603 = vpop.f32.mrb[0].mxu0
        %604 = vmatprep.mubr.bf16.mxu0 0
        %605 = vmatmul.mubr.bf16.gmra.mrb[0].mxu0 %v501
        %v606 = vpop.f32.mrb[0].mxu0
        %v607 = vadd.f32 0.0, %v606
        %v608 = vpop.f32.mrb[0].mxu0
        %v609 = vpop.f32.mrb[0].mxu0
        %v610 = vadd.f32 0.0, %v609
        %v611 = vpop.f32.mrb[0].mxu0
        %612 = vmatprep.mubr.bf16.mxu0 0
        %613 = vmatmul.mubr.bf16.gmra.mrb[0].mxu0 %v502
        %v614 = vpop.f32.mrb[0].mxu0
        %v615 = vadd.f32 0.0, %v614
        %v616 = vpop.f32.mrb[0].mxu0
        %v617 = vpop.f32.mrb[0].mxu0
        %v618 = vadd.f32 0.0, %v617
        %v619 = vpop.f32.mrb[0].mxu0
        %620 = vmatprep.mubr.bf16.mxu0 0
        %621 = vmatmul.mubr.bf16.gmra.mrb[0].mxu0 %v503
        %v622 = vpop.f32.mrb[0].mxu0
        %v623 = vadd.f32 0.0, %v622
        %v624 = vpop.f32.mrb[0].mxu0
        %v625 = vpop.f32.mrb[0].mxu0
        %v626 = vadd.f32 0.0, %v625
        %v627 = vpop.f32.mrb[0].mxu0
        %628 = vmatprep.mubr.bf16.mxu0 0
        %629 = vmatmul.mubr.bf16.gmra.mrb[0].mxu0 %v504
        %v630 = vpop.f32.mrb[0].mxu0
        %v631 = vadd.f32 0.0, %v630
        %v632 = vpop.f32.mrb[0].mxu0
        %v633 = vpop.f32.mrb[0].mxu0
        %v634 = vadd.f32 0.0, %v633
        %v635 = vpop.f32.mrb[0].mxu0
        %636 = vmatprep.mubr.bf16.mxu0 0
        %637 = vmatmul.mubr.bf16.gmra.mrb[0].mxu0 %v505
        %v638 = vpop.f32.mrb[0].mxu0
        %v639 = vadd.f32 0.0, %v638
        %v640 = vpop.f32.mrb[0].mxu0
        %v641 = vpop.f32.mrb[0].mxu0
        %v642 = vadd.f32 0.0, %v641
        %v643 = vpop.f32.mrb[0].mxu0
        %644 = vmatprep.mubr.bf16.mxu0 0
        %645 = vmatmul.mubr.bf16.gmra.mrb[0].mxu0 %v506
        %v646 = vpop.f32.mrb[0].mxu0
        %v647 = vadd.f32 0.0, %v646
        %v648 = vpop.f32.mrb[0].mxu0
        %v649 = vpop.f32.mrb[0].mxu0
        %v650 = vadd.f32 0.0, %v649
        %v651 = vpop.f32.mrb[0].mxu0
        %652 = vmatprep.mubr.bf16.mxu0 0
        %653 = vmatmul.mubr.bf16.gmra.mrb[0].mxu0 %v507
        %v654 = vpop.f32.mrb[0].mxu0
        %v655 = vadd.f32 0.0, %v654
        %v656 = vpop.f32.mrb[0].mxu0
        %v657 = vpop.f32.mrb[0].mxu0
        %v658 = vadd.f32 0.0, %v657
        %v659 = vpop.f32.mrb[0].mxu0
        %660 = vdwg.mxu0
        %v661 = vadd.f32 %v420, %v599
        %v662 = vadd.f32 %v421, %v602
        %v663 = vadd.f32 %v422, %v607
        %v664 = vadd.f32 %v423, %v610
        %v665 = vadd.f32 %v424, %v615
        %v666 = vadd.f32 %v425, %v618
        %v667 = vadd.f32 %v426, %v623
        %v668 = vadd.f32 %v427, %v626
        %v669 = vadd.f32 %v428, %v631
        %v670 = vadd.f32 %v429, %v634
        %v671 = vadd.f32 %v430, %v639
        %v672 = vadd.f32 %v431, %v642
        %v673 = vadd.f32 %v432, %v647
        %v674 = vadd.f32 %v433, %v650
        %v675 = vadd.f32 %v434, %v655
        %v676 = vadd.f32 %v435, %v658
        %677 = vst [vmem:[#allocation2] sm:$0xff] %v661
        %678 = vst [vmem:[#allocation2 + $0x8] sm:$0xff] %v662
        %679 = vst [vmem:[#allocation2 + $0x10] sm:$0xff] %v663
        %680 = vst [vmem:[#allocation2 + $0x18] sm:$0xff] %v664
        %681 = vst [vmem:[#allocation2 + $0x20] sm:$0xff] %v665
        %682 = vst [vmem:[#allocation2 + $0x28] sm:$0xff] %v666
        %683 = vst [vmem:[#allocation2 + $0x30] sm:$0xff] %v667
        %684 = vst [vmem:[#allocation2 + $0x38] sm:$0xff] %v668
        %685 = vst [vmem:[#allocation2 + $0x40] sm:$0xff] %v669
        %686 = vst [vmem:[#allocation2 + $0x48] sm:$0xff] %v670
        %687 = vst [vmem:[#allocation2 + $0x50] sm:$0xff] %v671
        %688 = vst [vmem:[#allocation2 + $0x58] sm:$0xff] %v672
        %689 = vst [vmem:[#allocation2 + $0x60] sm:$0xff] %v673
        %690 = vst [vmem:[#allocation2 + $0x68] sm:$0xff] %v674
        %691 = vst [vmem:[#allocation2 + $0x70] sm:$0xff] %v675
        %692 = vst [vmem:[#allocation2 + $0x78] sm:$0xff] %v676
        %p693 = scmp.eq.s32.totalorder %s23, 2
        // Predicated region
        $region78: #{video_vae_encoder_forward.9} parent=68 // pred_check
          %p694 = pneg %p693
        $region79: #{video_vae_encoder_forward.9} parent=68 // pred_check_branch
          %696 = sbr.rel (%p694) target = $region81
        $region80: #{video_vae_encoder_forward.9} parent=68 // pred_region
          %v697 = vld [vmem:[#allocation2] sm:$0xff]
          %v698 = vld [vmem:[#allocation2 + $0x8] sm:$0xff]
          %v699 = vld [vmem:[#allocation2 + $0x10] sm:$0xff]
          %v700 = vld [vmem:[#allocation2 + $0x18] sm:$0xff]
          %v701 = vld [vmem:[#allocation2 + $0x20] sm:$0xff]
          %v702 = vld [vmem:[#allocation2 + $0x28] sm:$0xff]
          %v703 = vld [vmem:[#allocation2 + $0x30] sm:$0xff]
          %v704 = vld [vmem:[#allocation2 + $0x38] sm:$0xff]
          %v705 = vld [vmem:[#allocation2 + $0x40] sm:$0xff]
          %v706 = vld [vmem:[#allocation2 + $0x48] sm:$0xff]
          %v707 = vld [vmem:[#allocation2 + $0x50] sm:$0xff]
          %v708 = vld [vmem:[#allocation2 + $0x58] sm:$0xff]
          %v709 = vld [vmem:[#allocation2 + $0x60] sm:$0xff]
          %v710 = vld [vmem:[#allocation2 + $0x68] sm:$0xff]
          %v711 = vld [vmem:[#allocation2 + $0x70] sm:$0xff]
          %v712 = vld [vmem:[#allocation2 + $0x78] sm:$0xff]
          %v713 = vld [vmem:[%s385] sm:$0x1]
          %v715 = vlaneseq
          %v716 = vshrl.u32 %v715, 7
          %v717 = vsub.s32 0, %v716
          %v718 = vrot.slane %v713, %v717
          %v720 = vadd.f32 %v697, %v718
          %v721 = vadd.f32 %v698, %v718
          %v722 = vadd.f32 %v699, %v718
          %v723 = vadd.f32 %v700, %v718
          %v724 = vadd.f32 %v701, %v718
          %v725 = vadd.f32 %v702, %v718
          %v726 = vadd.f32 %v703, %v718
          %v727 = vadd.f32 %v704, %v718
          %v728 = vadd.f32 %v705, %v718
          %v729 = vadd.f32 %v706, %v718
          %v730 = vadd.f32 %v707, %v718
          %v731 = vadd.f32 %v708, %v718
          %v732 = vadd.f32 %v709, %v718
          %v733 = vadd.f32 %v710, %v718
          %v734 = vadd.f32 %v711, %v718
          %v735 = vadd.f32 %v712, %v718
          %v736 = vpack.c.bf16 %v721, %v720
          %v737 = vpack.c.bf16 %v723, %v722
          %v738 = vpack.c.bf16 %v725, %v724
          %v739 = vpack.c.bf16 %v727, %v726
          %v740 = vpack.c.bf16 %v729, %v728
          %v741 = vpack.c.bf16 %v731, %v730
          %v742 = vpack.c.bf16 %v733, %v732
          %v743 = vpack.c.bf16 %v735, %v734
          %v752 = vunpack.c.l.b16 %v736
          %v753 = vunpack.c.h.b16 %v736
          %v754 = vunpack.c.l.b16 %v737
          %v755 = vunpack.c.h.b16 %v737
          %v756 = vunpack.c.l.b16 %v738
          %v757 = vunpack.c.h.b16 %v738
          %v758 = vunpack.c.l.b16 %v739
          %v759 = vunpack.c.h.b16 %v739
          %v760 = vunpack.c.l.b16 %v740
          %v761 = vunpack.c.h.b16 %v740
          %v762 = vunpack.c.l.b16 %v741
          %v763 = vunpack.c.h.b16 %v741
          %v764 = vunpack.c.l.b16 %v742
          %v765 = vunpack.c.h.b16 %v742
          %v766 = vunpack.c.l.b16 %v743
          %v767 = vunpack.c.h.b16 %v743
          %v768 = vpack.c.b16 %v752, %v752
          %v769 = vpack.c.b16 %v753, %v753
          %v770 = vpack.c.b16 %v754, %v754
          %v771 = vpack.c.b16 %v755, %v755
          %v772 = vpack.c.b16 %v756, %v756
          %v773 = vpack.c.b16 %v757, %v757
          %v774 = vpack.c.b16 %v758, %v758
          %v775 = vpack.c.b16 %v759, %v759
          %v776 = vpack.c.b16 %v760, %v760
          %v777 = vpack.c.b16 %v761, %v761
          %v778 = vpack.c.b16 %v762, %v762
          %v779 = vpack.c.b16 %v763, %v763
          %v780 = vpack.c.b16 %v764, %v764
          %v781 = vpack.c.b16 %v765, %v765
          %v782 = vpack.c.b16 %v766, %v766
          %v783 = vpack.c.b16 %v767, %v767
          %800 = vst [vmem:[%s397] sm:$0xf] %v768
          %801 = vst [vmem:[%s397 + $0x4] sm:$0xf] %v769
          %802 = vst [vmem:[%s397 + $0x8] sm:$0xf] %v770
          %803 = vst [vmem:[%s397 + $0xc] sm:$0xf] %v771
          %804 = vst [vmem:[%s397 + $0x10] sm:$0xf] %v772
          %805 = vst [vmem:[%s397 + $0x14] sm:$0xf] %v773
          %806 = vst [vmem:[%s397 + $0x18] sm:$0xf] %v774
          %807 = vst [vmem:[%s397 + $0x1c] sm:$0xf] %v775
          %808 = vst [vmem:[%s397 + $0x20] sm:$0xf] %v776
          %809 = vst [vmem:[%s397 + $0x24] sm:$0xf] %v777
          %810 = vst [vmem:[%s397 + $0x28] sm:$0xf] %v778
          %811 = vst [vmem:[%s397 + $0x2c] sm:$0xf] %v779
          %812 = vst [vmem:[%s397 + $0x30] sm:$0xf] %v780
          %813 = vst [vmem:[%s397 + $0x34] sm:$0xf] %v781
          %814 = vst [vmem:[%s397 + $0x38] sm:$0xf] %v782
          %815 = vst [vmem:[%s397 + $0x3c] sm:$0xf] %v783
        $region81: #{video_vae_encoder_forward.9} parent=68 // pred_fallthru
          _
        %s816 = smul.u32 16, %s21
        %p817 = scmp.lt.s32.totalorder %s20, 0
        %s818 = scalar_select %p817, %s20, 0
        %p819 = scmp.lt.s32.totalorder %s816, 15
        %s820 = scalar_select %p819, %s816, 15
        %p821 = scmp.lt.s32.totalorder %s22, 0
        %s822 = scalar_select %p821, %s22, 0
        %s823 = sadd.s32 %s822, %s820
        %s824 = smul.addr %s818, 16
        %s825 = sadd.s32 %s823, %s824
        %s826 = smul.addr %s825, 4
        %s827 = scalar_lea.vmem %s3, %s826
        // Predicated region
        $region82: #{video_vae_encoder_forward.9} parent=68 // pred_check
          %p828 = pneg %p150
        $region83: #{video_vae_encoder_forward.9} parent=68 // pred_check_branch
          %830 = sbr.rel (%p828) target = $region85
        $region84: #{video_vae_encoder_forward.9} parent=68 // pred_region
          %s831 = smul.u32 16, %s21
        $region85: #{video_vae_encoder_forward.9} parent=68 // pred_fallthru
          _
        // Predicated region
        $region86: #{video_vae_encoder_forward.9} parent=68 // pred_check
          %p832 = pneg %p150
        $region87: #{video_vae_encoder_forward.9} parent=68 // pred_check_branch
          %834 = sbr.rel (%p832) target = $region89
        $region88: #{video_vae_encoder_forward.9} parent=68 // pred_region
          %s835 = smul.u32 16, %s21
          %p836 = scmp.lt.s32.totalorder %s20, 0
          %s837 = scalar_select %p836, %s20, 0
          %p838 = scmp.lt.s32.totalorder %s835, 15
          %s839 = scalar_select %p838, %s835, 15
          %p840 = scmp.lt.s32.totalorder %s22, 0
          %s841 = scalar_select %p840, %s22, 0
          %s842 = sadd.s32 %s841, %s839
          %s843 = smul.addr %s837, 16
          %s844 = sadd.s32 %s842, %s843
          %s845 = smul.addr %s844, 4
          %s846 = scalar_lea.vmem %s3, %s845
        $region89: #{video_vae_encoder_forward.9} parent=68 // pred_fallthru
          _
      $region69: #{video_vae_encoder_forward.9} parent=5 // pred_fallthru
        _
      %p847 = scmp.le.s32.totalorder 2, %s9
      // Predicated region
      $region90: #{video_vae_encoder_forward.9} parent=5 // pred_check
        %p848 = pneg %p847
      $region91: #{video_vae_encoder_forward.9} parent=5 // pred_check_branch
        %850 = sbr.rel (%p848) target = $region93
      $region92: #{video_vae_encoder_forward.9} parent=5 // pred_region
        %s851 = ssub.s32 %s9, 2
      $region93: #{video_vae_encoder_forward.9} parent=5 // pred_fallthru
        _
    $region6: #{video_vae_encoder_forward.9} parent=1 // loop_footer
      %s13 = sadd.s32 1, %s9
    $region7: #{video_vae_encoder_forward.9} parent=1 // loop_footer_branch
      %8 = sbr.rel target = $region3
    $region8: #{video_vae_encoder_forward.9} parent=1 // loop_exit
      _

// kernel: video_vae_encoder_forward.12
$region0: #{video_vae_encoder_forward.12}
  #allocation0 [shape = 'u32[]', space=smem, size = 0x4, offset = 0x4, fixed_abs, tag = 'smem constant byte address 0x4 - core index']
  #allocation1 [shape = 'u32[144,128]{1,0:T(1,128)}', space=vmem, size = 0x12000, scoped, tag = 'internal scratch']
  #allocation2 [shape = 'f32[32,128]{1,0:T(8,128)}', space=vmem, size = 0x4000, scoped, tag = 'scratch operand']
  %s0 = inlined_call_operand.vmem [shape: bf16[4,32,1152], index: 0, kind: input, shape index: {}]
  %s1 = inlined_call_operand.vmem [shape: bf16[4,1152,128], index: 1, kind: input, shape index: {}]
  %s2 = inlined_call_operand.vmem [shape: f32[4,1,128], index: 2, kind: input, shape index: {}]
  %s3 = inlined_call_operand.vmem [shape: bf16[4,32,128], index: 3, kind: output, shape index: {}]
  %s4 = sld [smem:[#allocation0]]
  $region94: #{video_vae_encoder_forward.12} parent=0
    _
  %s6 = ssub.s32 1, %s4
  %s7 = scalar_select 0, %s6, %s4
  $region1: #{video_vae_encoder_forward.12} parent=0
    #allocation3 [shape = 'u8[16384]{0}', space=vmem, size = 0x4000, scoped, tag = 'input window, operand 0']
    loop: start=0, step=1, limit=38
    $region2: #{video_vae_encoder_forward.12} parent=1 // loop_pre_header
      _
    $region3: #{video_vae_encoder_forward.12} parent=1 // loop_header
      %s9 = sphi 0, %s13
      %p10 = scmp.ge.s32.totalorder %s9, 38
      %s16 = sphi 0, %s42
      %s17 = sphi 0, %s38
      %s18 = sphi 0, %s34
      %s19 = sphi 0, %s30
      %s20 = sphi 0, %s16
      %s21 = sphi 0, %s17
      %s22 = sphi 0, %s18
      %s23 = sphi 0, %s19
      %s24 = sphi 0, %s20
      %s25 = sphi 0, %s21
      %s26 = sphi 0, %s22
      %s27 = sphi 0, %s23
      %s49 = sphi 0, %s51
      %s52 = sphi 0, %s49
      %s53 = sphi 0, %s52
      %s69 = sphi 0, %s53
      %s79 = sphi 0, %s81
      %s82 = sphi 0, %s79
      %s83 = sphi 0, %s82
      %s99 = sphi 0, %s83
      %s107 = sphi 0, %s109
      %s110 = sphi 0, %s107
      %s111 = sphi 0, %s110
      %s127 = sphi 0, %s111
      %s137 = sphi 0, %s139
      %s140 = sphi 0, %s137
      %s141 = sphi 0, %s140
      %s157 = sphi 0, %s141
    $region4: #{video_vae_encoder_forward.12} parent=1 // loop_header_branch
      %12 = sbr.rel (%p10) target = $region8
    $region5: #{video_vae_encoder_forward.12} parent=1 // loop_body
      %s14 = ssub.s32 %s9, 1
      %s15 = ssub.s32 %s9, 2
      %s28 = sadd.s32 1, %s19
      %p29 = scmp.ge.s32.totalorder %s28, 9
      %s30 = scalar_select %p29, 0, %s28
      %s31 = sadd.s32 1, %s18
      %s32 = scalar_select %p29, %s31, %s18
      %p33 = scmp.ge.s32.totalorder %s32, 1
      %s34 = scalar_select %p33, 0, %s32
      %s35 = sadd.s32 1, %s17
      %s36 = scalar_select %p33, %s35, %s17
      %p37 = scmp.ge.s32.totalorder %s36, 1
      %s38 = scalar_select %p37, 0, %s36
      %s39 = sadd.s32 1, %s16
      %s40 = scalar_select %p37, %s39, %s16
      %p41 = scmp.ge.s32.totalorder %s40, 4
      %s42 = scalar_select %p41, 0, %s40
      %s43 = ssub.s32 %s16, %s42
      %s44 = ssub.s32 %s17, %s38
      %s45 = sor.u32 %s43, %s44
      %s46 = ssub.s32 %s19, %s30
      %s47 = sor.u32 %s45, %s46
      %p48 = scmp.eq.s32.totalorder %s47, 0
      %s50 = sadd.s32 %s49, 1
      %s51 = scalar_select %p48, %s49, %s50
      %p54 = pneg %p48
      %p55 = scmp.eq.s32.totalorder %s9, 35
      %p56 = por %p54, %p55
      %p57 = scmp.ne.s32.totalorder %s49, %s52
      %p58 = scmp.eq.s32.totalorder %s9, 0
      %p59 = por %p57, %p58
      %p60 = scmp.ne.s32.totalorder %s49, %s52
      %p61 = scmp.eq.s32.totalorder %s14, 35
      %p62 = por %p60, %p61
      %p63 = scmp.ne.s32.totalorder %s52, %s53
      %p64 = scmp.eq.s32.totalorder %s14, 0
      %p65 = por %p63, %p64
      %p66 = scmp.ne.s32.totalorder %s52, %s53
      %p67 = scmp.eq.s32.totalorder %s15, 35
      %p68 = por %p66, %p67
      %p70 = scmp.ne.s32.totalorder %s53, %s69
      %p71 = scmp.eq.s32.totalorder %s15, 0
      %p72 = por %p70, %p71
      %s73 = ssub.s32 %s16, %s42
      %s74 = ssub.s32 %s19, %s30
      %s75 = sor.u32 %s73, %s74
      %s76 = ssub.s32 %s18, %s34
      %s77 = sor.u32 %s75, %s76
      %p78 = scmp.eq.s32.totalorder %s77, 0
      %s80 = sadd.s32 %s79, 1
      %s81 = scalar_select %p78, %s79, %s80
      %p84 = pneg %p78
      %p85 = scmp.eq.s32.totalorder %s9, 35
      %p86 = por %p84, %p85
      %p87 = scmp.ne.s32.totalorder %s79, %s82
      %p88 = scmp.eq.s32.totalorder %s9, 0
      %p89 = por %p87, %p88
      %p90 = scmp.ne.s32.totalorder %s79, %s82
      %p91 = scmp.eq.s32.totalorder %s14, 35
      %p92 = por %p90, %p91
      %p93 = scmp.ne.s32.totalorder %s82, %s83
      %p94 = scmp.eq.s32.totalorder %s14, 0
      %p95 = por %p93, %p94
      %p96 = scmp.ne.s32.totalorder %s82, %s83
      %p97 = scmp.eq.s32.totalorder %s15, 35
      %p98 = por %p96, %p97
      %p100 = scmp.ne.s32.totalorder %s83, %s99
      %p101 = scmp.eq.s32.totalorder %s15, 0
      %p102 = por %p100, %p101
      %s103 = ssub.s32 %s16, %s42
      %s104 = ssub.s32 %s18, %s34
      %s105 = sor.u32 %s103, %s104
      %p106 = scmp.eq.s32.totalorder %s105, 0
      %s108 = sadd.s32 %s107, 1
      %s109 = scalar_select %p106, %s107, %s108
      %p112 = pneg %p106
      %p113 = scmp.eq.s32.totalorder %s9, 35
      %p114 = por %p112, %p113
      %p115 = scmp.ne.s32.totalorder %s107, %s110
      %p116 = scmp.eq.s32.totalorder %s9, 0
      %p117 = por %p115, %p116
      %p118 = scmp.ne.s32.totalorder %s107, %s110
      %p119 = scmp.eq.s32.totalorder %s14, 35
      %p120 = por %p118, %p119
      %p121 = scmp.ne.s32.totalorder %s110, %s111
      %p122 = scmp.eq.s32.totalorder %s14, 0
      %p123 = por %p121, %p122
      %p124 = scmp.ne.s32.totalorder %s110, %s111
      %p125 = scmp.eq.s32.totalorder %s15, 35
      %p126 = por %p124, %p125
      %p128 = scmp.ne.s32.totalorder %s111, %s127
      %p129 = scmp.eq.s32.totalorder %s15, 0
      %p130 = por %p128, %p129
      %s131 = ssub.s32 %s16, %s42
      %s132 = ssub.s32 %s17, %s38
      %s133 = sor.u32 %s131, %s132
      %s134 = ssub.s32 %s18, %s34
      %s135 = sor.u32 %s133, %s134
      %p136 = scmp.eq.s32.totalorder %s135, 0
      %s138 = sadd.s32 %s137, 1
      %s139 = scalar_select %p136, %s137, %s138
      %p142 = pneg %p136
      %p143 = scmp.eq.s32.totalorder %s9, 35
      %p144 = por %p142, %p143
      %p145 = scmp.ne.s32.totalorder %s137, %s140
      %p146 = scmp.eq.s32.totalorder %s9, 0
      %p147 = por %p145, %p146
      %p148 = scmp.ne.s32.totalorder %s137, %s140
      %p149 = scmp.eq.s32.totalorder %s14, 35
      %p150 = por %p148, %p149
      %p151 = scmp.ne.s32.totalorder %s140, %s141
      %p152 = scmp.eq.s32.totalorder %s14, 0
      %p153 = por %p151, %p152
      %p154 = scmp.ne.s32.totalorder %s140, %s141
      %p155 = scmp.eq.s32.totalorder %s15, 35
      %p156 = por %p154, %p155
      %p158 = scmp.ne.s32.totalorder %s141, %s157
      %p159 = scmp.eq.s32.totalorder %s15, 0
      %p160 = por %p158, %p159
      %p161 = scmp.le.s32.totalorder 1, %s9
      %p162 = scmp.lt.s32.totalorder %s9, 37
      %p163 = pnand %p161, %p162
      %p164 = pneg %p163
      // Predicated region
      $region9: #{video_vae_encoder_forward.12} parent=5 // pred_check
        _
      $region10: #{video_vae_encoder_forward.12} parent=5 // pred_check_branch
        %166 = sbr.rel (%p163) target = $region12
      $region11: #{video_vae_encoder_forward.12} parent=5 // pred_region
        %s167 = ssub.s32 %s9, 1
      $region12: #{video_vae_encoder_forward.12} parent=5 // pred_fallthru
        _
      %p168 = scmp.lt.s32.totalorder %s9, 36
      // Predicated region
      $region13: #{video_vae_encoder_forward.12} parent=5 // pred_check
        %p169 = pneg %p168
      $region14: #{video_vae_encoder_forward.12} parent=5 // pred_check_branch
        %171 = sbr.rel (%p169) target = $region16
      $region15: #{video_vae_encoder_forward.12} parent=5 // pred_region
        // Predicated region
        $region17: #{video_vae_encoder_forward.12} parent=15 // pred_check
          %p172 = pneg %p59
        $region18: #{video_vae_encoder_forward.12} parent=15 // pred_check_branch
          %174 = sbr.rel (%p172) target = $region20
        $region19: #{video_vae_encoder_forward.12} parent=15 // pred_region
          %s175 = sand.u32 %s49, 1
          %s176 = sand.u32 %s49, 1
          %s177 = smul.addr %s176, 16
          %s178 = scalar_lea.vmem [#allocation3], %s177
          %s179 = smul.u32 4, %s17
          %s180 = smul.addr %s179, 9
          %s181 = sadd.s32 %s19, %s180
          %s182 = smul.addr %s16, 36
          %s183 = sadd.s32 %s181, %s182
          %s184 = smul.addr %s183, 4
          %s185 = scalar_lea.vmem %s0, %s184
          // Predicated region
          $region21: #{video_vae_encoder_forward.12} parent=19 // pred_check
            _
          $region22: #{video_vae_encoder_forward.12} parent=19 // pred_check_branch
            %187 = sbr.rel (0) target = $region24
          $region23: #{video_vae_encoder_forward.12} parent=19 // pred_region
            // Predicated region
            $region25: #{video_vae_encoder_forward.12} parent=23 // pred_check
              _
            $region26: #{video_vae_encoder_forward.12} parent=23 // pred_check_branch
              %189 = sbr.rel target = $region28
            $region27: #{video_vae_encoder_forward.12} parent=23 // pred_region
              // Predicated region
              $region40: #{video_vae_encoder_forward.12} parent=27 // pred_check
                _
              $region41: #{video_vae_encoder_forward.12} parent=27 // pred_check_branch
                %210 = sbr.rel (0) target = $region43
              $region42: #{video_vae_encoder_forward.12} parent=27 // pred_region
                loop: start=0, step=1, limit=1
                $region44: #{video_vae_encoder_forward.12} parent=42 // loop_pre_header
                  _
                $region45: #{video_vae_encoder_forward.12} parent=42 // loop_header
                  %s212 = sphi 0, %s216
                  %p213 = scmp.ge.s32.totalorder %s212, 1
                  %s217 = sphi %s185, %s185
                  %s218 = sphi %s178, %s178
                $region46: #{video_vae_encoder_forward.12} parent=42 // loop_header_branch
                  %215 = sbr.rel (%p213) target = $region50
                $region47: #{video_vae_encoder_forward.12} parent=42 // loop_body
                  _
                $region48: #{video_vae_encoder_forward.12} parent=42 // loop_footer
                  %s216 = sadd.s32 1, %s212
                $region49: #{video_vae_encoder_forward.12} parent=42 // loop_footer_branch
                  %211 = sbr.rel target = $region45
                $region50: #{video_vae_encoder_forward.12} parent=42 // loop_exit
                  _
                loop: start=0, step=1, limit=1
                $region51: #{video_vae_encoder_forward.12} parent=42 // loop_pre_header
                  _
                $region52: #{video_vae_encoder_forward.12} parent=42 // loop_header
                  %s221 = sphi 0, %s225
                  %p222 = scmp.ge.s32.totalorder %s221, 1
                  %s226 = sphi %s185, %s185
                  %s227 = sphi %s178, %s178
                $region53: #{video_vae_encoder_forward.12} parent=42 // loop_header_branch
                  %224 = sbr.rel (%p222) target = $region57
                $region54: #{video_vae_encoder_forward.12} parent=42 // loop_body
                  %v228 = vld [vmem:[%s226] sm:$0xf]
                  %229 = vst [vmem:[%s227] sm:$0xf] %v228
                  %v230 = vld [vmem:[%s226 + $0x24] sm:$0xf]
                  %231 = vst [vmem:[%s227 + $0x4] sm:$0xf] %v230
                  %v232 = vld [vmem:[%s226 + $0x48] sm:$0xf]
                  %233 = vst [vmem:[%s227 + $0x8] sm:$0xf] %v232
                  %v234 = vld [vmem:[%s226 + $0x6c] sm:$0xf]
                  %235 = vst [vmem:[%s227 + $0xc] sm:$0xf] %v234
                $region55: #{video_vae_encoder_forward.12} parent=42 // loop_footer
                  %s225 = sadd.s32 1, %s221
                $region56: #{video_vae_encoder_forward.12} parent=42 // loop_footer_branch
                  %220 = sbr.rel target = $region52
                $region57: #{video_vae_encoder_forward.12} parent=42 // loop_exit
                  _
              $region43: #{video_vae_encoder_forward.12} parent=27 // pred_fallthru
                _
            $region28: #{video_vae_encoder_forward.12} parent=23 // pred_fallthru
              _
            // Predicated region
            $region29: #{video_vae_encoder_forward.12} parent=23 // pred_check
              _
            $region30: #{video_vae_encoder_forward.12} parent=23 // pred_check_branch
              %191 = sbr.rel (0) target = $region32
            $region31: #{video_vae_encoder_forward.12} parent=23 // pred_region
              loop: start=0, step=1, limit=1
              $region33: #{video_vae_encoder_forward.12} parent=31 // loop_pre_header
                _
              $region34: #{video_vae_encoder_forward.12} parent=31 // loop_header
                %s194 = sphi 0, %s198
                %p195 = scmp.ge.s32.totalorder %s194, 1
                %s199 = sphi %s185, %s185
                %s200 = sphi %s178, %s178
              $region35: #{video_vae_encoder_forward.12} parent=31 // loop_header_branch
                %197 = sbr.rel (%p195) target = $region39
              $region36: #{video_vae_encoder_forward.12} parent=31 // loop_body
                %v201 = vld [vmem:[%s199] sm:$0xf]
                %202 = vst [vmem:[%s200] sm:$0xf] %v201
                %v203 = vld [vmem:[%s199 + $0x24] sm:$0xf]
                %204 = vst [vmem:[%s200 + $0x4] sm:$0xf] %v203
                %v205 = vld [vmem:[%s199 + $0x48] sm:$0xf]
                %206 = vst [vmem:[%s200 + $0x8] sm:$0xf] %v205
                %v207 = vld [vmem:[%s199 + $0x6c] sm:$0xf]
                %208 = vst [vmem:[%s200 + $0xc] sm:$0xf] %v207
              $region37: #{video_vae_encoder_forward.12} parent=31 // loop_footer
                %s198 = sadd.s32 1, %s194
              $region38: #{video_vae_encoder_forward.12} parent=31 // loop_footer_branch
                %193 = sbr.rel target = $region34
              $region39: #{video_vae_encoder_forward.12} parent=31 // loop_exit
                _
            $region32: #{video_vae_encoder_forward.12} parent=23 // pred_fallthru
              _
          $region24: #{video_vae_encoder_forward.12} parent=19 // pred_fallthru
            _
          %236 = vnop
        $region20: #{video_vae_encoder_forward.12} parent=15 // pred_fallthru
          _
        // Predicated region
        $region58: #{video_vae_encoder_forward.12} parent=15 // pred_check
          %p237 = pneg %p89
        $region59: #{video_vae_encoder_forward.12} parent=15 // pred_check_branch
          %239 = sbr.rel (%p237) target = $region61
        $region60: #{video_vae_encoder_forward.12} parent=15 // pred_region
          %s240 = smul.u32 16, %s19
          %p241 = scmp.lt.s32.totalorder %s16, 3
          %s242 = scalar_select %p241, %s16, 3
          %p243 = scmp.lt.s32.totalorder %s240, 143
          %s244 = scalar_select %p243, %s240, 143
          %p245 = scmp.lt.s32.totalorder %s18, 0
          %s246 = scalar_select %p245, %s18, 0
          %s247 = sadd.s32 %s246, %s244
          %s248 = smul.addr %s242, 144
          %s249 = sadd.s32 %s247, %s248
          %s250 = smul.addr %s249, 4
          %s251 = scalar_lea.vmem %s1, %s250
          %s252 = smul.u32 16, %s19
        $region61: #{video_vae_encoder_forward.12} parent=15 // pred_fallthru
          _
        // Predicated region
        $region62: #{video_vae_encoder_forward.12} parent=15 // pred_check
          %p253 = pneg %p117
        $region63: #{video_vae_encoder_forward.12} parent=15 // pred_check_branch
          %255 = sbr.rel (%p253) target = $region65
        $region64: #{video_vae_encoder_forward.12} parent=15 // pred_region
          %p256 = scmp.lt.s32.totalorder %s16, 3
          %s257 = scalar_select %p256, %s16, 3
          %p258 = scmp.lt.s32.totalorder %s18, 0
          %s259 = scalar_select %p258, %s18, 0
          %s260 = sadd.s32 %s259, %s257
          %s261 = scalar_lea.vmem %s2, %s260
        $region65: #{video_vae_encoder_forward.12} parent=15 // pred_fallthru
          _
      $region16: #{video_vae_encoder_forward.12} parent=5 // pred_fallthru
        _
      %p262 = scmp.le.s32.totalorder 1, %s9
      %p263 = scmp.lt.s32.totalorder %s9, 37
      %p264 = pnand %p262, %p263
      %p265 = pneg %p264
      // Predicated region
      $region66: #{video_vae_encoder_forward.12} parent=5 // pred_check
        _
      $region67: #{video_vae_encoder_forward.12} parent=5 // pred_check_branch
        %267 = sbr.rel (%p264) target = $region69
      $region68: #{video_vae_encoder_forward.12} parent=5 // pred_region
        %s268 = ssub.s32 %s9, 1
        %s269 = sand.u32 %s52, 1
        %s270 = sand.u32 %s52, 1
        %s271 = smul.addr %s270, 16
        %s272 = scalar_lea.vmem [#allocation3], %s271
        // Predicated region
        $region70: #{video_vae_encoder_forward.12} parent=68 // pred_check
          %p273 = pneg %p65
        $region71: #{video_vae_encoder_forward.12} parent=68 // pred_check_branch
          %275 = sbr.rel (%p273) target = $region73
        $region72: #{video_vae_encoder_forward.12} parent=68 // pred_region
          _
        $region73: #{video_vae_encoder_forward.12} parent=68 // pred_fallthru
          _
        %s276 = sand.u32 %s52, 1
        %s277 = sand.u32 %s52, 1
        %s278 = smul.addr %s277, 16
        %s279 = scalar_lea.vmem [#allocation3], %s278
        %p280 = pneg %p65
        %p281 = pneg %p62
        %s282 = smul.u32 16, %s23
        %p283 = scmp.lt.s32.totalorder %s20, 3
        %s284 = scalar_select %p283, %s20, 3
        %p285 = scmp.lt.s32.totalorder %s282, 143
        %s286 = scalar_select %p285, %s282, 143
        %p287 = scmp.lt.s32.totalorder %s22, 0
        %s288 = scalar_select %p287, %s22, 0
        %s289 = sadd.s32 %s288, %s286
        %s290 = smul.addr %s284, 144
        %s291 = sadd.s32 %s289, %s290
        %s292 = smul.addr %s291, 4
        %s293 = scalar_lea.vmem %s1, %s292
        %p294 = pneg %p95
        %p295 = pneg %p92
        %p296 = scmp.lt.s32.totalorder %s20, 3
        %s297 = scalar_select %p296, %s20, 3
        %p298 = scmp.lt.s32.totalorder %s22, 0
        %s299 = scalar_select %p298, %s22, 0
        %s300 = sadd.s32 %s299, %s297
        %s301 = scalar_lea.vmem %s2, %s300
        %p302 = pneg %p123
        %p303 = pneg %p120
        %p304 = pneg %p153
        %p305 = pneg %p150
        %s306 = smul.u32 4, %s21
        %p307 = scmp.lt.s32.totalorder %s20, 3
        %s308 = scalar_select %p307, %s20, 3
        %p309 = scmp.lt.s32.totalorder %s306, 3
        %s310 = scalar_select %p309, %s306, 3
        %p311 = scmp.lt.s32.totalorder %s22, 0
        %s312 = scalar_select %p311, %s22, 0
        %s313 = sadd.s32 %s312, %s310
        %s314 = smul.addr %s308, 4
        %s315 = sadd.s32 %s313, %s314
        %s316 = smul.addr %s315, 4
        %s317 = scalar_lea.vmem %s3, %s316
        %s318 = smul.u32 4, %s21
        %s319 = smul.u32 16, %s23
        %p320 = scmp.lt.s32.totalorder %s20, 3
        %s321 = scalar_select %p320, %s20, 3
        %p322 = scmp.lt.s32.totalorder %s319, 143
        %s323 = scalar_select %p322, %s319, 143
        %p324 = scmp.lt.s32.totalorder %s22, 0
        %s325 = scalar_select %p324, %s22, 0
        %s326 = sadd.s32 %s325, %s323
        %s327 = smul.addr %s321, 144
        %s328 = sadd.s32 %s326, %s327
        %s329 = smul.addr %s328, 4
        %s330 = scalar_lea.vmem %s1, %s329
        %s331 = smul.u32 16, %s23
        %p332 = scmp.lt.s32.totalorder %s20, 3
        %s333 = scalar_select %p332, %s20, 3
        %p334 = scmp.lt.s32.totalorder %s22, 0
        %s335 = scalar_select %p334, %s22, 0
        %s336 = sadd.s32 %s335, %s333
        %s337 = scalar_lea.vmem %s2, %s336
        %s338 = smul.u32 4, %s21
        %p339 = scmp.lt.s32.totalorder %s20, 3
        %s340 = scalar_select %p339, %s20, 3
        %p341 = scmp.lt.s32.totalorder %s338, 3
        %s342 = scalar_select %p341, %s338, 3
        %p343 = scmp.lt.s32.totalorder %s22, 0
        %s344 = scalar_select %p343, %s22, 0
        %s345 = sadd.s32 %s344, %s342
        %s346 = smul.addr %s340, 4
        %s347 = sadd.s32 %s345, %s346
        %s348 = smul.addr %s347, 4
        %s349 = scalar_lea.vmem %s3, %s348
        %s350 = smul.u32 4, %s21
        %p352 = scmp.eq.s32.totalorder %s23, 0
        // Predicated region
        $region74: #{video_vae_encoder_forward.12} parent=68 // pred_check
          %p353 = pneg %p352
        $region75: #{video_vae_encoder_forward.12} parent=68 // pred_check_branch
          %355 = sbr.rel (%p353) target = $region77
        $region76: #{video_vae_encoder_forward.12} parent=68 // pred_region
          %356 = vst [vmem:[#allocation2] sm:$0xff] 0.0
          %357 = vst [vmem:[#allocation2 + $0x8] sm:$0xff] 0.0
          %358 = vst [vmem:[#allocation2 + $0x10] sm:$0xff] 0.0
          %359 = vst [vmem:[#allocation2 + $0x18] sm:$0xff] 0.0
        $region77: #{video_vae_encoder_forward.12} parent=68 // pred_fallthru
          _
        %v360 = vld [vmem:[#allocation2] sm:$0xff]
        %v361 = vld [vmem:[#allocation2 + $0x8] sm:$0xff]
        %v362 = vld [vmem:[#allocation2 + $0x10] sm:$0xff]
        %v363 = vld [vmem:[#allocation2 + $0x18] sm:$0xff]
        %v364 = vld [vmem:[%s272] sm:$0xf]
        %v365 = vld [vmem:[%s272 + $0x4] sm:$0xf]
        %v366 = vld [vmem:[%s272 + $0x8] sm:$0xf]
        %v367 = vld [vmem:[%s272 + $0xc] sm:$0xf]
        %v368 = vld [vmem:[%s330] sm:$0xf]
        %v369 = vld [vmem:[%s330 + $0x4] sm:$0xf]
        %v370 = vld [vmem:[%s330 + $0x8] sm:$0xf]
        %v371 = vld [vmem:[%s330 + $0xc] sm:$0xf]
        %v372 = vld [vmem:[%s330 + $0x10] sm:$0xf]
        %v373 = vld [vmem:[%s330 + $0x14] sm:$0xf]
        %v374 = vld [vmem:[%s330 + $0x18] sm:$0xf]
        %v375 = vld [vmem:[%s330 + $0x1c] sm:$0xf]
        %v376 = vld [vmem:[%s330 + $0x20] sm:$0xf]
        %v377 = vld [vmem:[%s330 + $0x24] sm:$0xf]
        %v378 = vld [vmem:[%s330 + $0x28] sm:$0xf]
        %v379 = vld [vmem:[%s330 + $0x2c] sm:$0xf]
        %v380 = vld [vmem:[%s330 + $0x30] sm:$0xf]
        %v381 = vld [vmem:[%s330 + $0x34] sm:$0xf]
        %v382 = vld [vmem:[%s330 + $0x38] sm:$0xf]
        %v383 = vld [vmem:[%s330 + $0x3c] sm:$0xf]
        %v388 = vunpack.c.l.b16 %v364
        %v389 = vunpack.c.l.b16 %v365
        %v390 = vunpack.c.l.b16 %v366
        %v391 = vunpack.c.l.b16 %v367
        %v392 = vpack.c.b16 %v389, %v388
        %v393 = vpack.c.b16 %v391, %v390
        %v412 = vunpack.c.l.b16 %v368
        %v413 = vunpack.c.l.b16 %v369
        %v414 = vunpack.c.l.b16 %v370
        %v415 = vunpack.c.l.b16 %v371
        %v416 = vunpack.c.l.b16 %v372
        %v417 = vunpack.c.l.b16 %v373
        %v418 = vunpack.c.l.b16 %v374
        %v419 = vunpack.c.l.b16 %v375
        %v420 = vunpack.c.l.b16 %v376
        %v421 = vunpack.c.l.b16 %v377
        %v422 = vunpack.c.l.b16 %v378
        %v423 = vunpack.c.l.b16 %v379
        %v424 = vunpack.c.l.b16 %v380
        %v425 = vunpack.c.l.b16 %v381
        %v426 = vunpack.c.l.b16 %v382
        %v427 = vunpack.c.l.b16 %v383
        %v428 = vpack.c.b16 %v413, %v412
        %v429 = vpack.c.b16 %v415, %v414
        %v430 = vpack.c.b16 %v417, %v416
        %v431 = vpack.c.b16 %v419, %v418
        %v432 = vpack.c.b16 %v421, %v420
        %v433 = vpack.c.b16 %v423, %v422
        %v434 = vpack.c.b16 %v425, %v424
        %v435 = vpack.c.b16 %v427, %v426
        %444 = vmatprep.subr.bf16.mxu0 0
        %445 = vmatpush1.bf16.msra.mxu0 %v428
        %446 = vmatprep.subr.bf16.mxu0 0
        %447 = vmatpush1.bf16.msra.mxu0 %v429
        %448 = vmatprep.subr.bf16.mxu0 0
        %449 = vmatpush1.bf16.msra.mxu0 %v430
        %450 = vmatprep.subr.bf16.mxu0 0
        %451 = vmatpush1.bf16.msra.mxu0 %v431
        %452 = vmatprep.subr.bf16.mxu0 0
        %453 = vmatpush1.bf16.msra.mxu0 %v432
        %454 = vmatprep.subr.bf16.mxu0 0
        %455 = vmatpush1.bf16.msra.mxu0 %v433
        %456 = vmatprep.subr.bf16.mxu0 0
        %457 = vmatpush1.bf16.msra.mxu0 %v434
        %458 = vmatprep.subr.bf16.mxu0 0
        %459 = vmatpush1.bf16.msra.mxu0 %v435
        %460 = vmatprep.subr.bf16.mxu0 0
        %461 = vmatpush1.bf16.msra.mxu0 0
        %462 = vmatprep.subr.bf16.mxu0 0
        %463 = vmatpush1.bf16.msra.mxu0 0
        %464 = vmatprep.subr.bf16.mxu0 0
        %465 = vmatpush1.bf16.msra.mxu0 0
        %466 = vmatprep.subr.bf16.mxu0 0
        %467 = vmatpush1.bf16.msra.mxu0 0
        %468 = vmatprep.subr.bf16.mxu0 0
        %469 = vmatpush1.bf16.msra.mxu0 0
        %470 = vmatprep.subr.bf16.mxu0 0
        %471 = vmatpush1.bf16.msra.mxu0 0
        %472 = vmatprep.subr.bf16.mxu0 0
        %473 = vmatpush1.bf16.msra.mxu0 0
        %474 = vmatprep.subr.bf16.mxu0 0
        %475 = vmatpush1.bf16.msra.mxu0 0
        %476 = vmatprep.mubr.bf16.mxu0 0
        %477 = vmatmul.mubr.bf16.gmra.mrb[0].mxu0 %v392
        %v478 = vpop.f32.mrb[0].mxu0
        %v479 = vadd.f32 0.0, %v478
        %v480 = vpop.f32.mrb[0].mxu0
        %v481 = vpop.f32.mrb[0].mxu0
        %v482 = vadd.f32 0.0, %v481
        %v483 = vpop.f32.mrb[0].mxu0
        %484 = vmatprep.mubr.bf16.mxu0 0
        %485 = vmatmul.mubr.bf16.gmra.mrb[0].mxu0 %v393
        %v486 = vpop.f32.mrb[0].mxu0
        %v487 = vadd.f32 0.0, %v486
        %v488 = vpop.f32.mrb[0].mxu0
        %v489 = vpop.f32.mrb[0].mxu0
        %v490 = vadd.f32 0.0, %v489
        %v491 = vpop.f32.mrb[0].mxu0
        %492 = vdwg.mxu0
        %v493 = vadd.f32 %v360, %v479
        %v494 = vadd.f32 %v361, %v482
        %v495 = vadd.f32 %v362, %v487
        %v496 = vadd.f32 %v363, %v490
        %497 = vst [vmem:[#allocation2] sm:$0xff] %v493
        %498 = vst [vmem:[#allocation2 + $0x8] sm:$0xff] %v494
        %499 = vst [vmem:[#allocation2 + $0x10] sm:$0xff] %v495
        %500 = vst [vmem:[#allocation2 + $0x18] sm:$0xff] %v496
        %p501 = scmp.eq.s32.totalorder %s23, 8
        // Predicated region
        $region78: #{video_vae_encoder_forward.12} parent=68 // pred_check
          %p502 = pneg %p501
        $region79: #{video_vae_encoder_forward.12} parent=68 // pred_check_branch
          %504 = sbr.rel (%p502) target = $region81
        $region80: #{video_vae_encoder_forward.12} parent=68 // pred_region
          %v505 = vld [vmem:[#allocation2] sm:$0xff]
          %v506 = vld [vmem:[#allocation2 + $0x8] sm:$0xff]
          %v507 = vld [vmem:[#allocation2 + $0x10] sm:$0xff]
          %v508 = vld [vmem:[#allocation2 + $0x18] sm:$0xff]
          %v509 = vld [vmem:[%s337] sm:$0x1]
          %v511 = vlaneseq
          %v512 = vshrl.u32 %v511, 7
          %v513 = vsub.s32 0, %v512
          %v514 = vrot.slane %v509, %v513
          %v516 = vadd.f32 %v505, %v514
          %v517 = vadd.f32 %v506, %v514
          %v518 = vadd.f32 %v507, %v514
          %v519 = vadd.f32 %v508, %v514
          %v520 = vpack.c.bf16 %v517, %v516
          %v521 = vpack.c.bf16 %v519, %v518
          %v524 = vunpack.c.l.b16 %v520
          %v525 = vunpack.c.h.b16 %v520
          %v526 = vunpack.c.l.b16 %v521
          %v527 = vunpack.c.h.b16 %v521
          %v528 = vpack.c.b16 %v524, %v524
          %v529 = vpack.c.b16 %v525, %v525
          %v530 = vpack.c.b16 %v526, %v526
          %v531 = vpack.c.b16 %v527, %v527
          %536 = vst [vmem:[%s349] sm:$0xf] %v528
          %537 = vst [vmem:[%s349 + $0x4] sm:$0xf] %v529
          %538 = vst [vmem:[%s349 + $0x8] sm:$0xf] %v530
          %539 = vst [vmem:[%s349 + $0xc] sm:$0xf] %v531
        $region81: #{video_vae_encoder_forward.12} parent=68 // pred_fallthru
          _
        %s540 = smul.u32 4, %s21
        %p541 = scmp.lt.s32.totalorder %s20, 3
        %s542 = scalar_select %p541, %s20, 3
        %p543 = scmp.lt.s32.totalorder %s540, 3
        %s544 = scalar_select %p543, %s540, 3
        %p545 = scmp.lt.s32.totalorder %s22, 0
        %s546 = scalar_select %p545, %s22, 0
        %s547 = sadd.s32 %s546, %s544
        %s548 = smul.addr %s542, 4
        %s549 = sadd.s32 %s547, %s548
        %s550 = smul.addr %s549, 4
        %s551 = scalar_lea.vmem %s3, %s550
        // Predicated region
        $region82: #{video_vae_encoder_forward.12} parent=68 // pred_check
          %p552 = pneg %p150
        $region83: #{video_vae_encoder_forward.12} parent=68 // pred_check_branch
          %554 = sbr.rel (%p552) target = $region85
        $region84: #{video_vae_encoder_forward.12} parent=68 // pred_region
          %s555 = smul.u32 4, %s21
        $region85: #{video_vae_encoder_forward.12} parent=68 // pred_fallthru
          _
      $region69: #{video_vae_encoder_forward.12} parent=5 // pred_fallthru
        _
      %p556 = scmp.le.s32.totalorder 2, %s9
      // Predicated region
      $region86: #{video_vae_encoder_forward.12} parent=5 // pred_check
        %p557 = pneg %p556
      $region87: #{video_vae_encoder_forward.12} parent=5 // pred_check_branch
        %559 = sbr.rel (%p557) target = $region89
      $region88: #{video_vae_encoder_forward.12} parent=5 // pred_region
        %s560 = ssub.s32 %s9, 2
        // Predicated region
        $region90: #{video_vae_encoder_forward.12} parent=88 // pred_check
          %p561 = pneg %p156
        $region91: #{video_vae_encoder_forward.12} parent=88 // pred_check_branch
          %563 = sbr.rel (%p561) target = $region93
        $region92: #{video_vae_encoder_forward.12} parent=88 // pred_region
          %s564 = smul.u32 4, %s25
          %p565 = scmp.lt.s32.totalorder %s24, 3
          %s566 = scalar_select %p565, %s24, 3
          %p567 = scmp.lt.s32.totalorder %s564, 3
          %s568 = scalar_select %p567, %s564, 3
          %p569 = scmp.lt.s32.totalorder %s26, 0
          %s570 = scalar_select %p569, %s26, 0
          %s571 = sadd.s32 %s570, %s568
          %s572 = smul.addr %s566, 4
          %s573 = sadd.s32 %s571, %s572
          %s574 = smul.addr %s573, 4
          %s575 = scalar_lea.vmem %s3, %s574
        $region93: #{video_vae_encoder_forward.12} parent=88 // pred_fallthru
          _
      $region89: #{video_vae_encoder_forward.12} parent=5 // pred_fallthru
        _
    $region6: #{video_vae_encoder_forward.12} parent=1 // loop_footer
      %s13 = sadd.s32 1, %s9
    $region7: #{video_vae_encoder_forward.12} parent=1 // loop_footer_branch
      %8 = sbr.rel target = $region3
    $region8: #{video_vae_encoder_forward.12} parent=1 // loop_exit
      _

// kernel: video_vae_encoder_forward.13
$region0: #{video_vae_encoder_forward.13}
  #allocation0 [shape = 'u32[]', space=smem, size = 0x4, offset = 0x4, fixed_abs, tag = 'smem constant byte address 0x4 - core index']
  #allocation1 [shape = 'u32[144,128]{1,0:T(1,128)}', space=vmem, size = 0x12000, scoped, tag = 'internal scratch']
  #allocation2 [shape = 'f32[16,128]{1,0:T(8,128)}', space=vmem, size = 0x2000, scoped, tag = 'scratch operand']
  %s0 = inlined_call_operand.vmem [shape: bf16[4,16,4608], index: 0, kind: input, shape index: {}]
  %s1 = inlined_call_operand.vmem [shape: bf16[4,4608,128], index: 1, kind: input, shape index: {}]
  %s2 = inlined_call_operand.vmem [shape: f32[4,1,128], index: 2, kind: input, shape index: {}]
  %s3 = inlined_call_operand.vmem [shape: bf16[4,16,128], index: 3, kind: output, shape index: {}]
  %s4 = sld [smem:[#allocation0]]
  $region91: #{video_vae_encoder_forward.13} parent=0
    _
  %s6 = ssub.s32 1, %s4
  %s7 = scalar_select 0, %s6, %s4
  $region1: #{video_vae_encoder_forward.13} parent=0
    #allocation3 [shape = 'u8[16384]{0}', space=vmem, size = 0x4000, scoped, tag = 'input window, operand 0']
    loop: start=0, step=1, limit=74
    $region2: #{video_vae_encoder_forward.13} parent=1 // loop_pre_header
      _
    $region3: #{video_vae_encoder_forward.13} parent=1 // loop_header
      %s9 = sphi 0, %s13
      %p10 = scmp.ge.s32.totalorder %s9, 74
      %s16 = sphi 0, %s42
      %s17 = sphi 0, %s38
      %s18 = sphi 0, %s34
      %s19 = sphi 0, %s30
      %s20 = sphi 0, %s16
      %s21 = sphi 0, %s17
      %s22 = sphi 0, %s18
      %s23 = sphi 0, %s19
      %s24 = sphi 0, %s20
      %s25 = sphi 0, %s21
      %s26 = sphi 0, %s22
      %s27 = sphi 0, %s23
      %s49 = sphi 0, %s51
      %s52 = sphi 0, %s49
      %s53 = sphi 0, %s52
      %s69 = sphi 0, %s53
      %s79 = sphi 0, %s81
      %s82 = sphi 0, %s79
      %s83 = sphi 0, %s82
      %s99 = sphi 0, %s83
      %s107 = sphi 0, %s109
      %s110 = sphi 0, %s107
      %s111 = sphi 0, %s110
      %s127 = sphi 0, %s111
      %s137 = sphi 0, %s139
      %s140 = sphi 0, %s137
      %s141 = sphi 0, %s140
      %s157 = sphi 0, %s141
    $region4: #{video_vae_encoder_forward.13} parent=1 // loop_header_branch
      %12 = sbr.rel (%p10) target = $region8
    $region5: #{video_vae_encoder_forward.13} parent=1 // loop_body
      %s14 = ssub.s32 %s9, 1
      %s15 = ssub.s32 %s9, 2
      %s28 = sadd.s32 1, %s19
      %p29 = scmp.ge.s32.totalorder %s28, 18
      %s30 = scalar_select %p29, 0, %s28
      %s31 = sadd.s32 1, %s18
      %s32 = scalar_select %p29, %s31, %s18
      %p33 = scmp.ge.s32.totalorder %s32, 1
      %s34 = scalar_select %p33, 0, %s32
      %s35 = sadd.s32 1, %s17
      %s36 = scalar_select %p33, %s35, %s17
      %p37 = scmp.ge.s32.totalorder %s36, 1
      %s38 = scalar_select %p37, 0, %s36
      %s39 = sadd.s32 1, %s16
      %s40 = scalar_select %p37, %s39, %s16
      %p41 = scmp.ge.s32.totalorder %s40, 4
      %s42 = scalar_select %p41, 0, %s40
      %s43 = ssub.s32 %s16, %s42
      %s44 = ssub.s32 %s17, %s38
      %s45 = sor.u32 %s43, %s44
      %s46 = ssub.s32 %s19, %s30
      %s47 = sor.u32 %s45, %s46
      %p48 = scmp.eq.s32.totalorder %s47, 0
      %s50 = sadd.s32 %s49, 1
      %s51 = scalar_select %p48, %s49, %s50
      %p54 = pneg %p48
      %p55 = scmp.eq.s32.totalorder %s9, 71
      %p56 = por %p54, %p55
      %p57 = scmp.ne.s32.totalorder %s49, %s52
      %p58 = scmp.eq.s32.totalorder %s9, 0
      %p59 = por %p57, %p58
      %p60 = scmp.ne.s32.totalorder %s49, %s52
      %p61 = scmp.eq.s32.totalorder %s14, 71
      %p62 = por %p60, %p61
      %p63 = scmp.ne.s32.totalorder %s52, %s53
      %p64 = scmp.eq.s32.totalorder %s14, 0
      %p65 = por %p63, %p64
      %p66 = scmp.ne.s32.totalorder %s52, %s53
      %p67 = scmp.eq.s32.totalorder %s15, 71
      %p68 = por %p66, %p67
      %p70 = scmp.ne.s32.totalorder %s53, %s69
      %p71 = scmp.eq.s32.totalorder %s15, 0
      %p72 = por %p70, %p71
      %s73 = ssub.s32 %s16, %s42
      %s74 = ssub.s32 %s19, %s30
      %s75 = sor.u32 %s73, %s74
      %s76 = ssub.s32 %s18, %s34
      %s77 = sor.u32 %s75, %s76
      %p78 = scmp.eq.s32.totalorder %s77, 0
      %s80 = sadd.s32 %s79, 1
      %s81 = scalar_select %p78, %s79, %s80
      %p84 = pneg %p78
      %p85 = scmp.eq.s32.totalorder %s9, 71
      %p86 = por %p84, %p85
      %p87 = scmp.ne.s32.totalorder %s79, %s82
      %p88 = scmp.eq.s32.totalorder %s9, 0
      %p89 = por %p87, %p88
      %p90 = scmp.ne.s32.totalorder %s79, %s82
      %p91 = scmp.eq.s32.totalorder %s14, 71
      %p92 = por %p90, %p91
      %p93 = scmp.ne.s32.totalorder %s82, %s83
      %p94 = scmp.eq.s32.totalorder %s14, 0
      %p95 = por %p93, %p94
      %p96 = scmp.ne.s32.totalorder %s82, %s83
      %p97 = scmp.eq.s32.totalorder %s15, 71
      %p98 = por %p96, %p97
      %p100 = scmp.ne.s32.totalorder %s83, %s99
      %p101 = scmp.eq.s32.totalorder %s15, 0
      %p102 = por %p100, %p101
      %s103 = ssub.s32 %s16, %s42
      %s104 = ssub.s32 %s18, %s34
      %s105 = sor.u32 %s103, %s104
      %p106 = scmp.eq.s32.totalorder %s105, 0
      %s108 = sadd.s32 %s107, 1
      %s109 = scalar_select %p106, %s107, %s108
      %p112 = pneg %p106
      %p113 = scmp.eq.s32.totalorder %s9, 71
      %p114 = por %p112, %p113
      %p115 = scmp.ne.s32.totalorder %s107, %s110
      %p116 = scmp.eq.s32.totalorder %s9, 0
      %p117 = por %p115, %p116
      %p118 = scmp.ne.s32.totalorder %s107, %s110
      %p119 = scmp.eq.s32.totalorder %s14, 71
      %p120 = por %p118, %p119
      %p121 = scmp.ne.s32.totalorder %s110, %s111
      %p122 = scmp.eq.s32.totalorder %s14, 0
      %p123 = por %p121, %p122
      %p124 = scmp.ne.s32.totalorder %s110, %s111
      %p125 = scmp.eq.s32.totalorder %s15, 71
      %p126 = por %p124, %p125
      %p128 = scmp.ne.s32.totalorder %s111, %s127
      %p129 = scmp.eq.s32.totalorder %s15, 0
      %p130 = por %p128, %p129
      %s131 = ssub.s32 %s16, %s42
      %s132 = ssub.s32 %s17, %s38
      %s133 = sor.u32 %s131, %s132
      %s134 = ssub.s32 %s18, %s34
      %s135 = sor.u32 %s133, %s134
      %p136 = scmp.eq.s32.totalorder %s135, 0
      %s138 = sadd.s32 %s137, 1
      %s139 = scalar_select %p136, %s137, %s138
      %p142 = pneg %p136
      %p143 = scmp.eq.s32.totalorder %s9, 71
      %p144 = por %p142, %p143
      %p145 = scmp.ne.s32.totalorder %s137, %s140
      %p146 = scmp.eq.s32.totalorder %s9, 0
      %p147 = por %p145, %p146
      %p148 = scmp.ne.s32.totalorder %s137, %s140
      %p149 = scmp.eq.s32.totalorder %s14, 71
      %p150 = por %p148, %p149
      %p151 = scmp.ne.s32.totalorder %s140, %s141
      %p152 = scmp.eq.s32.totalorder %s14, 0
      %p153 = por %p151, %p152
      %p154 = scmp.ne.s32.totalorder %s140, %s141
      %p155 = scmp.eq.s32.totalorder %s15, 71
      %p156 = por %p154, %p155
      %p158 = scmp.ne.s32.totalorder %s141, %s157
      %p159 = scmp.eq.s32.totalorder %s15, 0
      %p160 = por %p158, %p159
      %p161 = scmp.le.s32.totalorder 1, %s9
      %p162 = scmp.lt.s32.totalorder %s9, 73
      %p163 = pnand %p161, %p162
      %p164 = pneg %p163
      // Predicated region
      $region9: #{video_vae_encoder_forward.13} parent=5 // pred_check
        _
      $region10: #{video_vae_encoder_forward.13} parent=5 // pred_check_branch
        %166 = sbr.rel (%p163) target = $region12
      $region11: #{video_vae_encoder_forward.13} parent=5 // pred_region
        %s167 = ssub.s32 %s9, 1
      $region12: #{video_vae_encoder_forward.13} parent=5 // pred_fallthru
        _
      %p168 = scmp.lt.s32.totalorder %s9, 72
      // Predicated region
      $region13: #{video_vae_encoder_forward.13} parent=5 // pred_check
        %p169 = pneg %p168
      $region14: #{video_vae_encoder_forward.13} parent=5 // pred_check_branch
        %171 = sbr.rel (%p169) target = $region16
      $region15: #{video_vae_encoder_forward.13} parent=5 // pred_region
        // Predicated region
        $region17: #{video_vae_encoder_forward.13} parent=15 // pred_check
          %p172 = pneg %p59
        $region18: #{video_vae_encoder_forward.13} parent=15 // pred_check_branch
          %174 = sbr.rel (%p172) target = $region20
        $region19: #{video_vae_encoder_forward.13} parent=15 // pred_region
          %s175 = sand.u32 %s49, 1
          %s176 = sand.u32 %s49, 1
          %s177 = smul.addr %s176, 16
          %s178 = scalar_lea.vmem [#allocation3], %s177
          %s179 = smul.u32 2, %s17
          %s180 = smul.u32 2, %s19
          %s181 = smul.addr %s179, 36
          %s182 = sadd.s32 %s180, %s181
          %s183 = smul.addr %s16, 72
          %s184 = sadd.s32 %s182, %s183
          %s185 = smul.addr %s184, 4
          %s186 = scalar_lea.vmem %s0, %s185
          // Predicated region
          $region21: #{video_vae_encoder_forward.13} parent=19 // pred_check
            _
          $region22: #{video_vae_encoder_forward.13} parent=19 // pred_check_branch
            %188 = sbr.rel (0) target = $region24
          $region23: #{video_vae_encoder_forward.13} parent=19 // pred_region
            // Predicated region
            $region25: #{video_vae_encoder_forward.13} parent=23 // pred_check
              _
            $region26: #{video_vae_encoder_forward.13} parent=23 // pred_check_branch
              %190 = sbr.rel (0) target = $region28
            $region27: #{video_vae_encoder_forward.13} parent=23 // pred_region
              // Predicated region
              $region40: #{video_vae_encoder_forward.13} parent=27 // pred_check
                _
              $region41: #{video_vae_encoder_forward.13} parent=27 // pred_check_branch
                %207 = sbr.rel (0) target = $region43
              $region42: #{video_vae_encoder_forward.13} parent=27 // pred_region
                loop: start=0, step=1, limit=1
                $region44: #{video_vae_encoder_forward.13} parent=42 // loop_pre_header
                  _
                $region45: #{video_vae_encoder_forward.13} parent=42 // loop_header
                  %s209 = sphi 0, %s213
                  %p210 = scmp.ge.s32.totalorder %s209, 1
                  %s214 = sphi %s186, %s186
                  %s215 = sphi %s178, %s178
                $region46: #{video_vae_encoder_forward.13} parent=42 // loop_header_branch
                  %212 = sbr.rel (%p210) target = $region50
                $region47: #{video_vae_encoder_forward.13} parent=42 // loop_body
                  %v216 = vld [vmem:[%s214] sm:$0xff]
                  %217 = vst [vmem:[%s215] sm:$0xff] %v216
                  %v218 = vld [vmem:[%s214 + $0x90] sm:$0xff]
                  %219 = vst [vmem:[%s215 + $0x8] sm:$0xff] %v218
                $region48: #{video_vae_encoder_forward.13} parent=42 // loop_footer
                  %s213 = sadd.s32 1, %s209
                $region49: #{video_vae_encoder_forward.13} parent=42 // loop_footer_branch
                  %208 = sbr.rel target = $region45
                $region50: #{video_vae_encoder_forward.13} parent=42 // loop_exit
                  _
              $region43: #{video_vae_encoder_forward.13} parent=27 // pred_fallthru
                _
              // Predicated region
              $region51: #{video_vae_encoder_forward.13} parent=27 // pred_check
                _
              $region52: #{video_vae_encoder_forward.13} parent=27 // pred_check_branch
                %221 = sbr.rel target = $region54
              $region53: #{video_vae_encoder_forward.13} parent=27 // pred_region
                _
              $region54: #{video_vae_encoder_forward.13} parent=27 // pred_fallthru
                _
            $region28: #{video_vae_encoder_forward.13} parent=23 // pred_fallthru
              _
            // Predicated region
            $region29: #{video_vae_encoder_forward.13} parent=23 // pred_check
              _
            $region30: #{video_vae_encoder_forward.13} parent=23 // pred_check_branch
              %192 = sbr.rel target = $region32
            $region31: #{video_vae_encoder_forward.13} parent=23 // pred_region
              loop: start=0, step=1, limit=1
              $region33: #{video_vae_encoder_forward.13} parent=31 // loop_pre_header
                _
              $region34: #{video_vae_encoder_forward.13} parent=31 // loop_header
                %s195 = sphi 0, %s199
                %p196 = scmp.ge.s32.totalorder %s195, 1
                %s200 = sphi %s186, %s186
                %s201 = sphi %s178, %s178
              $region35: #{video_vae_encoder_forward.13} parent=31 // loop_header_branch
                %198 = sbr.rel (%p196) target = $region39
              $region36: #{video_vae_encoder_forward.13} parent=31 // loop_body
                %v202 = vld [vmem:[%s200] sm:$0xff]
                %203 = vst [vmem:[%s201] sm:$0xff] %v202
                %v204 = vld [vmem:[%s200 + $0x90] sm:$0xff]
                %205 = vst [vmem:[%s201 + $0x8] sm:$0xff] %v204
              $region37: #{video_vae_encoder_forward.13} parent=31 // loop_footer
                %s199 = sadd.s32 1, %s195
              $region38: #{video_vae_encoder_forward.13} parent=31 // loop_footer_branch
                %194 = sbr.rel target = $region34
              $region39: #{video_vae_encoder_forward.13} parent=31 // loop_exit
                _
            $region32: #{video_vae_encoder_forward.13} parent=23 // pred_fallthru
              _
          $region24: #{video_vae_encoder_forward.13} parent=19 // pred_fallthru
            _
          %222 = vnop
        $region20: #{video_vae_encoder_forward.13} parent=15 // pred_fallthru
          _
        // Predicated region
        $region55: #{video_vae_encoder_forward.13} parent=15 // pred_check
          %p223 = pneg %p89
        $region56: #{video_vae_encoder_forward.13} parent=15 // pred_check_branch
          %225 = sbr.rel (%p223) target = $region58
        $region57: #{video_vae_encoder_forward.13} parent=15 // pred_region
          %s226 = smul.u32 32, %s19
          %p227 = scmp.lt.s32.totalorder %s16, 3
          %s228 = scalar_select %p227, %s16, 3
          %p229 = scmp.lt.s32.totalorder %s226, 575
          %s230 = scalar_select %p229, %s226, 575
          %p231 = scmp.lt.s32.totalorder %s18, 0
          %s232 = scalar_select %p231, %s18, 0
          %s233 = sadd.s32 %s232, %s230
          %s234 = smul.addr %s228, 576
          %s235 = sadd.s32 %s233, %s234
          %s236 = smul.addr %s235, 4
          %s237 = scalar_lea.vmem %s1, %s236
          %s238 = smul.u32 32, %s19
        $region58: #{video_vae_encoder_forward.13} parent=15 // pred_fallthru
          _
        // Predicated region
        $region59: #{video_vae_encoder_forward.13} parent=15 // pred_check
          %p239 = pneg %p117
        $region60: #{video_vae_encoder_forward.13} parent=15 // pred_check_branch
          %241 = sbr.rel (%p239) target = $region62
        $region61: #{video_vae_encoder_forward.13} parent=15 // pred_region
          %p242 = scmp.lt.s32.totalorder %s16, 3
          %s243 = scalar_select %p242, %s16, 3
          %p244 = scmp.lt.s32.totalorder %s18, 0
          %s245 = scalar_select %p244, %s18, 0
          %s246 = sadd.s32 %s245, %s243
          %s247 = scalar_lea.vmem %s2, %s246
        $region62: #{video_vae_encoder_forward.13} parent=15 // pred_fallthru
          _
      $region16: #{video_vae_encoder_forward.13} parent=5 // pred_fallthru
        _
      %p248 = scmp.le.s32.totalorder 1, %s9
      %p249 = scmp.lt.s32.totalorder %s9, 73
      %p250 = pnand %p248, %p249
      %p251 = pneg %p250
      // Predicated region
      $region63: #{video_vae_encoder_forward.13} parent=5 // pred_check
        _
      $region64: #{video_vae_encoder_forward.13} parent=5 // pred_check_branch
        %253 = sbr.rel (%p250) target = $region66
      $region65: #{video_vae_encoder_forward.13} parent=5 // pred_region
        %s254 = ssub.s32 %s9, 1
        %s255 = sand.u32 %s52, 1
        %s256 = sand.u32 %s52, 1
        %s257 = smul.addr %s256, 16
        %s258 = scalar_lea.vmem [#allocation3], %s257
        // Predicated region
        $region67: #{video_vae_encoder_forward.13} parent=65 // pred_check
          %p259 = pneg %p65
        $region68: #{video_vae_encoder_forward.13} parent=65 // pred_check_branch
          %261 = sbr.rel (%p259) target = $region70
        $region69: #{video_vae_encoder_forward.13} parent=65 // pred_region
          _
        $region70: #{video_vae_encoder_forward.13} parent=65 // pred_fallthru
          _
        %s262 = sand.u32 %s52, 1
        %s263 = sand.u32 %s52, 1
        %s264 = smul.addr %s263, 16
        %s265 = scalar_lea.vmem [#allocation3], %s264
        %p266 = pneg %p65
        %p267 = pneg %p62
        %s268 = smul.u32 32, %s23
        %p269 = scmp.lt.s32.totalorder %s20, 3
        %s270 = scalar_select %p269, %s20, 3
        %p271 = scmp.lt.s32.totalorder %s268, 575
        %s272 = scalar_select %p271, %s268, 575
        %p273 = scmp.lt.s32.totalorder %s22, 0
        %s274 = scalar_select %p273, %s22, 0
        %s275 = sadd.s32 %s274, %s272
        %s276 = smul.addr %s270, 576
        %s277 = sadd.s32 %s275, %s276
        %s278 = smul.addr %s277, 4
        %s279 = scalar_lea.vmem %s1, %s278
        %p280 = pneg %p95
        %p281 = pneg %p92
        %p282 = scmp.lt.s32.totalorder %s20, 3
        %s283 = scalar_select %p282, %s20, 3
        %p284 = scmp.lt.s32.totalorder %s22, 0
        %s285 = scalar_select %p284, %s22, 0
        %s286 = sadd.s32 %s285, %s283
        %s287 = scalar_lea.vmem %s2, %s286
        %p288 = pneg %p123
        %p289 = pneg %p120
        %p290 = pneg %p153
        %p291 = pneg %p150
        %s292 = smul.u32 2, %s21
        %p293 = scmp.lt.s32.totalorder %s20, 3
        %s294 = scalar_select %p293, %s20, 3
        %p295 = scmp.lt.s32.totalorder %s292, 1
        %s296 = scalar_select %p295, %s292, 1
        %p297 = scmp.lt.s32.totalorder %s22, 0
        %s298 = scalar_select %p297, %s22, 0
        %s299 = sadd.s32 %s298, %s296
        %s300 = smul.addr %s294, 2
        %s301 = sadd.s32 %s299, %s300
        %s302 = smul.addr %s301, 4
        %s303 = scalar_lea.vmem %s3, %s302
        %s304 = smul.u32 2, %s21
        %s305 = smul.u32 2, %s23
        %s306 = smul.u32 32, %s23
        %p307 = scmp.lt.s32.totalorder %s20, 3
        %s308 = scalar_select %p307, %s20, 3
        %p309 = scmp.lt.s32.totalorder %s306, 575
        %s310 = scalar_select %p309, %s306, 575
        %p311 = scmp.lt.s32.totalorder %s22, 0
        %s312 = scalar_select %p311, %s22, 0
        %s313 = sadd.s32 %s312, %s310
        %s314 = smul.addr %s308, 576
        %s315 = sadd.s32 %s313, %s314
        %s316 = smul.addr %s315, 4
        %s317 = scalar_lea.vmem %s1, %s316
        %s318 = smul.u32 32, %s23
        %p319 = scmp.lt.s32.totalorder %s20, 3
        %s320 = scalar_select %p319, %s20, 3
        %p321 = scmp.lt.s32.totalorder %s22, 0
        %s322 = scalar_select %p321, %s22, 0
        %s323 = sadd.s32 %s322, %s320
        %s324 = scalar_lea.vmem %s2, %s323
        %s325 = smul.u32 2, %s21
        %p326 = scmp.lt.s32.totalorder %s20, 3
        %s327 = scalar_select %p326, %s20, 3
        %p328 = scmp.lt.s32.totalorder %s325, 1
        %s329 = scalar_select %p328, %s325, 1
        %p330 = scmp.lt.s32.totalorder %s22, 0
        %s331 = scalar_select %p330, %s22, 0
        %s332 = sadd.s32 %s331, %s329
        %s333 = smul.addr %s327, 2
        %s334 = sadd.s32 %s332, %s333
        %s335 = smul.addr %s334, 4
        %s336 = scalar_lea.vmem %s3, %s335
        %s337 = smul.u32 2, %s21
        %p339 = scmp.eq.s32.totalorder %s23, 0
        // Predicated region
        $region71: #{video_vae_encoder_forward.13} parent=65 // pred_check
          %p340 = pneg %p339
        $region72: #{video_vae_encoder_forward.13} parent=65 // pred_check_branch
          %342 = sbr.rel (%p340) target = $region74
        $region73: #{video_vae_encoder_forward.13} parent=65 // pred_region
          %343 = vst [vmem:[#allocation2] sm:$0xff] 0.0
          %344 = vst [vmem:[#allocation2 + $0x8] sm:$0xff] 0.0
        $region74: #{video_vae_encoder_forward.13} parent=65 // pred_fallthru
          _
        %v345 = vld [vmem:[#allocation2] sm:$0xff]
        %v346 = vld [vmem:[#allocation2 + $0x8] sm:$0xff]
        %v347 = vld [vmem:[%s258] sm:$0xff]
        %v348 = vld [vmem:[%s258 + $0x8] sm:$0xff]
        %v349 = vld [vmem:[%s317] sm:$0xf]
        %v350 = vld [vmem:[%s317 + $0x4] sm:$0xf]
        %v351 = vld [vmem:[%s317 + $0x8] sm:$0xf]
        %v352 = vld [vmem:[%s317 + $0xc] sm:$0xf]
        %v353 = vld [vmem:[%s317 + $0x10] sm:$0xf]
        %v354 = vld [vmem:[%s317 + $0x14] sm:$0xf]
        %v355 = vld [vmem:[%s317 + $0x18] sm:$0xf]
        %v356 = vld [vmem:[%s317 + $0x1c] sm:$0xf]
        %v357 = vld [vmem:[%s317 + $0x20] sm:$0xf]
        %v358 = vld [vmem:[%s317 + $0x24] sm:$0xf]
        %v359 = vld [vmem:[%s317 + $0x28] sm:$0xf]
        %v360 = vld [vmem:[%s317 + $0x2c] sm:$0xf]
        %v361 = vld [vmem:[%s317 + $0x30] sm:$0xf]
        %v362 = vld [vmem:[%s317 + $0x34] sm:$0xf]
        %v363 = vld [vmem:[%s317 + $0x38] sm:$0xf]
        %v364 = vld [vmem:[%s317 + $0x3c] sm:$0xf]
        %v365 = vld [vmem:[%s317 + $0x40] sm:$0xf]
        %v366 = vld [vmem:[%s317 + $0x44] sm:$0xf]
        %v367 = vld [vmem:[%s317 + $0x48] sm:$0xf]
        %v368 = vld [vmem:[%s317 + $0x4c] sm:$0xf]
        %v369 = vld [vmem:[%s317 + $0x50] sm:$0xf]
        %v370 = vld [vmem:[%s317 + $0x54] sm:$0xf]
        %v371 = vld [vmem:[%s317 + $0x58] sm:$0xf]
        %v372 = vld [vmem:[%s317 + $0x5c] sm:$0xf]
        %v373 = vld [vmem:[%s317 + $0x60] sm:$0xf]
        %v374 = vld [vmem:[%s317 + $0x64] sm:$0xf]
        %v375 = vld [vmem:[%s317 + $0x68] sm:$0xf]
        %v376 = vld [vmem:[%s317 + $0x6c] sm:$0xf]
        %v377 = vld [vmem:[%s317 + $0x70] sm:$0xf]
        %v378 = vld [vmem:[%s317 + $0x74] sm:$0xf]
        %v379 = vld [vmem:[%s317 + $0x78] sm:$0xf]
        %v380 = vld [vmem:[%s317 + $0x7c] sm:$0xf]
        %v383 = vunpack.c.l.b16 %v347
        %v384 = vunpack.c.h.b16 %v347
        %v385 = vunpack.c.l.b16 %v348
        %v386 = vunpack.c.h.b16 %v348
        %v387 = vpack.c.b16 %v385, %v383
        %v388 = vpack.c.b16 %v386, %v384
        %v423 = vunpack.c.l.b16 %v349
        %v424 = vunpack.c.l.b16 %v350
        %v425 = vunpack.c.l.b16 %v351
        %v426 = vunpack.c.l.b16 %v352
        %v427 = vunpack.c.l.b16 %v353
        %v428 = vunpack.c.l.b16 %v354
        %v429 = vunpack.c.l.b16 %v355
        %v430 = vunpack.c.l.b16 %v356
        %v431 = vunpack.c.l.b16 %v357
        %v432 = vunpack.c.l.b16 %v358
        %v433 = vunpack.c.l.b16 %v359
        %v434 = vunpack.c.l.b16 %v360
        %v435 = vunpack.c.l.b16 %v361
        %v436 = vunpack.c.l.b16 %v362
        %v437 = vunpack.c.l.b16 %v363
        %v438 = vunpack.c.l.b16 %v364
        %v439 = vunpack.c.l.b16 %v365
        %v440 = vunpack.c.l.b16 %v366
        %v441 = vunpack.c.l.b16 %v367
        %v442 = vunpack.c.l.b16 %v368
        %v443 = vunpack.c.l.b16 %v369
        %v444 = vunpack.c.l.b16 %v370
        %v445 = vunpack.c.l.b16 %v371
        %v446 = vunpack.c.l.b16 %v372
        %v447 = vunpack.c.l.b16 %v373
        %v448 = vunpack.c.l.b16 %v374
        %v449 = vunpack.c.l.b16 %v375
        %v450 = vunpack.c.l.b16 %v376
        %v451 = vunpack.c.l.b16 %v377
        %v452 = vunpack.c.l.b16 %v378
        %v453 = vunpack.c.l.b16 %v379
        %v454 = vunpack.c.l.b16 %v380
        %v455 = vpack.c.b16 %v424, %v423
        %v456 = vpack.c.b16 %v426, %v425
        %v457 = vpack.c.b16 %v428, %v427
        %v458 = vpack.c.b16 %v430, %v429
        %v459 = vpack.c.b16 %v432, %v431
        %v460 = vpack.c.b16 %v434, %v433
        %v461 = vpack.c.b16 %v436, %v435
        %v462 = vpack.c.b16 %v438, %v437
        %v463 = vpack.c.b16 %v440, %v439
        %v464 = vpack.c.b16 %v442, %v441
        %v465 = vpack.c.b16 %v444, %v443
        %v466 = vpack.c.b16 %v446, %v445
        %v467 = vpack.c.b16 %v448, %v447
        %v468 = vpack.c.b16 %v450, %v449
        %v469 = vpack.c.b16 %v452, %v451
        %v470 = vpack.c.b16 %v454, %v453
        %487 = vmatprep.subr.bf16.mxu0 0
        %488 = vmatpush1.bf16.msra.mxu0 %v455
        %489 = vmatprep.subr.bf16.mxu0 0
        %490 = vmatpush1.bf16.msra.mxu0 %v456
        %491 = vmatprep.subr.bf16.mxu0 0
        %492 = vmatpush1.bf16.msra.mxu0 %v457
        %493 = vmatprep.subr.bf16.mxu0 0
        %494 = vmatpush1.bf16.msra.mxu0 %v458
        %495 = vmatprep.subr.bf16.mxu0 0
        %496 = vmatpush1.bf16.msra.mxu0 %v459
        %497 = vmatprep.subr.bf16.mxu0 0
        %498 = vmatpush1.bf16.msra.mxu0 %v460
        %499 = vmatprep.subr.bf16.mxu0 0
        %500 = vmatpush1.bf16.msra.mxu0 %v461
        %501 = vmatprep.subr.bf16.mxu0 0
        %502 = vmatpush1.bf16.msra.mxu0 %v462
        %503 = vmatprep.subr.bf16.mxu0 0
        %504 = vmatpush1.bf16.msra.mxu0 %v463
        %505 = vmatprep.subr.bf16.mxu0 0
        %506 = vmatpush1.bf16.msra.mxu0 %v464
        %507 = vmatprep.subr.bf16.mxu0 0
        %508 = vmatpush1.bf16.msra.mxu0 %v465
        %509 = vmatprep.subr.bf16.mxu0 0
        %510 = vmatpush1.bf16.msra.mxu0 %v466
        %511 = vmatprep.subr.bf16.mxu0 0
        %512 = vmatpush1.bf16.msra.mxu0 %v467
        %513 = vmatprep.subr.bf16.mxu0 0
        %514 = vmatpush1.bf16.msra.mxu0 %v468
        %515 = vmatprep.subr.bf16.mxu0 0
        %516 = vmatpush1.bf16.msra.mxu0 %v469
        %517 = vmatprep.subr.bf16.mxu0 0
        %518 = vmatpush1.bf16.msra.mxu0 %v470
        %519 = vmatprep.mubr.bf16.mxu0 %v388
        %520 = vmatmul.mubr.bf16.gmra.mrb[0].mxu0 %v387
        %v521 = vpop.f32.mrb[0].mxu0
        %v522 = vadd.f32 0.0, %v521
        %v523 = vpop.f32.mrb[0].mxu0
        %v524 = vpop.f32.mrb[0].mxu0
        %v525 = vadd.f32 0.0, %v524
        %v526 = vpop.f32.mrb[0].mxu0
        %527 = vdwg.mxu0
        %v528 = vadd.f32 %v345, %v522
        %v529 = vadd.f32 %v346, %v525
        %530 = vst [vmem:[#allocation2] sm:$0xff] %v528
        %531 = vst [vmem:[#allocation2 + $0x8] sm:$0xff] %v529
        %p532 = scmp.eq.s32.totalorder %s23, 17
        // Predicated region
        $region75: #{video_vae_encoder_forward.13} parent=65 // pred_check
          %p533 = pneg %p532
        $region76: #{video_vae_encoder_forward.13} parent=65 // pred_check_branch
          %535 = sbr.rel (%p533) target = $region78
        $region77: #{video_vae_encoder_forward.13} parent=65 // pred_region
          %v536 = vld [vmem:[#allocation2] sm:$0xff]
          %v537 = vld [vmem:[#allocation2 + $0x8] sm:$0xff]
          %v538 = vld [vmem:[%s324] sm:$0x1]
          %v540 = vlaneseq
          %v541 = vshrl.u32 %v540, 7
          %v542 = vsub.s32 0, %v541
          %v543 = vrot.slane %v538, %v542
          %v545 = vadd.f32 %v536, %v543
          %v546 = vadd.f32 %v537, %v543
          %v547 = vpack.c.bf16 %v546, %v545
          %v549 = vunpack.c.l.b16 %v547
          %v550 = vunpack.c.h.b16 %v547
          %v551 = vpack.c.b16 %v549, %v549
          %v552 = vpack.c.b16 %v550, %v550
          %555 = vst [vmem:[%s336] sm:$0xf] %v551
          %556 = vst [vmem:[%s336 + $0x4] sm:$0xf] %v552
        $region78: #{video_vae_encoder_forward.13} parent=65 // pred_fallthru
          _
        %s557 = smul.u32 2, %s21
        %p558 = scmp.lt.s32.totalorder %s20, 3
        %s559 = scalar_select %p558, %s20, 3
        %p560 = scmp.lt.s32.totalorder %s557, 1
        %s561 = scalar_select %p560, %s557, 1
        %p562 = scmp.lt.s32.totalorder %s22, 0
        %s563 = scalar_select %p562, %s22, 0
        %s564 = sadd.s32 %s563, %s561
        %s565 = smul.addr %s559, 2
        %s566 = sadd.s32 %s564, %s565
        %s567 = smul.addr %s566, 4
        %s568 = scalar_lea.vmem %s3, %s567
        // Predicated region
        $region79: #{video_vae_encoder_forward.13} parent=65 // pred_check
          %p569 = pneg %p150
        $region80: #{video_vae_encoder_forward.13} parent=65 // pred_check_branch
          %571 = sbr.rel (%p569) target = $region82
        $region81: #{video_vae_encoder_forward.13} parent=65 // pred_region
          %s572 = smul.u32 2, %s21
        $region82: #{video_vae_encoder_forward.13} parent=65 // pred_fallthru
          _
      $region66: #{video_vae_encoder_forward.13} parent=5 // pred_fallthru
        _
      %p573 = scmp.le.s32.totalorder 2, %s9
      // Predicated region
      $region83: #{video_vae_encoder_forward.13} parent=5 // pred_check
        %p574 = pneg %p573
      $region84: #{video_vae_encoder_forward.13} parent=5 // pred_check_branch
        %576 = sbr.rel (%p574) target = $region86
      $region85: #{video_vae_encoder_forward.13} parent=5 // pred_region
        %s577 = ssub.s32 %s9, 2
        // Predicated region
        $region87: #{video_vae_encoder_forward.13} parent=85 // pred_check
          %p578 = pneg %p156
        $region88: #{video_vae_encoder_forward.13} parent=85 // pred_check_branch
          %580 = sbr.rel (%p578) target = $region90
        $region89: #{video_vae_encoder_forward.13} parent=85 // pred_region
          %s581 = smul.u32 2, %s25
          %p582 = scmp.lt.s32.totalorder %s24, 3
          %s583 = scalar_select %p582, %s24, 3
          %p584 = scmp.lt.s32.totalorder %s581, 1
          %s585 = scalar_select %p584, %s581, 1
          %p586 = scmp.lt.s32.totalorder %s26, 0
          %s587 = scalar_select %p586, %s26, 0
          %s588 = sadd.s32 %s587, %s585
          %s589 = smul.addr %s583, 2
          %s590 = sadd.s32 %s588, %s589
          %s591 = smul.addr %s590, 4
          %s592 = scalar_lea.vmem %s3, %s591
        $region90: #{video_vae_encoder_forward.13} parent=85 // pred_fallthru
          _
      $region86: #{video_vae_encoder_forward.13} parent=5 // pred_fallthru
        _
    $region6: #{video_vae_encoder_forward.13} parent=1 // loop_footer
      %s13 = sadd.s32 1, %s9
    $region7: #{video_vae_encoder_forward.13} parent=1 // loop_footer_branch
      %8 = sbr.rel target = $region3
    $region8: #{video_vae_encoder_forward.13} parent=1 // loop_exit
      _

// kernel: video_vae_encoder_forward.15
$region0: #{video_vae_encoder_forward.15}
  #allocation0 [shape = 'u32[]', space=smem, size = 0x4, offset = 0x4, fixed_abs, tag = 'smem constant byte address 0x4 - core index']
  #allocation1 [shape = 'u32[144,128]{1,0:T(1,128)}', space=vmem, size = 0x12000, scoped, tag = 'internal scratch']
  #allocation2 [shape = 'f32[16,256]{1,0:T(8,128)}', space=vmem, size = 0x4000, scoped, tag = 'scratch operand']
  %s0 = inlined_call_operand.vmem [shape: bf16[1,16,512], index: 0, kind: input, shape index: {}]
  %s1 = inlined_call_operand.vmem [shape: bf16[1,512,256], index: 1, kind: input, shape index: {}]
  %s2 = inlined_call_operand.vmem [shape: f32[1,1,256], index: 2, kind: input, shape index: {}]
  %s3 = inlined_call_operand.vmem [shape: f32[1,16,256], index: 3, kind: output, shape index: {}]
  %s4 = sld [smem:[#allocation0]]
  $region91: #{video_vae_encoder_forward.15} parent=0
    _
  %s6 = ssub.s32 1, %s4
  %s7 = scalar_select 0, %s6, %s4
  $region1: #{video_vae_encoder_forward.15} parent=0
    #allocation3 [shape = 'u8[16384]{0}', space=vmem, size = 0x4000, scoped, tag = 'input window, operand 0']
    loop: start=0, step=1, limit=4
    $region2: #{video_vae_encoder_forward.15} parent=1 // loop_pre_header
      _
    $region3: #{video_vae_encoder_forward.15} parent=1 // loop_header
      %s9 = sphi 0, %s13
      %p10 = scmp.ge.s32.totalorder %s9, 4
      %s16 = sphi 0, %s42
      %s17 = sphi 0, %s38
      %s18 = sphi 0, %s34
      %s19 = sphi 0, %s30
      %s20 = sphi 0, %s16
      %s21 = sphi 0, %s17
      %s22 = sphi 0, %s18
      %s23 = sphi 0, %s19
      %s24 = sphi 0, %s20
      %s25 = sphi 0, %s21
      %s26 = sphi 0, %s22
      %s27 = sphi 0, %s23
      %s49 = sphi 0, %s51
      %s52 = sphi 0, %s49
      %s53 = sphi 0, %s52
      %s69 = sphi 0, %s53
      %s79 = sphi 0, %s81
      %s82 = sphi 0, %s79
      %s83 = sphi 0, %s82
      %s99 = sphi 0, %s83
      %s107 = sphi 0, %s109
      %s110 = sphi 0, %s107
      %s111 = sphi 0, %s110
      %s127 = sphi 0, %s111
      %s137 = sphi 0, %s139
      %s140 = sphi 0, %s137
      %s141 = sphi 0, %s140
      %s157 = sphi 0, %s141
    $region4: #{video_vae_encoder_forward.15} parent=1 // loop_header_branch
      %12 = sbr.rel (%p10) target = $region8
    $region5: #{video_vae_encoder_forward.15} parent=1 // loop_body
      %s14 = ssub.s32 %s9, 1
      %s15 = ssub.s32 %s9, 2
      %s28 = sadd.s32 1, %s19
      %p29 = scmp.ge.s32.totalorder %s28, 2
      %s30 = scalar_select %p29, 0, %s28
      %s31 = sadd.s32 1, %s18
      %s32 = scalar_select %p29, %s31, %s18
      %p33 = scmp.ge.s32.totalorder %s32, 1
      %s34 = scalar_select %p33, 0, %s32
      %s35 = sadd.s32 1, %s17
      %s36 = scalar_select %p33, %s35, %s17
      %p37 = scmp.ge.s32.totalorder %s36, 1
      %s38 = scalar_select %p37, 0, %s36
      %s39 = sadd.s32 1, %s16
      %s40 = scalar_select %p37, %s39, %s16
      %p41 = scmp.ge.s32.totalorder %s40, 1
      %s42 = scalar_select %p41, 0, %s40
      %s43 = ssub.s32 %s16, %s42
      %s44 = ssub.s32 %s17, %s38
      %s45 = sor.u32 %s43, %s44
      %s46 = ssub.s32 %s19, %s30
      %s47 = sor.u32 %s45, %s46
      %p48 = scmp.eq.s32.totalorder %s47, 0
      %s50 = sadd.s32 %s49, 1
      %s51 = scalar_select %p48, %s49, %s50
      %p54 = pneg %p48
      %p55 = scmp.eq.s32.totalorder %s9, 1
      %p56 = por %p54, %p55
      %p57 = scmp.ne.s32.totalorder %s49, %s52
      %p58 = scmp.eq.s32.totalorder %s9, 0
      %p59 = por %p57, %p58
      %p60 = scmp.ne.s32.totalorder %s49, %s52
      %p61 = scmp.eq.s32.totalorder %s14, 1
      %p62 = por %p60, %p61
      %p63 = scmp.ne.s32.totalorder %s52, %s53
      %p64 = scmp.eq.s32.totalorder %s14, 0
      %p65 = por %p63, %p64
      %p66 = scmp.ne.s32.totalorder %s52, %s53
      %p67 = scmp.eq.s32.totalorder %s15, 1
      %p68 = por %p66, %p67
      %p70 = scmp.ne.s32.totalorder %s53, %s69
      %p71 = scmp.eq.s32.totalorder %s15, 0
      %p72 = por %p70, %p71
      %s73 = ssub.s32 %s16, %s42
      %s74 = ssub.s32 %s19, %s30
      %s75 = sor.u32 %s73, %s74
      %s76 = ssub.s32 %s18, %s34
      %s77 = sor.u32 %s75, %s76
      %p78 = scmp.eq.s32.totalorder %s77, 0
      %s80 = sadd.s32 %s79, 1
      %s81 = scalar_select %p78, %s79, %s80
      %p84 = pneg %p78
      %p85 = scmp.eq.s32.totalorder %s9, 1
      %p86 = por %p84, %p85
      %p87 = scmp.ne.s32.totalorder %s79, %s82
      %p88 = scmp.eq.s32.totalorder %s9, 0
      %p89 = por %p87, %p88
      %p90 = scmp.ne.s32.totalorder %s79, %s82
      %p91 = scmp.eq.s32.totalorder %s14, 1
      %p92 = por %p90, %p91
      %p93 = scmp.ne.s32.totalorder %s82, %s83
      %p94 = scmp.eq.s32.totalorder %s14, 0
      %p95 = por %p93, %p94
      %p96 = scmp.ne.s32.totalorder %s82, %s83
      %p97 = scmp.eq.s32.totalorder %s15, 1
      %p98 = por %p96, %p97
      %p100 = scmp.ne.s32.totalorder %s83, %s99
      %p101 = scmp.eq.s32.totalorder %s15, 0
      %p102 = por %p100, %p101
      %s103 = ssub.s32 %s16, %s42
      %s104 = ssub.s32 %s18, %s34
      %s105 = sor.u32 %s103, %s104
      %p106 = scmp.eq.s32.totalorder %s105, 0
      %s108 = sadd.s32 %s107, 1
      %s109 = scalar_select %p106, %s107, %s108
      %p112 = pneg %p106
      %p113 = scmp.eq.s32.totalorder %s9, 1
      %p114 = por %p112, %p113
      %p115 = scmp.ne.s32.totalorder %s107, %s110
      %p116 = scmp.eq.s32.totalorder %s9, 0
      %p117 = por %p115, %p116
      %p118 = scmp.ne.s32.totalorder %s107, %s110
      %p119 = scmp.eq.s32.totalorder %s14, 1
      %p120 = por %p118, %p119
      %p121 = scmp.ne.s32.totalorder %s110, %s111
      %p122 = scmp.eq.s32.totalorder %s14, 0
      %p123 = por %p121, %p122
      %p124 = scmp.ne.s32.totalorder %s110, %s111
      %p125 = scmp.eq.s32.totalorder %s15, 1
      %p126 = por %p124, %p125
      %p128 = scmp.ne.s32.totalorder %s111, %s127
      %p129 = scmp.eq.s32.totalorder %s15, 0
      %p130 = por %p128, %p129
      %s131 = ssub.s32 %s16, %s42
      %s132 = ssub.s32 %s17, %s38
      %s133 = sor.u32 %s131, %s132
      %s134 = ssub.s32 %s18, %s34
      %s135 = sor.u32 %s133, %s134
      %p136 = scmp.eq.s32.totalorder %s135, 0
      %s138 = sadd.s32 %s137, 1
      %s139 = scalar_select %p136, %s137, %s138
      %p142 = pneg %p136
      %p143 = scmp.eq.s32.totalorder %s9, 1
      %p144 = por %p142, %p143
      %p145 = scmp.ne.s32.totalorder %s137, %s140
      %p146 = scmp.eq.s32.totalorder %s9, 0
      %p147 = por %p145, %p146
      %p148 = scmp.ne.s32.totalorder %s137, %s140
      %p149 = scmp.eq.s32.totalorder %s14, 1
      %p150 = por %p148, %p149
      %p151 = scmp.ne.s32.totalorder %s140, %s141
      %p152 = scmp.eq.s32.totalorder %s14, 0
      %p153 = por %p151, %p152
      %p154 = scmp.ne.s32.totalorder %s140, %s141
      %p155 = scmp.eq.s32.totalorder %s15, 1
      %p156 = por %p154, %p155
      %p158 = scmp.ne.s32.totalorder %s141, %s157
      %p159 = scmp.eq.s32.totalorder %s15, 0
      %p160 = por %p158, %p159
      %p161 = scmp.le.s32.totalorder 1, %s9
      %p162 = scmp.lt.s32.totalorder %s9, 3
      %p163 = pnand %p161, %p162
      %p164 = pneg %p163
      // Predicated region
      $region9: #{video_vae_encoder_forward.15} parent=5 // pred_check
        _
      $region10: #{video_vae_encoder_forward.15} parent=5 // pred_check_branch
        %166 = sbr.rel (%p163) target = $region12
      $region11: #{video_vae_encoder_forward.15} parent=5 // pred_region
        %s167 = ssub.s32 %s9, 1
        // Predicated region
        $region13: #{video_vae_encoder_forward.15} parent=11 // pred_check
          %p168 = pneg %p123
        $region14: #{video_vae_encoder_forward.15} parent=11 // pred_check_branch
          %170 = sbr.rel (%p168) target = $region16
        $region15: #{video_vae_encoder_forward.15} parent=11 // pred_region
          %s171 = smul.u32 2, %s22
          %p172 = scmp.lt.s32.totalorder %s20, 0
          %s173 = scalar_select %p172, %s20, 0
          %p174 = scmp.lt.s32.totalorder %s171, 1
          %s175 = scalar_select %p174, %s171, 1
          %s176 = smul.addr %s173, 2
          %s177 = sadd.s32 %s175, %s176
          %s178 = scalar_lea.vmem %s2, %s177
          %s179 = smul.u32 2, %s22
        $region16: #{video_vae_encoder_forward.15} parent=11 // pred_fallthru
          _
      $region12: #{video_vae_encoder_forward.15} parent=5 // pred_fallthru
        _
      %p180 = scmp.lt.s32.totalorder %s9, 2
      // Predicated region
      $region17: #{video_vae_encoder_forward.15} parent=5 // pred_check
        %p181 = pneg %p180
      $region18: #{video_vae_encoder_forward.15} parent=5 // pred_check_branch
        %183 = sbr.rel (%p181) target = $region20
      $region19: #{video_vae_encoder_forward.15} parent=5 // pred_region
        // Predicated region
        $region21: #{video_vae_encoder_forward.15} parent=19 // pred_check
          %p184 = pneg %p59
        $region22: #{video_vae_encoder_forward.15} parent=19 // pred_check_branch
          %186 = sbr.rel (%p184) target = $region24
        $region23: #{video_vae_encoder_forward.15} parent=19 // pred_region
          %s187 = sand.u32 %s49, 1
          %s188 = sand.u32 %s49, 1
          %s189 = smul.addr %s188, 16
          %s190 = scalar_lea.vmem [#allocation3], %s189
          %s191 = smul.u32 2, %s17
          %s192 = smul.u32 2, %s19
          %s193 = smul.addr %s191, 4
          %s194 = sadd.s32 %s192, %s193
          %s195 = smul.addr %s16, 8
          %s196 = sadd.s32 %s194, %s195
          %s197 = smul.addr %s196, 4
          %s198 = scalar_lea.vmem %s0, %s197
          // Predicated region
          $region25: #{video_vae_encoder_forward.15} parent=23 // pred_check
            _
          $region26: #{video_vae_encoder_forward.15} parent=23 // pred_check_branch
            %200 = sbr.rel (0) target = $region28
          $region27: #{video_vae_encoder_forward.15} parent=23 // pred_region
            // Predicated region
            $region29: #{video_vae_encoder_forward.15} parent=27 // pred_check
              _
            $region30: #{video_vae_encoder_forward.15} parent=27 // pred_check_branch
              %202 = sbr.rel (0) target = $region32
            $region31: #{video_vae_encoder_forward.15} parent=27 // pred_region
              // Predicated region
              $region44: #{video_vae_encoder_forward.15} parent=31 // pred_check
                _
              $region45: #{video_vae_encoder_forward.15} parent=31 // pred_check_branch
                %219 = sbr.rel (0) target = $region47
              $region46: #{video_vae_encoder_forward.15} parent=31 // pred_region
                loop: start=0, step=1, limit=1
                $region48: #{video_vae_encoder_forward.15} parent=46 // loop_pre_header
                  _
                $region49: #{video_vae_encoder_forward.15} parent=46 // loop_header
                  %s221 = sphi 0, %s225
                  %p222 = scmp.ge.s32.totalorder %s221, 1
                  %s226 = sphi %s198, %s198
                  %s227 = sphi %s190, %s190
                $region50: #{video_vae_encoder_forward.15} parent=46 // loop_header_branch
                  %224 = sbr.rel (%p222) target = $region54
                $region51: #{video_vae_encoder_forward.15} parent=46 // loop_body
                  %v228 = vld [vmem:[%s226] sm:$0xff]
                  %229 = vst [vmem:[%s227] sm:$0xff] %v228
                  %v230 = vld [vmem:[%s226 + $0x10] sm:$0xff]
                  %231 = vst [vmem:[%s227 + $0x8] sm:$0xff] %v230
                $region52: #{video_vae_encoder_forward.15} parent=46 // loop_footer
                  %s225 = sadd.s32 1, %s221
                $region53: #{video_vae_encoder_forward.15} parent=46 // loop_footer_branch
                  %220 = sbr.rel target = $region49
                $region54: #{video_vae_encoder_forward.15} parent=46 // loop_exit
                  _
              $region47: #{video_vae_encoder_forward.15} parent=31 // pred_fallthru
                _
              // Predicated region
              $region55: #{video_vae_encoder_forward.15} parent=31 // pred_check
                _
              $region56: #{video_vae_encoder_forward.15} parent=31 // pred_check_branch
                %233 = sbr.rel target = $region58
              $region57: #{video_vae_encoder_forward.15} parent=31 // pred_region
                _
              $region58: #{video_vae_encoder_forward.15} parent=31 // pred_fallthru
                _
            $region32: #{video_vae_encoder_forward.15} parent=27 // pred_fallthru
              _
            // Predicated region
            $region33: #{video_vae_encoder_forward.15} parent=27 // pred_check
              _
            $region34: #{video_vae_encoder_forward.15} parent=27 // pred_check_branch
              %204 = sbr.rel target = $region36
            $region35: #{video_vae_encoder_forward.15} parent=27 // pred_region
              loop: start=0, step=1, limit=1
              $region37: #{video_vae_encoder_forward.15} parent=35 // loop_pre_header
                _
              $region38: #{video_vae_encoder_forward.15} parent=35 // loop_header
                %s207 = sphi 0, %s211
                %p208 = scmp.ge.s32.totalorder %s207, 1
                %s212 = sphi %s198, %s198
                %s213 = sphi %s190, %s190
              $region39: #{video_vae_encoder_forward.15} parent=35 // loop_header_branch
                %210 = sbr.rel (%p208) target = $region43
              $region40: #{video_vae_encoder_forward.15} parent=35 // loop_body
                %v214 = vld [vmem:[%s212] sm:$0xff]
                %215 = vst [vmem:[%s213] sm:$0xff] %v214
                %v216 = vld [vmem:[%s212 + $0x10] sm:$0xff]
                %217 = vst [vmem:[%s213 + $0x8] sm:$0xff] %v216
              $region41: #{video_vae_encoder_forward.15} parent=35 // loop_footer
                %s211 = sadd.s32 1, %s207
              $region42: #{video_vae_encoder_forward.15} parent=35 // loop_footer_branch
                %206 = sbr.rel target = $region38
              $region43: #{video_vae_encoder_forward.15} parent=35 // loop_exit
                _
            $region36: #{video_vae_encoder_forward.15} parent=27 // pred_fallthru
              _
          $region28: #{video_vae_encoder_forward.15} parent=23 // pred_fallthru
            _
          %234 = vnop
        $region24: #{video_vae_encoder_forward.15} parent=19 // pred_fallthru
          _
        // Predicated region
        $region59: #{video_vae_encoder_forward.15} parent=19 // pred_check
          %p235 = pneg %p89
        $region60: #{video_vae_encoder_forward.15} parent=19 // pred_check_branch
          %237 = sbr.rel (%p235) target = $region62
        $region61: #{video_vae_encoder_forward.15} parent=19 // pred_region
          %s238 = smul.u32 32, %s19
          %s239 = smul.u32 2, %s18
          %p240 = scmp.lt.s32.totalorder %s16, 0
          %s241 = scalar_select %p240, %s16, 0
          %p242 = scmp.lt.s32.totalorder %s238, 63
          %s243 = scalar_select %p242, %s238, 63
          %p244 = scmp.lt.s32.totalorder %s239, 1
          %s245 = scalar_select %p244, %s239, 1
          %s246 = smul.addr %s243, 2
          %s247 = sadd.s32 %s245, %s246
          %s248 = smul.addr %s241, 128
          %s249 = sadd.s32 %s247, %s248
          %s250 = smul.addr %s249, 4
          %s251 = scalar_lea.vmem %s1, %s250
          %s252 = smul.u32 32, %s19
          %s253 = smul.u32 2, %s18
        $region62: #{video_vae_encoder_forward.15} parent=19 // pred_fallthru
          _
      $region20: #{video_vae_encoder_forward.15} parent=5 // pred_fallthru
        _
      %p254 = scmp.le.s32.totalorder 1, %s9
      %p255 = scmp.lt.s32.totalorder %s9, 3
      %p256 = pnand %p254, %p255
      %p257 = pneg %p256
      // Predicated region
      $region63: #{video_vae_encoder_forward.15} parent=5 // pred_check
        _
      $region64: #{video_vae_encoder_forward.15} parent=5 // pred_check_branch
        %259 = sbr.rel (%p256) target = $region66
      $region65: #{video_vae_encoder_forward.15} parent=5 // pred_region
        %s260 = ssub.s32 %s9, 1
        %s261 = sand.u32 %s52, 1
        %s262 = sand.u32 %s52, 1
        %s263 = smul.addr %s262, 16
        %s264 = scalar_lea.vmem [#allocation3], %s263
        // Predicated region
        $region67: #{video_vae_encoder_forward.15} parent=65 // pred_check
          %p265 = pneg %p65
        $region68: #{video_vae_encoder_forward.15} parent=65 // pred_check_branch
          %267 = sbr.rel (%p265) target = $region70
        $region69: #{video_vae_encoder_forward.15} parent=65 // pred_region
          _
        $region70: #{video_vae_encoder_forward.15} parent=65 // pred_fallthru
          _
        %s268 = sand.u32 %s52, 1
        %s269 = sand.u32 %s52, 1
        %s270 = smul.addr %s269, 16
        %s271 = scalar_lea.vmem [#allocation3], %s270
        %p272 = pneg %p65
        %p273 = pneg %p62
        %s274 = smul.u32 32, %s23
        %s275 = smul.u32 2, %s22
        %p276 = scmp.lt.s32.totalorder %s20, 0
        %s277 = scalar_select %p276, %s20, 0
        %p278 = scmp.lt.s32.totalorder %s274, 63
        %s279 = scalar_select %p278, %s274, 63
        %p280 = scmp.lt.s32.totalorder %s275, 1
        %s281 = scalar_select %p280, %s275, 1
        %s282 = smul.addr %s279, 2
        %s283 = sadd.s32 %s281, %s282
        %s284 = smul.addr %s277, 128
        %s285 = sadd.s32 %s283, %s284
        %s286 = smul.addr %s285, 4
        %s287 = scalar_lea.vmem %s1, %s286
        %p288 = pneg %p95
        %p289 = pneg %p92
        %s290 = smul.u32 2, %s22
        %p291 = scmp.lt.s32.totalorder %s20, 0
        %s292 = scalar_select %p291, %s20, 0
        %p293 = scmp.lt.s32.totalorder %s290, 1
        %s294 = scalar_select %p293, %s290, 1
        %s295 = smul.addr %s292, 2
        %s296 = sadd.s32 %s294, %s295
        %s297 = scalar_lea.vmem %s2, %s296
        %p298 = pneg %p123
        %p299 = pneg %p120
        %p300 = pneg %p153
        %p301 = pneg %p150
        %s302 = smul.u32 2, %s21
        %s303 = smul.u32 2, %s22
        %p304 = scmp.lt.s32.totalorder %s20, 0
        %s305 = scalar_select %p304, %s20, 0
        %p306 = scmp.lt.s32.totalorder %s302, 1
        %s307 = scalar_select %p306, %s302, 1
        %p308 = scmp.lt.s32.totalorder %s303, 1
        %s309 = scalar_select %p308, %s303, 1
        %s310 = smul.addr %s307, 2
        %s311 = sadd.s32 %s309, %s310
        %s312 = smul.addr %s305, 4
        %s313 = sadd.s32 %s311, %s312
        %s314 = smul.addr %s313, 8
        %s315 = scalar_lea.vmem %s3, %s314
        %s316 = smul.u32 2, %s21
        %s317 = smul.u32 2, %s23
        %s318 = smul.u32 32, %s23
        %s319 = smul.u32 2, %s22
        %p320 = scmp.lt.s32.totalorder %s20, 0
        %s321 = scalar_select %p320, %s20, 0
        %p322 = scmp.lt.s32.totalorder %s318, 63
        %s323 = scalar_select %p322, %s318, 63
        %p324 = scmp.lt.s32.totalorder %s319, 1
        %s325 = scalar_select %p324, %s319, 1
        %s326 = smul.addr %s323, 2
        %s327 = sadd.s32 %s325, %s326
        %s328 = smul.addr %s321, 128
        %s329 = sadd.s32 %s327, %s328
        %s330 = smul.addr %s329, 4
        %s331 = scalar_lea.vmem %s1, %s330
        %s332 = smul.u32 32, %s23
        %s333 = smul.u32 2, %s22
        %s334 = smul.u32 2, %s22
        %p335 = scmp.lt.s32.totalorder %s20, 0
        %s336 = scalar_select %p335, %s20, 0
        %p337 = scmp.lt.s32.totalorder %s334, 1
        %s338 = scalar_select %p337, %s334, 1
        %s339 = smul.addr %s336, 2
        %s340 = sadd.s32 %s338, %s339
        %s341 = scalar_lea.vmem %s2, %s340
        %s342 = smul.u32 2, %s22
        %s343 = smul.u32 2, %s21
        %s344 = smul.u32 2, %s22
        %p345 = scmp.lt.s32.totalorder %s20, 0
        %s346 = scalar_select %p345, %s20, 0
        %p347 = scmp.lt.s32.totalorder %s343, 1
        %s348 = scalar_select %p347, %s343, 1
        %p349 = scmp.lt.s32.totalorder %s344, 1
        %s350 = scalar_select %p349, %s344, 1
        %s351 = smul.addr %s348, 2
        %s352 = sadd.s32 %s350, %s351
        %s353 = smul.addr %s346, 4
        %s354 = sadd.s32 %s352, %s353
        %s355 = smul.addr %s354, 8
        %s356 = scalar_lea.vmem %s3, %s355
        %s357 = smul.u32 2, %s21
        %s358 = smul.u32 2, %s22
        %p359 = scmp.eq.s32.totalorder %s23, 0
        // Predicated region
        $region71: #{video_vae_encoder_forward.15} parent=65 // pred_check
          %p360 = pneg %p359
        $region72: #{video_vae_encoder_forward.15} parent=65 // pred_check_branch
          %362 = sbr.rel (%p360) target = $region74
        $region73: #{video_vae_encoder_forward.15} parent=65 // pred_region
          %363 = vst [vmem:[#allocation2] sm:$0xff] 0.0
          %364 = vst [vmem:[#allocation2 + $0x8] sm:$0xff] 0.0
          %365 = vst [vmem:[#allocation2 + $0x10] sm:$0xff] 0.0
          %366 = vst [vmem:[#allocation2 + $0x18] sm:$0xff] 0.0
        $region74: #{video_vae_encoder_forward.15} parent=65 // pred_fallthru
          _
        %v367 = vld [vmem:[#allocation2] sm:$0xff]
        %v368 = vld [vmem:[#allocation2 + $0x8] sm:$0xff]
        %v369 = vld [vmem:[#allocation2 + $0x10] sm:$0xff]
        %v370 = vld [vmem:[#allocation2 + $0x18] sm:$0xff]
        %v371 = vld [vmem:[%s264] sm:$0xff]
        %v372 = vld [vmem:[%s264 + $0x8] sm:$0xff]
        %v373 = vld [vmem:[%s331] sm:$0xff]
        %v374 = vld [vmem:[%s331 + $0x8] sm:$0xff]
        %v375 = vld [vmem:[%s331 + $0x10] sm:$0xff]
        %v376 = vld [vmem:[%s331 + $0x18] sm:$0xff]
        %v377 = vld [vmem:[%s331 + $0x20] sm:$0xff]
        %v378 = vld [vmem:[%s331 + $0x28] sm:$0xff]
        %v379 = vld [vmem:[%s331 + $0x30] sm:$0xff]
        %v380 = vld [vmem:[%s331 + $0x38] sm:$0xff]
        %v381 = vld [vmem:[%s331 + $0x40] sm:$0xff]
        %v382 = vld [vmem:[%s331 + $0x48] sm:$0xff]
        %v383 = vld [vmem:[%s331 + $0x50] sm:$0xff]
        %v384 = vld [vmem:[%s331 + $0x58] sm:$0xff]
        %v385 = vld [vmem:[%s331 + $0x60] sm:$0xff]
        %v386 = vld [vmem:[%s331 + $0x68] sm:$0xff]
        %v387 = vld [vmem:[%s331 + $0x70] sm:$0xff]
        %v388 = vld [vmem:[%s331 + $0x78] sm:$0xff]
        %v389 = vld [vmem:[%s331 + $0x80] sm:$0xff]
        %v390 = vld [vmem:[%s331 + $0x88] sm:$0xff]
        %v391 = vld [vmem:[%s331 + $0x90] sm:$0xff]
        %v392 = vld [vmem:[%s331 + $0x98] sm:$0xff]
        %v393 = vld [vmem:[%s331 + $0xa0] sm:$0xff]
        %v394 = vld [vmem:[%s331 + $0xa8] sm:$0xff]
        %v395 = vld [vmem:[%s331 + $0xb0] sm:$0xff]
        %v396 = vld [vmem:[%s331 + $0xb8] sm:$0xff]
        %v397 = vld [vmem:[%s331 + $0xc0] sm:$0xff]
        %v398 = vld [vmem:[%s331 + $0xc8] sm:$0xff]
        %v399 = vld [vmem:[%s331 + $0xd0] sm:$0xff]
        %v400 = vld [vmem:[%s331 + $0xd8] sm:$0xff]
        %v401 = vld [vmem:[%s331 + $0xe0] sm:$0xff]
        %v402 = vld [vmem:[%s331 + $0xe8] sm:$0xff]
        %v403 = vld [vmem:[%s331 + $0xf0] sm:$0xff]
        %v404 = vld [vmem:[%s331 + $0xf8] sm:$0xff]
        %v407 = vunpack.c.l.b16 %v371
        %v408 = vunpack.c.h.b16 %v371
        %v409 = vunpack.c.l.b16 %v372
        %v410 = vunpack.c.h.b16 %v372
        %v411 = vpack.c.b16 %v409, %v407
        %v412 = vpack.c.b16 %v410, %v408
        %v447 = vunpack.c.l.b16 %v373
        %v448 = vunpack.c.h.b16 %v373
        %v449 = vunpack.c.l.b16 %v374
        %v450 = vunpack.c.h.b16 %v374
        %v451 = vunpack.c.l.b16 %v375
        %v452 = vunpack.c.h.b16 %v375
        %v453 = vunpack.c.l.b16 %v376
        %v454 = vunpack.c.h.b16 %v376
        %v455 = vunpack.c.l.b16 %v377
        %v456 = vunpack.c.h.b16 %v377
        %v457 = vunpack.c.l.b16 %v378
        %v458 = vunpack.c.h.b16 %v378
        %v459 = vunpack.c.l.b16 %v379
        %v460 = vunpack.c.h.b16 %v379
        %v461 = vunpack.c.l.b16 %v380
        %v462 = vunpack.c.h.b16 %v380
        %v463 = vunpack.c.l.b16 %v381
        %v464 = vunpack.c.h.b16 %v381
        %v465 = vunpack.c.l.b16 %v382
        %v466 = vunpack.c.h.b16 %v382
        %v467 = vunpack.c.l.b16 %v383
        %v468 = vunpack.c.h.b16 %v383
        %v469 = vunpack.c.l.b16 %v384
        %v470 = vunpack.c.h.b16 %v384
        %v471 = vunpack.c.l.b16 %v385
        %v472 = vunpack.c.h.b16 %v385
        %v473 = vunpack.c.l.b16 %v386
        %v474 = vunpack.c.h.b16 %v386
        %v475 = vunpack.c.l.b16 %v387
        %v476 = vunpack.c.h.b16 %v387
        %v477 = vunpack.c.l.b16 %v388
        %v478 = vunpack.c.h.b16 %v388
        %v479 = vunpack.c.l.b16 %v389
        %v480 = vunpack.c.h.b16 %v389
        %v481 = vunpack.c.l.b16 %v390
        %v482 = vunpack.c.h.b16 %v390
        %v483 = vunpack.c.l.b16 %v391
        %v484 = vunpack.c.h.b16 %v391
        %v485 = vunpack.c.l.b16 %v392
        %v486 = vunpack.c.h.b16 %v392
        %v487 = vunpack.c.l.b16 %v393
        %v488 = vunpack.c.h.b16 %v393
        %v489 = vunpack.c.l.b16 %v394
        %v490 = vunpack.c.h.b16 %v394
        %v491 = vunpack.c.l.b16 %v395
        %v492 = vunpack.c.h.b16 %v395
        %v493 = vunpack.c.l.b16 %v396
        %v494 = vunpack.c.h.b16 %v396
        %v495 = vunpack.c.l.b16 %v397
        %v496 = vunpack.c.h.b16 %v397
        %v497 = vunpack.c.l.b16 %v398
        %v498 = vunpack.c.h.b16 %v398
        %v499 = vunpack.c.l.b16 %v399
        %v500 = vunpack.c.h.b16 %v399
        %v501 = vunpack.c.l.b16 %v400
        %v502 = vunpack.c.h.b16 %v400
        %v503 = vunpack.c.l.b16 %v401
        %v504 = vunpack.c.h.b16 %v401
        %v505 = vunpack.c.l.b16 %v402
        %v506 = vunpack.c.h.b16 %v402
        %v507 = vunpack.c.l.b16 %v403
        %v508 = vunpack.c.h.b16 %v403
        %v509 = vunpack.c.l.b16 %v404
        %v510 = vunpack.c.h.b16 %v404
        %v511 = vpack.c.b16 %v449, %v447
        %v512 = vpack.c.b16 %v450, %v448
        %v513 = vpack.c.b16 %v453, %v451
        %v514 = vpack.c.b16 %v454, %v452
        %v515 = vpack.c.b16 %v457, %v455
        %v516 = vpack.c.b16 %v458, %v456
        %v517 = vpack.c.b16 %v461, %v459
        %v518 = vpack.c.b16 %v462, %v460
        %v519 = vpack.c.b16 %v465, %v463
        %v520 = vpack.c.b16 %v466, %v464
        %v521 = vpack.c.b16 %v469, %v467
        %v522 = vpack.c.b16 %v470, %v468
        %v523 = vpack.c.b16 %v473, %v471
        %v524 = vpack.c.b16 %v474, %v472
        %v525 = vpack.c.b16 %v477, %v475
        %v526 = vpack.c.b16 %v478, %v476
        %v527 = vpack.c.b16 %v481, %v479
        %v528 = vpack.c.b16 %v482, %v480
        %v529 = vpack.c.b16 %v485, %v483
        %v530 = vpack.c.b16 %v486, %v484
        %v531 = vpack.c.b16 %v489, %v487
        %v532 = vpack.c.b16 %v490, %v488
        %v533 = vpack.c.b16 %v493, %v491
        %v534 = vpack.c.b16 %v494, %v492
        %v535 = vpack.c.b16 %v497, %v495
        %v536 = vpack.c.b16 %v498, %v496
        %v537 = vpack.c.b16 %v501, %v499
        %v538 = vpack.c.b16 %v502, %v500
        %v539 = vpack.c.b16 %v505, %v503
        %v540 = vpack.c.b16 %v506, %v504
        %v541 = vpack.c.b16 %v509, %v507
        %v542 = vpack.c.b16 %v510, %v508
        %575 = vmatprep.subr.bf16.mxu0 %v512
        %576 = vmatpush1.bf16.msra.mxu0 %v511
        %577 = vmatprep.subr.bf16.mxu0 %v514
        %578 = vmatpush1.bf16.msra.mxu0 %v513
        %579 = vmatprep.subr.bf16.mxu0 %v516
        %580 = vmatpush1.bf16.msra.mxu0 %v515
        %581 = vmatprep.subr.bf16.mxu0 %v518
        %582 = vmatpush1.bf16.msra.mxu0 %v517
        %583 = vmatprep.subr.bf16.mxu0 %v520
        %584 = vmatpush1.bf16.msra.mxu0 %v519
        %585 = vmatprep.subr.bf16.mxu0 %v522
        %586 = vmatpush1.bf16.msra.mxu0 %v521
        %587 = vmatprep.subr.bf16.mxu0 %v524
        %588 = vmatpush1.bf16.msra.mxu0 %v523
        %589 = vmatprep.subr.bf16.mxu0 %v526
        %590 = vmatpush1.bf16.msra.mxu0 %v525
        %591 = vmatprep.subr.bf16.mxu0 %v528
        %592 = vmatpush1.bf16.msra.mxu0 %v527
        %593 = vmatprep.subr.bf16.mxu0 %v530
        %594 = vmatpush1.bf16.msra.mxu0 %v529
        %595 = vmatprep.subr.bf16.mxu0 %v532
        %596 = vmatpush1.bf16.msra.mxu0 %v531
        %597 = vmatprep.subr.bf16.mxu0 %v534
        %598 = vmatpush1.bf16.msra.mxu0 %v533
        %599 = vmatprep.subr.bf16.mxu0 %v536
        %600 = vmatpush1.bf16.msra.mxu0 %v535
        %601 = vmatprep.subr.bf16.mxu0 %v538
        %602 = vmatpush1.bf16.msra.mxu0 %v537
        %603 = vmatprep.subr.bf16.mxu0 %v540
        %604 = vmatpush1.bf16.msra.mxu0 %v539
        %605 = vmatprep.subr.bf16.mxu0 %v542
        %606 = vmatpush1.bf16.msra.mxu0 %v541
        %607 = vmatprep.mubr.bf16.mxu0 %v412
        %608 = vmatmul.mubr.bf16.gmra.mrb[0].mxu0 %v411
        %v609 = vpop.f32.mrb[0].mxu0
        %v610 = vadd.f32 0.0, %v609
        %v611 = vpop.f32.mrb[0].mxu0
        %v612 = vadd.f32 0.0, %v611
        %v613 = vpop.f32.mrb[0].mxu0
        %v614 = vadd.f32 0.0, %v613
        %v615 = vpop.f32.mrb[0].mxu0
        %v616 = vadd.f32 0.0, %v615
        %617 = vdwg.mxu0
        %v618 = vadd.f32 %v367, %v610
        %v619 = vadd.f32 %v368, %v612
        %v620 = vadd.f32 %v369, %v614
        %v621 = vadd.f32 %v370, %v616
        %622 = vst [vmem:[#allocation2] sm:$0xff] %v618
        %623 = vst [vmem:[#allocation2 + $0x8] sm:$0xff] %v619
        %624 = vst [vmem:[#allocation2 + $0x10] sm:$0xff] %v620
        %625 = vst [vmem:[#allocation2 + $0x18] sm:$0xff] %v621
        %p626 = scmp.eq.s32.totalorder %s23, 1
        // Predicated region
        $region75: #{video_vae_encoder_forward.15} parent=65 // pred_check
          %p627 = pneg %p626
        $region76: #{video_vae_encoder_forward.15} parent=65 // pred_check_branch
          %629 = sbr.rel (%p627) target = $region78
        $region77: #{video_vae_encoder_forward.15} parent=65 // pred_region
          %v630 = vld [vmem:[#allocation2] sm:$0xff]
          %v631 = vld [vmem:[#allocation2 + $0x8] sm:$0xff]
          %v632 = vld [vmem:[#allocation2 + $0x10] sm:$0xff]
          %v633 = vld [vmem:[#allocation2 + $0x18] sm:$0xff]
          %v634 = vld [vmem:[%s341] sm:$0x3]
          %v636 = vlaneseq
          %v637 = vshrl.u32 %v636, 7
          %v638 = vsub.s32 0, %v637
          %v639 = vrot.slane %v634, %v638
          %v640 = vlaneseq
          %v641 = vshrl.u32 %v640, 7
          %v642 = vsub.s32 1, %v641
          %v643 = vrot.slane %v634, %v642
          %v646 = vadd.f32 %v630, %v639
          %v647 = vadd.f32 %v631, %v643
          %v648 = vadd.f32 %v632, %v639
          %v649 = vadd.f32 %v633, %v643
          %650 = vst [vmem:[%s356] sm:$0xff] %v646
          %651 = vst [vmem:[%s356 + $0x8] sm:$0xff] %v647
          %652 = vst [vmem:[%s356 + $0x10] sm:$0xff] %v648
          %653 = vst [vmem:[%s356 + $0x18] sm:$0xff] %v649
        $region78: #{video_vae_encoder_forward.15} parent=65 // pred_fallthru
          _
        %s654 = smul.u32 2, %s21
        %s655 = smul.u32 2, %s22
        %p656 = scmp.lt.s32.totalorder %s20, 0
        %s657 = scalar_select %p656, %s20, 0
        %p658 = scmp.lt.s32.totalorder %s654, 1
        %s659 = scalar_select %p658, %s654, 1
        %p660 = scmp.lt.s32.totalorder %s655, 1
        %s661 = scalar_select %p660, %s655, 1
        %s662 = smul.addr %s659, 2
        %s663 = sadd.s32 %s661, %s662
        %s664 = smul.addr %s657, 4
        %s665 = sadd.s32 %s663, %s664
        %s666 = smul.addr %s665, 8
        %s667 = scalar_lea.vmem %s3, %s666
        // Predicated region
        $region79: #{video_vae_encoder_forward.15} parent=65 // pred_check
          %p668 = pneg %p150
        $region80: #{video_vae_encoder_forward.15} parent=65 // pred_check_branch
          %670 = sbr.rel (%p668) target = $region82
        $region81: #{video_vae_encoder_forward.15} parent=65 // pred_region
          %s671 = smul.u32 2, %s21
          %s672 = smul.u32 2, %s22
        $region82: #{video_vae_encoder_forward.15} parent=65 // pred_fallthru
          _
        // Predicated region
        $region83: #{video_vae_encoder_forward.15} parent=65 // pred_check
          %p673 = pneg %p150
        $region84: #{video_vae_encoder_forward.15} parent=65 // pred_check_branch
          %675 = sbr.rel (%p673) target = $region86
        $region85: #{video_vae_encoder_forward.15} parent=65 // pred_region
          %s676 = smul.u32 2, %s21
          %s677 = smul.u32 2, %s22
          %p678 = scmp.lt.s32.totalorder %s20, 0
          %s679 = scalar_select %p678, %s20, 0
          %p680 = scmp.lt.s32.totalorder %s676, 1
          %s681 = scalar_select %p680, %s676, 1
          %p682 = scmp.lt.s32.totalorder %s677, 1
          %s683 = scalar_select %p682, %s677, 1
          %s684 = smul.addr %s681, 2
          %s685 = sadd.s32 %s683, %s684
          %s686 = smul.addr %s679, 4
          %s687 = sadd.s32 %s685, %s686
          %s688 = smul.addr %s687, 8
          %s689 = scalar_lea.vmem %s3, %s688
        $region86: #{video_vae_encoder_forward.15} parent=65 // pred_fallthru
          _
      $region66: #{video_vae_encoder_forward.15} parent=5 // pred_fallthru
        _
      %p690 = scmp.le.s32.totalorder 2, %s9
      // Predicated region
      $region87: #{video_vae_encoder_forward.15} parent=5 // pred_check
        %p691 = pneg %p690
      $region88: #{video_vae_encoder_forward.15} parent=5 // pred_check_branch
        %693 = sbr.rel (%p691) target = $region90
      $region89: #{video_vae_encoder_forward.15} parent=5 // pred_region
        %s694 = ssub.s32 %s9, 2
      $region90: #{video_vae_encoder_forward.15} parent=5 // pred_fallthru
        _
    $region6: #{video_vae_encoder_forward.15} parent=1 // loop_footer
      %s13 = sadd.s32 1, %s9
    $region7: #{video_vae_encoder_forward.15} parent=1 // loop_footer_branch
      %8 = sbr.rel target = $region3
    $region8: #{video_vae_encoder_forward.15} parent=1 // loop_exit
      _

</llo_original>
